<compile_context>
chip_gen: v6e
topology: v6e:2x2x1
jax: 0.10.0
libtpu: 0.0.40
codegen_flags: <defaults>
</compile_context>

<pallas_src>
import functools
import math

import jax
import jax.numpy as jnp
from jax.experimental import pallas as pl
from jax.experimental.pallas import tpu as pltpu


# -----------------------------------------------------------------------------
# In-kernel helpers (plain Python, traced inside the kernel body)
# -----------------------------------------------------------------------------
def _layer_norm(y, gamma, beta, eps):
    # One-pass mean / E[y^2]; var = E[y^2] - mean^2 (== biased variance).
    mean = jnp.mean(y, axis=-1, keepdims=True)
    ms = jnp.mean(y * y, axis=-1, keepdims=True)
    var = ms - mean * mean
    return (y - mean) * jax.lax.rsqrt(var + eps) * gamma + beta


def _mha_block(xq, xkv, wqkv_ref, bqkv_ref, wo_ref, bo_ref, g_ref, b_ref,
               *, n_heads, inv_scale, eps):
    """LayerNorm(xq + MHA(xq, xkv, xkv) @ Wo + bo).  All values stay in vregs."""
    H = n_heads
    ctx_heads = []
    # Static trace-time loop (H=4 here). TODO(synk): switch to
    # lax.fori_loop(..., unroll=True) if H / seq grow and vregs start spilling.
    for h in range(H):
        # Per-head projections straight from head-major weight slabs:
        # no lane slicing of the (S, D) activations, no K|V mid-vreg split.
        qh = jnp.dot(xq, wqkv_ref[h],
                     preferred_element_type=jnp.float32) + bqkv_ref[h]
        kh = jnp.dot(xkv, wqkv_ref[H + h],
                     preferred_element_type=jnp.float32) + bqkv_ref[H + h]
        vh = jnp.dot(xkv, wqkv_ref[2 * H + h],
                     preferred_element_type=jnp.float32) + bqkv_ref[2 * H + h]
        # scores = (q / sqrt(d_k)) . k^T expressed as a dot_general contracting
        # dim 1 of both operands -> no explicit transpose.
        s = jax.lax.dot_general(qh * inv_scale, kh,
                                (((1,), (1,)), ((), ())),
                                preferred_element_type=jnp.float32)  # (Sq, Sk)
        s = s - jnp.max(s, axis=-1, keepdims=True)
        p = jnp.exp(s)
        p = p / jnp.sum(p, axis=-1, keepdims=True)                   # exact softmax
        ctx_heads.append(jnp.dot(p, vh, preferred_element_type=jnp.float32))
    ctx = jnp.concatenate(ctx_heads, axis=-1)                        # (Sq, D)
    attn = jnp.dot(ctx, wo_ref[...],
                   preferred_element_type=jnp.float32) + bo_ref[...]
    return _layer_norm(xq + attn, g_ref[...], b_ref[...], eps)


# -----------------------------------------------------------------------------
# Whole decoder layer as one kernel (per grid step = one batch element)
# -----------------------------------------------------------------------------
def _decoder_layer_kernel(x_ref, enc_ref,
                          sa_wqkv, sa_bqkv, sa_wo, sa_bo, ln1_g, ln1_b,
                          ca_wqkv, ca_bqkv, ca_wo, ca_bo, ln2_g, ln2_b,
                          w1_ref, b1_ref, w2_ref, b2_ref, ln3_g, ln3_b,
                          o_ref, *, n_heads, inv_scale, eps):
    x = x_ref[...].astype(jnp.float32)       # (S, D)  this batch's decoder rows
    enc = enc_ref[...].astype(jnp.float32)   # (Sk, D) this batch's encoder rows

    # x = norm1(x + self_attention(x, x, x))
    x = _mha_block(x, x, sa_wqkv, sa_bqkv, sa_wo, sa_bo, ln1_g, ln1_b,
                   n_heads=n_heads, inv_scale=inv_scale, eps=eps)
    # x = norm2(x + cross_attention(x, enc, enc))
    x = _mha_block(x, enc, ca_wqkv, ca_bqkv, ca_wo, ca_bo, ln2_g, ln2_b,
                   n_heads=n_heads, inv_scale=inv_scale, eps=eps)
    # x = norm3(x + linear2(relu(linear1(x))))    (d_ff intermediate stays in vregs)
    h = jnp.dot(x, w1_ref[...], preferred_element_type=jnp.float32) + b1_ref[...]
    h = jnp.maximum(h, 0.0)
    f = jnp.dot(h, w2_ref[...], preferred_element_type=jnp.float32) + b2_ref[...]
    x = _layer_norm(x + f, ln3_g[...], ln3_b[...], eps)

    o_ref[...] = x.astype(o_ref.dtype)


def decoder_layer_forward(params, x, enc_output, *, n_heads, eps=1e-5):
    B, S, D = x.shape
    Sk = enc_output.shape[1]
    dk = D // n_heads
    x2 = x.reshape(B * S, D)
    enc2 = enc_output.reshape(B * Sk, D)

    sa, ca, ffn = params["self_attn"], params["cross_attn"], params["ffn"]
    Dff = ffn["w1"].shape[1]

    def resident(shape):
        nd = len(shape)
        return pl.BlockSpec(shape, lambda b, _nd=nd: (0,) * _nd)

    kernel = functools.partial(_decoder_layer_kernel, n_heads=n_heads,
                               inv_scale=1.0 / math.sqrt(dk), eps=eps)

    out2 = pl.pallas_call(
        kernel,
        out_shape=jax.ShapeDtypeStruct((B * S, D), x.dtype),
        grid=(B,),
        in_specs=[
            pl.BlockSpec((S, D), lambda b: (b, 0)),    # decoder rows of batch b
            pl.BlockSpec((Sk, D), lambda b: (b, 0)),   # encoder rows of batch b
            # self-attention params (resident across grid)
            resident((3 * n_heads, D, dk)), resident((3 * n_heads, 1, dk)),
            resident((D, D)), resident((1, D)),
            resident((1, D)), resident((1, D)),
            # cross-attention params
            resident((3 * n_heads, D, dk)), resident((3 * n_heads, 1, dk)),
            resident((D, D)), resident((1, D)),
            resident((1, D)), resident((1, D)),
            # feed-forward + final LayerNorm params
            resident((D, Dff)), resident((1, Dff)),
            resident((Dff, D)), resident((1, D)),
            resident((1, D)), resident((1, D)),
        ],
        out_specs=pl.BlockSpec((S, D), lambda b: (b, 0)),
        compiler_params=pltpu.CompilerParams(
            dimension_semantics=("parallel",),
            vmem_limit_bytes=32 * 1024 * 1024),
    )(x2, enc2,
      sa["wqkv"], sa["bqkv"], sa["wo"], sa["bo"],
      params["ln1"]["g"], params["ln1"]["b"],
      ca["wqkv"], ca["bqkv"], ca["wo"], ca["bo"],
      params["ln2"]["g"], params["ln2"]["b"],
      ffn["w1"], ffn["b1"], ffn["w2"], ffn["b2"],
      params["ln3"]["g"], params["ln3"]["b"])
    return out2.reshape(B, S, D)


# -----------------------------------------------------------------------------
# Deterministic parameter init (head-major weight slabs built once at init)
# -----------------------------------------------------------------------------
class KeyGen:
    def __init__(self, key):
        self._key = key

    def __call__(self):
        self._key, sub = jax.random.split(self._key)
        return sub


def _linear(kg, din, dout):
    w = jax.random.normal(kg(), (din, dout), jnp.float32) * 0.02
    b = jax.random.normal(kg(), (dout,), jnp.float32) * 0.02
    return w, b


def _head_major(w, b, n_heads):
    # (D, D) -> (H, D, dk); (D,) -> (H, 1, dk).  Contiguous head chunks, same
    # split as PyTorch's .view(B, S, H, d_k).
    din, dout = w.shape
    dk = dout // n_heads
    return (w.reshape(din, n_heads, dk).transpose(1, 0, 2),
            b.reshape(n_heads, 1, dk))


def _mha_params(kg, d, n_heads):
    wq, bq = _linear(kg, d, d)
    wk, bk = _linear(kg, d, d)
    wv, bv = _linear(kg, d, d)
    wo, bo = _linear(kg, d, d)
    wq_h, bq_h = _head_major(wq, bq, n_heads)
    wk_h, bk_h = _head_major(wk, bk, n_heads)
    wv_h, bv_h = _head_major(wv, bv, n_heads)
    return {
        # leading axis = [q heads | k heads | v heads]
        "wqkv": jnp.concatenate([wq_h, wk_h, wv_h], axis=0),   # (3H, D, dk)
        "bqkv": jnp.concatenate([bq_h, bk_h, bv_h], axis=0),   # (3H, 1, dk)
        "wo": wo, "bo": bo.reshape(1, d),
        # dense copies, used only by the pure-JAX reference check
        "_wq": wq, "_bq": bq, "_wk": wk, "_bk": bk, "_wv": wv, "_bv": bv,
    }


def _ln_params(d):
    return {"g": jnp.ones((1, d), jnp.float32),
            "b": jnp.zeros((1, d), jnp.float32)}


def init_params(key, *, d_model, d_ff, n_heads):
    kg = KeyGen(key)
    w1, b1 = _linear(kg, d_model, d_ff)
    w2, b2 = _linear(kg, d_ff, d_model)
    return {
        "self_attn": _mha_params(kg, d_model, n_heads),
        "cross_attn": _mha_params(kg, d_model, n_heads),
        "ffn": {"w1": w1, "b1": b1.reshape(1, d_ff),
                "w2": w2, "b2": b2.reshape(1, d_model)},
        "ln1": _ln_params(d_model), "ln2": _ln_params(d_model),
        "ln3": _ln_params(d_model),
    }


# -----------------------------------------------------------------------------
# Pure-JAX reference (mirrors the PyTorch forward, mask=None / dropout=identity)
# -----------------------------------------------------------------------------
def _reference_mha(xq, xkv, p, n_heads):
    B, Sq, D = xq.shape
    Sk = xkv.shape[1]
    dk = D // n_heads
    q = (xq @ p["_wq"] + p["_bq"]).reshape(B, Sq, n_heads, dk).transpose(0, 2, 1, 3)
    k = (xkv @ p["_wk"] + p["_bk"]).reshape(B, Sk, n_heads, dk).transpose(0, 2, 1, 3)
    v = (xkv @ p["_wv"] + p["_bv"]).reshape(B, Sk, n_heads, dk).transpose(0, 2, 1, 3)
    s = jnp.einsum("bhqd,bhkd->bhqk", q, k) / math.sqrt(dk)
    a = jax.nn.softmax(s, axis=-1)
    ctx = jnp.einsum("bhqk,bhkd->bhqd", a, v).transpose(0, 2, 1, 3).reshape(B, Sq, D)
    return ctx @ p["wo"] + p["bo"]


def _reference_ln(y, lnp, eps=1e-5):
    mean = jnp.mean(y, axis=-1, keepdims=True)
    var = jnp.mean((y - mean) ** 2, axis=-1, keepdims=True)
    return (y - mean) / jnp.sqrt(var + eps) * lnp["g"] + lnp["b"]


def reference_forward(params, x, enc, *, n_heads, eps=1e-5):
    x = _reference_ln(x + _reference_mha(x, x, params["self_attn"], n_heads),
                      params["ln1"], eps)
    x = _reference_ln(x + _reference_mha(x, enc, params["cross_attn"], n_heads),
                      params["ln2"], eps)
    h = jnp.maximum(x @ params["ffn"]["w1"] + params["ffn"]["b1"], 0.0)
    f = h @ params["ffn"]["w2"] + params["ffn"]["b2"]
    return _reference_ln(x + f, params["ln3"], eps)


# -----------------------------------------------------------------------------
# main
# -----------------------------------------------------------------------------
if __name__ == "__main__":
    D_MODEL = 32
    N_HEADS = 4
    D_FF = 64
    BATCH = 2
    SEQ = 8

    root = jax.random.PRNGKey(0)
    k_params, k_x, k_enc = jax.random.split(root, 3)

    params = init_params(k_params, d_model=D_MODEL, d_ff=D_FF, n_heads=N_HEADS)
    x = jax.random.normal(k_x, (BATCH, SEQ, D_MODEL), jnp.float32)
    enc_output = jax.random.normal(k_enc, (BATCH, SEQ, D_MODEL), jnp.float32)

    fwd = jax.jit(functools.partial(decoder_layer_forward, n_heads=N_HEADS))
    out = fwd(params, x, enc_output)
    jax.block_until_ready(out)
    assert out.shape == (BATCH, SEQ, D_MODEL)

    ref = reference_forward(params, x, enc_output, n_heads=N_HEADS)
    max_err = float(jnp.max(jnp.abs(out - ref)))
    assert max_err < 1e-3, f"max abs error {max_err}"
    print("KERNEL_OK")
</pallas_src>

<mosaic_0001>
module attributes {stable_mosaic.version = 11 : i64} {
  func.func @_decoder_layer_kernel(%arg0: i32, %arg1: memref<8x32xf32, #tpu.memory_space<vmem>>, %arg2: memref<8x32xf32, #tpu.memory_space<vmem>>, %arg3: memref<12x32x8xf32, #tpu.memory_space<vmem>>, %arg4: memref<12x1x8xf32, #tpu.memory_space<vmem>>, %arg5: memref<32x32xf32, #tpu.memory_space<vmem>>, %arg6: memref<1x32xf32, #tpu.memory_space<vmem>>, %arg7: memref<1x32xf32, #tpu.memory_space<vmem>>, %arg8: memref<1x32xf32, #tpu.memory_space<vmem>>, %arg9: memref<12x32x8xf32, #tpu.memory_space<vmem>>, %arg10: memref<12x1x8xf32, #tpu.memory_space<vmem>>, %arg11: memref<32x32xf32, #tpu.memory_space<vmem>>, %arg12: memref<1x32xf32, #tpu.memory_space<vmem>>, %arg13: memref<1x32xf32, #tpu.memory_space<vmem>>, %arg14: memref<1x32xf32, #tpu.memory_space<vmem>>, %arg15: memref<32x64xf32, #tpu.memory_space<vmem>>, %arg16: memref<1x64xf32, #tpu.memory_space<vmem>>, %arg17: memref<64x32xf32, #tpu.memory_space<vmem>>, %arg18: memref<1x32xf32, #tpu.memory_space<vmem>>, %arg19: memref<1x32xf32, #tpu.memory_space<vmem>>, %arg20: memref<1x32xf32, #tpu.memory_space<vmem>>, %arg21: memref<8x32xf32, #tpu.memory_space<vmem>>) attributes {dimension_semantics = [#tpu.dimension_semantics<parallel>], iteration_bounds = array<i64: 2>, scalar_prefetch = 0 : i64, scratch_operands = 0 : i64, tpu.core_type = #tpu.core_type<tc>, window_params = [{transform_indices = @transform_0, window_bounds = array<i64: 8, 32>}, {transform_indices = @transform_1, window_bounds = array<i64: 8, 32>}, {pipeline_mode = #tpu.pipeline_mode<synchronous>, transform_indices = @transform_2, window_bounds = array<i64: 12, 32, 8>}, {pipeline_mode = #tpu.pipeline_mode<synchronous>, transform_indices = @transform_3, window_bounds = array<i64: 12, 1, 8>}, {pipeline_mode = #tpu.pipeline_mode<synchronous>, transform_indices = @transform_4, window_bounds = array<i64: 32, 32>}, {pipeline_mode = #tpu.pipeline_mode<synchronous>, transform_indices = @transform_5, window_bounds = array<i64: 1, 32>}, {pipeline_mode = #tpu.pipeline_mode<synchronous>, transform_indices = @transform_6, window_bounds = array<i64: 1, 32>}, {pipeline_mode = #tpu.pipeline_mode<synchronous>, transform_indices = @transform_7, window_bounds = array<i64: 1, 32>}, {pipeline_mode = #tpu.pipeline_mode<synchronous>, transform_indices = @transform_8, window_bounds = array<i64: 12, 32, 8>}, {pipeline_mode = #tpu.pipeline_mode<synchronous>, transform_indices = @transform_9, window_bounds = array<i64: 12, 1, 8>}, {pipeline_mode = #tpu.pipeline_mode<synchronous>, transform_indices = @transform_10, window_bounds = array<i64: 32, 32>}, {pipeline_mode = #tpu.pipeline_mode<synchronous>, transform_indices = @transform_11, window_bounds = array<i64: 1, 32>}, {pipeline_mode = #tpu.pipeline_mode<synchronous>, transform_indices = @transform_12, window_bounds = array<i64: 1, 32>}, {pipeline_mode = #tpu.pipeline_mode<synchronous>, transform_indices = @transform_13, window_bounds = array<i64: 1, 32>}, {pipeline_mode = #tpu.pipeline_mode<synchronous>, transform_indices = @transform_14, window_bounds = array<i64: 32, 64>}, {pipeline_mode = #tpu.pipeline_mode<synchronous>, transform_indices = @transform_15, window_bounds = array<i64: 1, 64>}, {pipeline_mode = #tpu.pipeline_mode<synchronous>, transform_indices = @transform_16, window_bounds = array<i64: 64, 32>}, {pipeline_mode = #tpu.pipeline_mode<synchronous>, transform_indices = @transform_17, window_bounds = array<i64: 1, 32>}, {pipeline_mode = #tpu.pipeline_mode<synchronous>, transform_indices = @transform_18, window_bounds = array<i64: 1, 32>}, {pipeline_mode = #tpu.pipeline_mode<synchronous>, transform_indices = @transform_19, window_bounds = array<i64: 1, 32>}, {transform_indices = @transform_20, window_bounds = array<i64: 8, 32>}]} {
    %c0 = arith.constant 0 : index
    %c0_0 = arith.constant 0 : index
    %0 = vector.load %arg1[%c0, %c0_0] : memref<8x32xf32, #tpu.memory_space<vmem>>, vector<8x32xf32>
    %c0_1 = arith.constant 0 : index
    %c0_2 = arith.constant 0 : index
    %1 = vector.load %arg2[%c0_1, %c0_2] : memref<8x32xf32, #tpu.memory_space<vmem>>, vector<8x32xf32>
    %c0_3 = arith.constant 0 : index
    %c0_4 = arith.constant 0 : index
    %c0_5 = arith.constant 0 : index
    %2 = vector.load %arg3[%c0_3, %c0_4, %c0_5] : memref<12x32x8xf32, #tpu.memory_space<vmem>>, vector<1x32x8xf32>
    %3 = vector.shape_cast %2 : vector<1x32x8xf32> to vector<32x8xf32>
    %cst = arith.constant dense<0.000000e+00> : vector<8x8xf32>
    %4 = tpu.matmul %0, %3, %cst {dimension_numbers = #tpu.dot_dimension_numbers<[1], [0], [0], [1], [0, 0, 1, 1], [], []>} : vector<8x32xf32>, vector<32x8xf32>, vector<8x8xf32> -> vector<8x8xf32>
    %c0_6 = arith.constant 0 : index
    %c0_7 = arith.constant 0 : index
    %c0_8 = arith.constant 0 : index
    %5 = vector.load %arg4[%c0_6, %c0_7, %c0_8] : memref<12x1x8xf32, #tpu.memory_space<vmem>>, vector<1x1x8xf32>
    %6 = vector.shape_cast %5 : vector<1x1x8xf32> to vector<1x8xf32>
    %7 = vector.broadcast %6 : vector<1x8xf32> to vector<8x8xf32>
    %8 = arith.addf %4, %7 : vector<8x8xf32>
    %c4 = arith.constant 4 : index
    %c0_9 = arith.constant 0 : index
    %c0_10 = arith.constant 0 : index
    %9 = vector.load %arg3[%c4, %c0_9, %c0_10] : memref<12x32x8xf32, #tpu.memory_space<vmem>>, vector<1x32x8xf32>
    %10 = vector.shape_cast %9 : vector<1x32x8xf32> to vector<32x8xf32>
    %cst_11 = arith.constant dense<0.000000e+00> : vector<8x8xf32>
    %11 = tpu.matmul %0, %10, %cst_11 {dimension_numbers = #tpu.dot_dimension_numbers<[1], [0], [0], [1], [0, 0, 1, 1], [], []>} : vector<8x32xf32>, vector<32x8xf32>, vector<8x8xf32> -> vector<8x8xf32>
    %c4_12 = arith.constant 4 : index
    %c0_13 = arith.constant 0 : index
    %c0_14 = arith.constant 0 : index
    %12 = vector.load %arg4[%c4_12, %c0_13, %c0_14] : memref<12x1x8xf32, #tpu.memory_space<vmem>>, vector<1x1x8xf32>
    %13 = vector.shape_cast %12 : vector<1x1x8xf32> to vector<1x8xf32>
    %14 = vector.broadcast %13 : vector<1x8xf32> to vector<8x8xf32>
    %15 = arith.addf %11, %14 : vector<8x8xf32>
    %c8 = arith.constant 8 : index
    %c0_15 = arith.constant 0 : index
    %c0_16 = arith.constant 0 : index
    %16 = vector.load %arg3[%c8, %c0_15, %c0_16] : memref<12x32x8xf32, #tpu.memory_space<vmem>>, vector<1x32x8xf32>
    %17 = vector.shape_cast %16 : vector<1x32x8xf32> to vector<32x8xf32>
    %cst_17 = arith.constant dense<0.000000e+00> : vector<8x8xf32>
    %18 = tpu.matmul %0, %17, %cst_17 {dimension_numbers = #tpu.dot_dimension_numbers<[1], [0], [0], [1], [0, 0, 1, 1], [], []>} : vector<8x32xf32>, vector<32x8xf32>, vector<8x8xf32> -> vector<8x8xf32>
    %c8_18 = arith.constant 8 : index
    %c0_19 = arith.constant 0 : index
    %c0_20 = arith.constant 0 : index
    %19 = vector.load %arg4[%c8_18, %c0_19, %c0_20] : memref<12x1x8xf32, #tpu.memory_space<vmem>>, vector<1x1x8xf32>
    %20 = vector.shape_cast %19 : vector<1x1x8xf32> to vector<1x8xf32>
    %21 = vector.broadcast %20 : vector<1x8xf32> to vector<8x8xf32>
    %22 = arith.addf %18, %21 : vector<8x8xf32>
    %cst_21 = arith.constant 0.353553385 : f32
    %23 = vector.broadcast %cst_21 : f32 to vector<8x8xf32>
    %24 = arith.mulf %8, %23 : vector<8x8xf32>
    %cst_22 = arith.constant dense<0.000000e+00> : vector<8x8xf32>
    %25 = tpu.matmul %24, %15, %cst_22 {dimension_numbers = #tpu.dot_dimension_numbers<[1], [1], [0], [0], [0, 0, 1, 0], [], []>} : vector<8x8xf32>, vector<8x8xf32>, vector<8x8xf32> -> vector<8x8xf32>
    %cst_23 = arith.constant dense<0xFF800000> : vector<8xf32>
    %26 = vector.multi_reduction <maximumf>, %25, %cst_23 [1] : vector<8x8xf32> to vector<8xf32>
    %27 = vector.shape_cast %26 : vector<8xf32> to vector<8x1xf32>
    %28 = vector.broadcast %27 : vector<8x1xf32> to vector<8x8xf32>
    %29 = arith.subf %25, %28 : vector<8x8xf32>
    %30 = math.exp %29 : vector<8x8xf32>
    %cst_24 = arith.constant dense<0.000000e+00> : vector<8xf32>
    %31 = vector.multi_reduction <add>, %30, %cst_24 [1] : vector<8x8xf32> to vector<8xf32>
    %32 = vector.shape_cast %31 : vector<8xf32> to vector<8x1xf32>
    %33 = vector.broadcast %32 : vector<8x1xf32> to vector<8x8xf32>
    %34 = arith.divf %30, %33 : vector<8x8xf32>
    %cst_25 = arith.constant dense<0.000000e+00> : vector<8x8xf32>
    %35 = tpu.matmul %34, %22, %cst_25 {dimension_numbers = #tpu.dot_dimension_numbers<[1], [0], [0], [1], [0, 0, 1, 1], [], []>} : vector<8x8xf32>, vector<8x8xf32>, vector<8x8xf32> -> vector<8x8xf32>
    %c1 = arith.constant 1 : index
    %c0_26 = arith.constant 0 : index
    %c0_27 = arith.constant 0 : index
    %36 = vector.load %arg3[%c1, %c0_26, %c0_27] : memref<12x32x8xf32, #tpu.memory_space<vmem>>, vector<1x32x8xf32>
    %37 = vector.shape_cast %36 : vector<1x32x8xf32> to vector<32x8xf32>
    %cst_28 = arith.constant dense<0.000000e+00> : vector<8x8xf32>
    %38 = tpu.matmul %0, %37, %cst_28 {dimension_numbers = #tpu.dot_dimension_numbers<[1], [0], [0], [1], [0, 0, 1, 1], [], []>} : vector<8x32xf32>, vector<32x8xf32>, vector<8x8xf32> -> vector<8x8xf32>
    %c1_29 = arith.constant 1 : index
    %c0_30 = arith.constant 0 : index
    %c0_31 = arith.constant 0 : index
    %39 = vector.load %arg4[%c1_29, %c0_30, %c0_31] : memref<12x1x8xf32, #tpu.memory_space<vmem>>, vector<1x1x8xf32>
    %40 = vector.shape_cast %39 : vector<1x1x8xf32> to vector<1x8xf32>
    %41 = vector.broadcast %40 : vector<1x8xf32> to vector<8x8xf32>
    %42 = arith.addf %38, %41 : vector<8x8xf32>
    %c5 = arith.constant 5 : index
    %c0_32 = arith.constant 0 : index
    %c0_33 = arith.constant 0 : index
    %43 = vector.load %arg3[%c5, %c0_32, %c0_33] : memref<12x32x8xf32, #tpu.memory_space<vmem>>, vector<1x32x8xf32>
    %44 = vector.shape_cast %43 : vector<1x32x8xf32> to vector<32x8xf32>
    %cst_34 = arith.constant dense<0.000000e+00> : vector<8x8xf32>
    %45 = tpu.matmul %0, %44, %cst_34 {dimension_numbers = #tpu.dot_dimension_numbers<[1], [0], [0], [1], [0, 0, 1, 1], [], []>} : vector<8x32xf32>, vector<32x8xf32>, vector<8x8xf32> -> vector<8x8xf32>
    %c5_35 = arith.constant 5 : index
    %c0_36 = arith.constant 0 : index
    %c0_37 = arith.constant 0 : index
    %46 = vector.load %arg4[%c5_35, %c0_36, %c0_37] : memref<12x1x8xf32, #tpu.memory_space<vmem>>, vector<1x1x8xf32>
    %47 = vector.shape_cast %46 : vector<1x1x8xf32> to vector<1x8xf32>
    %48 = vector.broadcast %47 : vector<1x8xf32> to vector<8x8xf32>
    %49 = arith.addf %45, %48 : vector<8x8xf32>
    %c9 = arith.constant 9 : index
    %c0_38 = arith.constant 0 : index
    %c0_39 = arith.constant 0 : index
    %50 = vector.load %arg3[%c9, %c0_38, %c0_39] : memref<12x32x8xf32, #tpu.memory_space<vmem>>, vector<1x32x8xf32>
    %51 = vector.shape_cast %50 : vector<1x32x8xf32> to vector<32x8xf32>
    %cst_40 = arith.constant dense<0.000000e+00> : vector<8x8xf32>
    %52 = tpu.matmul %0, %51, %cst_40 {dimension_numbers = #tpu.dot_dimension_numbers<[1], [0], [0], [1], [0, 0, 1, 1], [], []>} : vector<8x32xf32>, vector<32x8xf32>, vector<8x8xf32> -> vector<8x8xf32>
    %c9_41 = arith.constant 9 : index
    %c0_42 = arith.constant 0 : index
    %c0_43 = arith.constant 0 : index
    %53 = vector.load %arg4[%c9_41, %c0_42, %c0_43] : memref<12x1x8xf32, #tpu.memory_space<vmem>>, vector<1x1x8xf32>
    %54 = vector.shape_cast %53 : vector<1x1x8xf32> to vector<1x8xf32>
    %55 = vector.broadcast %54 : vector<1x8xf32> to vector<8x8xf32>
    %56 = arith.addf %52, %55 : vector<8x8xf32>
    %cst_44 = arith.constant 0.353553385 : f32
    %57 = vector.broadcast %cst_44 : f32 to vector<8x8xf32>
    %58 = arith.mulf %42, %57 : vector<8x8xf32>
    %cst_45 = arith.constant dense<0.000000e+00> : vector<8x8xf32>
    %59 = tpu.matmul %58, %49, %cst_45 {dimension_numbers = #tpu.dot_dimension_numbers<[1], [1], [0], [0], [0, 0, 1, 0], [], []>} : vector<8x8xf32>, vector<8x8xf32>, vector<8x8xf32> -> vector<8x8xf32>
    %cst_46 = arith.constant dense<0xFF800000> : vector<8xf32>
    %60 = vector.multi_reduction <maximumf>, %59, %cst_46 [1] : vector<8x8xf32> to vector<8xf32>
    %61 = vector.shape_cast %60 : vector<8xf32> to vector<8x1xf32>
    %62 = vector.broadcast %61 : vector<8x1xf32> to vector<8x8xf32>
    %63 = arith.subf %59, %62 : vector<8x8xf32>
    %64 = math.exp %63 : vector<8x8xf32>
    %cst_47 = arith.constant dense<0.000000e+00> : vector<8xf32>
    %65 = vector.multi_reduction <add>, %64, %cst_47 [1] : vector<8x8xf32> to vector<8xf32>
    %66 = vector.shape_cast %65 : vector<8xf32> to vector<8x1xf32>
    %67 = vector.broadcast %66 : vector<8x1xf32> to vector<8x8xf32>
    %68 = arith.divf %64, %67 : vector<8x8xf32>
    %cst_48 = arith.constant dense<0.000000e+00> : vector<8x8xf32>
    %69 = tpu.matmul %68, %56, %cst_48 {dimension_numbers = #tpu.dot_dimension_numbers<[1], [0], [0], [1], [0, 0, 1, 1], [], []>} : vector<8x8xf32>, vector<8x8xf32>, vector<8x8xf32> -> vector<8x8xf32>
    %c2 = arith.constant 2 : index
    %c0_49 = arith.constant 0 : index
    %c0_50 = arith.constant 0 : index
    %70 = vector.load %arg3[%c2, %c0_49, %c0_50] : memref<12x32x8xf32, #tpu.memory_space<vmem>>, vector<1x32x8xf32>
    %71 = vector.shape_cast %70 : vector<1x32x8xf32> to vector<32x8xf32>
    %cst_51 = arith.constant dense<0.000000e+00> : vector<8x8xf32>
    %72 = tpu.matmul %0, %71, %cst_51 {dimension_numbers = #tpu.dot_dimension_numbers<[1], [0], [0], [1], [0, 0, 1, 1], [], []>} : vector<8x32xf32>, vector<32x8xf32>, vector<8x8xf32> -> vector<8x8xf32>
    %c2_52 = arith.constant 2 : index
    %c0_53 = arith.constant 0 : index
    %c0_54 = arith.constant 0 : index
    %73 = vector.load %arg4[%c2_52, %c0_53, %c0_54] : memref<12x1x8xf32, #tpu.memory_space<vmem>>, vector<1x1x8xf32>
    %74 = vector.shape_cast %73 : vector<1x1x8xf32> to vector<1x8xf32>
    %75 = vector.broadcast %74 : vector<1x8xf32> to vector<8x8xf32>
    %76 = arith.addf %72, %75 : vector<8x8xf32>
    %c6 = arith.constant 6 : index
    %c0_55 = arith.constant 0 : index
    %c0_56 = arith.constant 0 : index
    %77 = vector.load %arg3[%c6, %c0_55, %c0_56] : memref<12x32x8xf32, #tpu.memory_space<vmem>>, vector<1x32x8xf32>
    %78 = vector.shape_cast %77 : vector<1x32x8xf32> to vector<32x8xf32>
    %cst_57 = arith.constant dense<0.000000e+00> : vector<8x8xf32>
    %79 = tpu.matmul %0, %78, %cst_57 {dimension_numbers = #tpu.dot_dimension_numbers<[1], [0], [0], [1], [0, 0, 1, 1], [], []>} : vector<8x32xf32>, vector<32x8xf32>, vector<8x8xf32> -> vector<8x8xf32>
    %c6_58 = arith.constant 6 : index
    %c0_59 = arith.constant 0 : index
    %c0_60 = arith.constant 0 : index
    %80 = vector.load %arg4[%c6_58, %c0_59, %c0_60] : memref<12x1x8xf32, #tpu.memory_space<vmem>>, vector<1x1x8xf32>
    %81 = vector.shape_cast %80 : vector<1x1x8xf32> to vector<1x8xf32>
    %82 = vector.broadcast %81 : vector<1x8xf32> to vector<8x8xf32>
    %83 = arith.addf %79, %82 : vector<8x8xf32>
    %c10 = arith.constant 10 : index
    %c0_61 = arith.constant 0 : index
    %c0_62 = arith.constant 0 : index
    %84 = vector.load %arg3[%c10, %c0_61, %c0_62] : memref<12x32x8xf32, #tpu.memory_space<vmem>>, vector<1x32x8xf32>
    %85 = vector.shape_cast %84 : vector<1x32x8xf32> to vector<32x8xf32>
    %cst_63 = arith.constant dense<0.000000e+00> : vector<8x8xf32>
    %86 = tpu.matmul %0, %85, %cst_63 {dimension_numbers = #tpu.dot_dimension_numbers<[1], [0], [0], [1], [0, 0, 1, 1], [], []>} : vector<8x32xf32>, vector<32x8xf32>, vector<8x8xf32> -> vector<8x8xf32>
    %c10_64 = arith.constant 10 : index
    %c0_65 = arith.constant 0 : index
    %c0_66 = arith.constant 0 : index
    %87 = vector.load %arg4[%c10_64, %c0_65, %c0_66] : memref<12x1x8xf32, #tpu.memory_space<vmem>>, vector<1x1x8xf32>
    %88 = vector.shape_cast %87 : vector<1x1x8xf32> to vector<1x8xf32>
    %89 = vector.broadcast %88 : vector<1x8xf32> to vector<8x8xf32>
    %90 = arith.addf %86, %89 : vector<8x8xf32>
    %cst_67 = arith.constant 0.353553385 : f32
    %91 = vector.broadcast %cst_67 : f32 to vector<8x8xf32>
    %92 = arith.mulf %76, %91 : vector<8x8xf32>
    %cst_68 = arith.constant dense<0.000000e+00> : vector<8x8xf32>
    %93 = tpu.matmul %92, %83, %cst_68 {dimension_numbers = #tpu.dot_dimension_numbers<[1], [1], [0], [0], [0, 0, 1, 0], [], []>} : vector<8x8xf32>, vector<8x8xf32>, vector<8x8xf32> -> vector<8x8xf32>
    %cst_69 = arith.constant dense<0xFF800000> : vector<8xf32>
    %94 = vector.multi_reduction <maximumf>, %93, %cst_69 [1] : vector<8x8xf32> to vector<8xf32>
    %95 = vector.shape_cast %94 : vector<8xf32> to vector<8x1xf32>
    %96 = vector.broadcast %95 : vector<8x1xf32> to vector<8x8xf32>
    %97 = arith.subf %93, %96 : vector<8x8xf32>
    %98 = math.exp %97 : vector<8x8xf32>
    %cst_70 = arith.constant dense<0.000000e+00> : vector<8xf32>
    %99 = vector.multi_reduction <add>, %98, %cst_70 [1] : vector<8x8xf32> to vector<8xf32>
    %100 = vector.shape_cast %99 : vector<8xf32> to vector<8x1xf32>
    %101 = vector.broadcast %100 : vector<8x1xf32> to vector<8x8xf32>
    %102 = arith.divf %98, %101 : vector<8x8xf32>
    %cst_71 = arith.constant dense<0.000000e+00> : vector<8x8xf32>
    %103 = tpu.matmul %102, %90, %cst_71 {dimension_numbers = #tpu.dot_dimension_numbers<[1], [0], [0], [1], [0, 0, 1, 1], [], []>} : vector<8x8xf32>, vector<8x8xf32>, vector<8x8xf32> -> vector<8x8xf32>
    %c3 = arith.constant 3 : index
    %c0_72 = arith.constant 0 : index
    %c0_73 = arith.constant 0 : index
    %104 = vector.load %arg3[%c3, %c0_72, %c0_73] : memref<12x32x8xf32, #tpu.memory_space<vmem>>, vector<1x32x8xf32>
    %105 = vector.shape_cast %104 : vector<1x32x8xf32> to vector<32x8xf32>
    %cst_74 = arith.constant dense<0.000000e+00> : vector<8x8xf32>
    %106 = tpu.matmul %0, %105, %cst_74 {dimension_numbers = #tpu.dot_dimension_numbers<[1], [0], [0], [1], [0, 0, 1, 1], [], []>} : vector<8x32xf32>, vector<32x8xf32>, vector<8x8xf32> -> vector<8x8xf32>
    %c3_75 = arith.constant 3 : index
    %c0_76 = arith.constant 0 : index
    %c0_77 = arith.constant 0 : index
    %107 = vector.load %arg4[%c3_75, %c0_76, %c0_77] : memref<12x1x8xf32, #tpu.memory_space<vmem>>, vector<1x1x8xf32>
    %108 = vector.shape_cast %107 : vector<1x1x8xf32> to vector<1x8xf32>
    %109 = vector.broadcast %108 : vector<1x8xf32> to vector<8x8xf32>
    %110 = arith.addf %106, %109 : vector<8x8xf32>
    %c7 = arith.constant 7 : index
    %c0_78 = arith.constant 0 : index
    %c0_79 = arith.constant 0 : index
    %111 = vector.load %arg3[%c7, %c0_78, %c0_79] : memref<12x32x8xf32, #tpu.memory_space<vmem>>, vector<1x32x8xf32>
    %112 = vector.shape_cast %111 : vector<1x32x8xf32> to vector<32x8xf32>
    %cst_80 = arith.constant dense<0.000000e+00> : vector<8x8xf32>
    %113 = tpu.matmul %0, %112, %cst_80 {dimension_numbers = #tpu.dot_dimension_numbers<[1], [0], [0], [1], [0, 0, 1, 1], [], []>} : vector<8x32xf32>, vector<32x8xf32>, vector<8x8xf32> -> vector<8x8xf32>
    %c7_81 = arith.constant 7 : index
    %c0_82 = arith.constant 0 : index
    %c0_83 = arith.constant 0 : index
    %114 = vector.load %arg4[%c7_81, %c0_82, %c0_83] : memref<12x1x8xf32, #tpu.memory_space<vmem>>, vector<1x1x8xf32>
    %115 = vector.shape_cast %114 : vector<1x1x8xf32> to vector<1x8xf32>
    %116 = vector.broadcast %115 : vector<1x8xf32> to vector<8x8xf32>
    %117 = arith.addf %113, %116 : vector<8x8xf32>
    %c11 = arith.constant 11 : index
    %c0_84 = arith.constant 0 : index
    %c0_85 = arith.constant 0 : index
    %118 = vector.load %arg3[%c11, %c0_84, %c0_85] : memref<12x32x8xf32, #tpu.memory_space<vmem>>, vector<1x32x8xf32>
    %119 = vector.shape_cast %118 : vector<1x32x8xf32> to vector<32x8xf32>
    %cst_86 = arith.constant dense<0.000000e+00> : vector<8x8xf32>
    %120 = tpu.matmul %0, %119, %cst_86 {dimension_numbers = #tpu.dot_dimension_numbers<[1], [0], [0], [1], [0, 0, 1, 1], [], []>} : vector<8x32xf32>, vector<32x8xf32>, vector<8x8xf32> -> vector<8x8xf32>
    %c11_87 = arith.constant 11 : index
    %c0_88 = arith.constant 0 : index
    %c0_89 = arith.constant 0 : index
    %121 = vector.load %arg4[%c11_87, %c0_88, %c0_89] : memref<12x1x8xf32, #tpu.memory_space<vmem>>, vector<1x1x8xf32>
    %122 = vector.shape_cast %121 : vector<1x1x8xf32> to vector<1x8xf32>
    %123 = vector.broadcast %122 : vector<1x8xf32> to vector<8x8xf32>
    %124 = arith.addf %120, %123 : vector<8x8xf32>
    %cst_90 = arith.constant 0.353553385 : f32
    %125 = vector.broadcast %cst_90 : f32 to vector<8x8xf32>
    %126 = arith.mulf %110, %125 : vector<8x8xf32>
    %cst_91 = arith.constant dense<0.000000e+00> : vector<8x8xf32>
    %127 = tpu.matmul %126, %117, %cst_91 {dimension_numbers = #tpu.dot_dimension_numbers<[1], [1], [0], [0], [0, 0, 1, 0], [], []>} : vector<8x8xf32>, vector<8x8xf32>, vector<8x8xf32> -> vector<8x8xf32>
    %cst_92 = arith.constant dense<0xFF800000> : vector<8xf32>
    %128 = vector.multi_reduction <maximumf>, %127, %cst_92 [1] : vector<8x8xf32> to vector<8xf32>
    %129 = vector.shape_cast %128 : vector<8xf32> to vector<8x1xf32>
    %130 = vector.broadcast %129 : vector<8x1xf32> to vector<8x8xf32>
    %131 = arith.subf %127, %130 : vector<8x8xf32>
    %132 = math.exp %131 : vector<8x8xf32>
    %cst_93 = arith.constant dense<0.000000e+00> : vector<8xf32>
    %133 = vector.multi_reduction <add>, %132, %cst_93 [1] : vector<8x8xf32> to vector<8xf32>
    %134 = vector.shape_cast %133 : vector<8xf32> to vector<8x1xf32>
    %135 = vector.broadcast %134 : vector<8x1xf32> to vector<8x8xf32>
    %136 = arith.divf %132, %135 : vector<8x8xf32>
    %cst_94 = arith.constant dense<0.000000e+00> : vector<8x8xf32>
    %137 = tpu.matmul %136, %124, %cst_94 {dimension_numbers = #tpu.dot_dimension_numbers<[1], [0], [0], [1], [0, 0, 1, 1], [], []>} : vector<8x8xf32>, vector<8x8xf32>, vector<8x8xf32> -> vector<8x8xf32>
    %138 = tpu.concatenate %35, %69, %103, %137 in 1 : vector<8x8xf32>, vector<8x8xf32>, vector<8x8xf32>, vector<8x8xf32> -> vector<8x32xf32>
    %c0_95 = arith.constant 0 : index
    %c0_96 = arith.constant 0 : index
    %139 = vector.load %arg5[%c0_95, %c0_96] : memref<32x32xf32, #tpu.memory_space<vmem>>, vector<32x32xf32>
    %cst_97 = arith.constant dense<0.000000e+00> : vector<8x32xf32>
    %140 = tpu.matmul %138, %139, %cst_97 {dimension_numbers = #tpu.dot_dimension_numbers<[1], [0], [0], [1], [0, 0, 1, 1], [], []>} : vector<8x32xf32>, vector<32x32xf32>, vector<8x32xf32> -> vector<8x32xf32>
    %c0_98 = arith.constant 0 : index
    %c0_99 = arith.constant 0 : index
    %141 = vector.load %arg6[%c0_98, %c0_99] : memref<1x32xf32, #tpu.memory_space<vmem>>, vector<1x32xf32>
    %142 = vector.broadcast %141 : vector<1x32xf32> to vector<8x32xf32>
    %143 = arith.addf %140, %142 : vector<8x32xf32>
    %144 = arith.addf %0, %143 : vector<8x32xf32>
    %c0_100 = arith.constant 0 : index
    %c0_101 = arith.constant 0 : index
    %145 = vector.load %arg7[%c0_100, %c0_101] : memref<1x32xf32, #tpu.memory_space<vmem>>, vector<1x32xf32>
    %c0_102 = arith.constant 0 : index
    %c0_103 = arith.constant 0 : index
    %146 = vector.load %arg8[%c0_102, %c0_103] : memref<1x32xf32, #tpu.memory_space<vmem>>, vector<1x32xf32>
    %cst_104 = arith.constant dense<0.000000e+00> : vector<8xf32>
    %147 = vector.multi_reduction <add>, %144, %cst_104 [1] : vector<8x32xf32> to vector<8xf32>
    %148 = vector.shape_cast %147 : vector<8xf32> to vector<8x1xf32>
    %cst_105 = arith.constant 3.200000e+01 : f32
    %149 = vector.broadcast %cst_105 : f32 to vector<8x1xf32>
    %150 = arith.divf %148, %149 : vector<8x1xf32>
    %151 = arith.mulf %144, %144 : vector<8x32xf32>
    %cst_106 = arith.constant dense<0.000000e+00> : vector<8xf32>
    %152 = vector.multi_reduction <add>, %151, %cst_106 [1] : vector<8x32xf32> to vector<8xf32>
    %153 = vector.shape_cast %152 : vector<8xf32> to vector<8x1xf32>
    %cst_107 = arith.constant 3.200000e+01 : f32
    %154 = vector.broadcast %cst_107 : f32 to vector<8x1xf32>
    %155 = arith.divf %153, %154 : vector<8x1xf32>
    %156 = arith.mulf %150, %150 : vector<8x1xf32>
    %157 = arith.subf %155, %156 : vector<8x1xf32>
    %158 = vector.broadcast %150 : vector<8x1xf32> to vector<8x32xf32>
    %159 = arith.subf %144, %158 : vector<8x32xf32>
    %cst_108 = arith.constant 9.99999974E-6 : f32
    %160 = vector.broadcast %cst_108 : f32 to vector<8x1xf32>
    %161 = arith.addf %157, %160 : vector<8x1xf32>
    %162 = math.rsqrt %161 : vector<8x1xf32>
    %163 = vector.broadcast %162 : vector<8x1xf32> to vector<8x32xf32>
    %164 = arith.mulf %159, %163 : vector<8x32xf32>
    %165 = vector.broadcast %145 : vector<1x32xf32> to vector<8x32xf32>
    %166 = arith.mulf %164, %165 : vector<8x32xf32>
    %167 = vector.broadcast %146 : vector<1x32xf32> to vector<8x32xf32>
    %168 = arith.addf %166, %167 : vector<8x32xf32>
    %c0_109 = arith.constant 0 : index
    %c0_110 = arith.constant 0 : index
    %c0_111 = arith.constant 0 : index
    %169 = vector.load %arg9[%c0_109, %c0_110, %c0_111] : memref<12x32x8xf32, #tpu.memory_space<vmem>>, vector<1x32x8xf32>
    %170 = vector.shape_cast %169 : vector<1x32x8xf32> to vector<32x8xf32>
    %cst_112 = arith.constant dense<0.000000e+00> : vector<8x8xf32>
    %171 = tpu.matmul %168, %170, %cst_112 {dimension_numbers = #tpu.dot_dimension_numbers<[1], [0], [0], [1], [0, 0, 1, 1], [], []>} : vector<8x32xf32>, vector<32x8xf32>, vector<8x8xf32> -> vector<8x8xf32>
    %c0_113 = arith.constant 0 : index
    %c0_114 = arith.constant 0 : index
    %c0_115 = arith.constant 0 : index
    %172 = vector.load %arg10[%c0_113, %c0_114, %c0_115] : memref<12x1x8xf32, #tpu.memory_space<vmem>>, vector<1x1x8xf32>
    %173 = vector.shape_cast %172 : vector<1x1x8xf32> to vector<1x8xf32>
    %174 = vector.broadcast %173 : vector<1x8xf32> to vector<8x8xf32>
    %175 = arith.addf %171, %174 : vector<8x8xf32>
    %c4_116 = arith.constant 4 : index
    %c0_117 = arith.constant 0 : index
    %c0_118 = arith.constant 0 : index
    %176 = vector.load %arg9[%c4_116, %c0_117, %c0_118] : memref<12x32x8xf32, #tpu.memory_space<vmem>>, vector<1x32x8xf32>
    %177 = vector.shape_cast %176 : vector<1x32x8xf32> to vector<32x8xf32>
    %cst_119 = arith.constant dense<0.000000e+00> : vector<8x8xf32>
    %178 = tpu.matmul %1, %177, %cst_119 {dimension_numbers = #tpu.dot_dimension_numbers<[1], [0], [0], [1], [0, 0, 1, 1], [], []>} : vector<8x32xf32>, vector<32x8xf32>, vector<8x8xf32> -> vector<8x8xf32>
    %c4_120 = arith.constant 4 : index
    %c0_121 = arith.constant 0 : index
    %c0_122 = arith.constant 0 : index
    %179 = vector.load %arg10[%c4_120, %c0_121, %c0_122] : memref<12x1x8xf32, #tpu.memory_space<vmem>>, vector<1x1x8xf32>
    %180 = vector.shape_cast %179 : vector<1x1x8xf32> to vector<1x8xf32>
    %181 = vector.broadcast %180 : vector<1x8xf32> to vector<8x8xf32>
    %182 = arith.addf %178, %181 : vector<8x8xf32>
    %c8_123 = arith.constant 8 : index
    %c0_124 = arith.constant 0 : index
    %c0_125 = arith.constant 0 : index
    %183 = vector.load %arg9[%c8_123, %c0_124, %c0_125] : memref<12x32x8xf32, #tpu.memory_space<vmem>>, vector<1x32x8xf32>
    %184 = vector.shape_cast %183 : vector<1x32x8xf32> to vector<32x8xf32>
    %cst_126 = arith.constant dense<0.000000e+00> : vector<8x8xf32>
    %185 = tpu.matmul %1, %184, %cst_126 {dimension_numbers = #tpu.dot_dimension_numbers<[1], [0], [0], [1], [0, 0, 1, 1], [], []>} : vector<8x32xf32>, vector<32x8xf32>, vector<8x8xf32> -> vector<8x8xf32>
    %c8_127 = arith.constant 8 : index
    %c0_128 = arith.constant 0 : index
    %c0_129 = arith.constant 0 : index
    %186 = vector.load %arg10[%c8_127, %c0_128, %c0_129] : memref<12x1x8xf32, #tpu.memory_space<vmem>>, vector<1x1x8xf32>
    %187 = vector.shape_cast %186 : vector<1x1x8xf32> to vector<1x8xf32>
    %188 = vector.broadcast %187 : vector<1x8xf32> to vector<8x8xf32>
    %189 = arith.addf %185, %188 : vector<8x8xf32>
    %cst_130 = arith.constant 0.353553385 : f32
    %190 = vector.broadcast %cst_130 : f32 to vector<8x8xf32>
    %191 = arith.mulf %175, %190 : vector<8x8xf32>
    %cst_131 = arith.constant dense<0.000000e+00> : vector<8x8xf32>
    %192 = tpu.matmul %191, %182, %cst_131 {dimension_numbers = #tpu.dot_dimension_numbers<[1], [1], [0], [0], [0, 0, 1, 0], [], []>} : vector<8x8xf32>, vector<8x8xf32>, vector<8x8xf32> -> vector<8x8xf32>
    %cst_132 = arith.constant dense<0xFF800000> : vector<8xf32>
    %193 = vector.multi_reduction <maximumf>, %192, %cst_132 [1] : vector<8x8xf32> to vector<8xf32>
    %194 = vector.shape_cast %193 : vector<8xf32> to vector<8x1xf32>
    %195 = vector.broadcast %194 : vector<8x1xf32> to vector<8x8xf32>
    %196 = arith.subf %192, %195 : vector<8x8xf32>
    %197 = math.exp %196 : vector<8x8xf32>
    %cst_133 = arith.constant dense<0.000000e+00> : vector<8xf32>
    %198 = vector.multi_reduction <add>, %197, %cst_133 [1] : vector<8x8xf32> to vector<8xf32>
    %199 = vector.shape_cast %198 : vector<8xf32> to vector<8x1xf32>
    %200 = vector.broadcast %199 : vector<8x1xf32> to vector<8x8xf32>
    %201 = arith.divf %197, %200 : vector<8x8xf32>
    %cst_134 = arith.constant dense<0.000000e+00> : vector<8x8xf32>
    %202 = tpu.matmul %201, %189, %cst_134 {dimension_numbers = #tpu.dot_dimension_numbers<[1], [0], [0], [1], [0, 0, 1, 1], [], []>} : vector<8x8xf32>, vector<8x8xf32>, vector<8x8xf32> -> vector<8x8xf32>
    %c1_135 = arith.constant 1 : index
    %c0_136 = arith.constant 0 : index
    %c0_137 = arith.constant 0 : index
    %203 = vector.load %arg9[%c1_135, %c0_136, %c0_137] : memref<12x32x8xf32, #tpu.memory_space<vmem>>, vector<1x32x8xf32>
    %204 = vector.shape_cast %203 : vector<1x32x8xf32> to vector<32x8xf32>
    %cst_138 = arith.constant dense<0.000000e+00> : vector<8x8xf32>
    %205 = tpu.matmul %168, %204, %cst_138 {dimension_numbers = #tpu.dot_dimension_numbers<[1], [0], [0], [1], [0, 0, 1, 1], [], []>} : vector<8x32xf32>, vector<32x8xf32>, vector<8x8xf32> -> vector<8x8xf32>
    %c1_139 = arith.constant 1 : index
    %c0_140 = arith.constant 0 : index
    %c0_141 = arith.constant 0 : index
    %206 = vector.load %arg10[%c1_139, %c0_140, %c0_141] : memref<12x1x8xf32, #tpu.memory_space<vmem>>, vector<1x1x8xf32>
    %207 = vector.shape_cast %206 : vector<1x1x8xf32> to vector<1x8xf32>
    %208 = vector.broadcast %207 : vector<1x8xf32> to vector<8x8xf32>
    %209 = arith.addf %205, %208 : vector<8x8xf32>
    %c5_142 = arith.constant 5 : index
    %c0_143 = arith.constant 0 : index
    %c0_144 = arith.constant 0 : index
    %210 = vector.load %arg9[%c5_142, %c0_143, %c0_144] : memref<12x32x8xf32, #tpu.memory_space<vmem>>, vector<1x32x8xf32>
    %211 = vector.shape_cast %210 : vector<1x32x8xf32> to vector<32x8xf32>
    %cst_145 = arith.constant dense<0.000000e+00> : vector<8x8xf32>
    %212 = tpu.matmul %1, %211, %cst_145 {dimension_numbers = #tpu.dot_dimension_numbers<[1], [0], [0], [1], [0, 0, 1, 1], [], []>} : vector<8x32xf32>, vector<32x8xf32>, vector<8x8xf32> -> vector<8x8xf32>
    %c5_146 = arith.constant 5 : index
    %c0_147 = arith.constant 0 : index
    %c0_148 = arith.constant 0 : index
    %213 = vector.load %arg10[%c5_146, %c0_147, %c0_148] : memref<12x1x8xf32, #tpu.memory_space<vmem>>, vector<1x1x8xf32>
    %214 = vector.shape_cast %213 : vector<1x1x8xf32> to vector<1x8xf32>
    %215 = vector.broadcast %214 : vector<1x8xf32> to vector<8x8xf32>
    %216 = arith.addf %212, %215 : vector<8x8xf32>
    %c9_149 = arith.constant 9 : index
    %c0_150 = arith.constant 0 : index
    %c0_151 = arith.constant 0 : index
    %217 = vector.load %arg9[%c9_149, %c0_150, %c0_151] : memref<12x32x8xf32, #tpu.memory_space<vmem>>, vector<1x32x8xf32>
    %218 = vector.shape_cast %217 : vector<1x32x8xf32> to vector<32x8xf32>
    %cst_152 = arith.constant dense<0.000000e+00> : vector<8x8xf32>
    %219 = tpu.matmul %1, %218, %cst_152 {dimension_numbers = #tpu.dot_dimension_numbers<[1], [0], [0], [1], [0, 0, 1, 1], [], []>} : vector<8x32xf32>, vector<32x8xf32>, vector<8x8xf32> -> vector<8x8xf32>
    %c9_153 = arith.constant 9 : index
    %c0_154 = arith.constant 0 : index
    %c0_155 = arith.constant 0 : index
    %220 = vector.load %arg10[%c9_153, %c0_154, %c0_155] : memref<12x1x8xf32, #tpu.memory_space<vmem>>, vector<1x1x8xf32>
    %221 = vector.shape_cast %220 : vector<1x1x8xf32> to vector<1x8xf32>
    %222 = vector.broadcast %221 : vector<1x8xf32> to vector<8x8xf32>
    %223 = arith.addf %219, %222 : vector<8x8xf32>
    %cst_156 = arith.constant 0.353553385 : f32
    %224 = vector.broadcast %cst_156 : f32 to vector<8x8xf32>
    %225 = arith.mulf %209, %224 : vector<8x8xf32>
    %cst_157 = arith.constant dense<0.000000e+00> : vector<8x8xf32>
    %226 = tpu.matmul %225, %216, %cst_157 {dimension_numbers = #tpu.dot_dimension_numbers<[1], [1], [0], [0], [0, 0, 1, 0], [], []>} : vector<8x8xf32>, vector<8x8xf32>, vector<8x8xf32> -> vector<8x8xf32>
    %cst_158 = arith.constant dense<0xFF800000> : vector<8xf32>
    %227 = vector.multi_reduction <maximumf>, %226, %cst_158 [1] : vector<8x8xf32> to vector<8xf32>
    %228 = vector.shape_cast %227 : vector<8xf32> to vector<8x1xf32>
    %229 = vector.broadcast %228 : vector<8x1xf32> to vector<8x8xf32>
    %230 = arith.subf %226, %229 : vector<8x8xf32>
    %231 = math.exp %230 : vector<8x8xf32>
    %cst_159 = arith.constant dense<0.000000e+00> : vector<8xf32>
    %232 = vector.multi_reduction <add>, %231, %cst_159 [1] : vector<8x8xf32> to vector<8xf32>
    %233 = vector.shape_cast %232 : vector<8xf32> to vector<8x1xf32>
    %234 = vector.broadcast %233 : vector<8x1xf32> to vector<8x8xf32>
    %235 = arith.divf %231, %234 : vector<8x8xf32>
    %cst_160 = arith.constant dense<0.000000e+00> : vector<8x8xf32>
    %236 = tpu.matmul %235, %223, %cst_160 {dimension_numbers = #tpu.dot_dimension_numbers<[1], [0], [0], [1], [0, 0, 1, 1], [], []>} : vector<8x8xf32>, vector<8x8xf32>, vector<8x8xf32> -> vector<8x8xf32>
    %c2_161 = arith.constant 2 : index
    %c0_162 = arith.constant 0 : index
    %c0_163 = arith.constant 0 : index
    %237 = vector.load %arg9[%c2_161, %c0_162, %c0_163] : memref<12x32x8xf32, #tpu.memory_space<vmem>>, vector<1x32x8xf32>
    %238 = vector.shape_cast %237 : vector<1x32x8xf32> to vector<32x8xf32>
    %cst_164 = arith.constant dense<0.000000e+00> : vector<8x8xf32>
    %239 = tpu.matmul %168, %238, %cst_164 {dimension_numbers = #tpu.dot_dimension_numbers<[1], [0], [0], [1], [0, 0, 1, 1], [], []>} : vector<8x32xf32>, vector<32x8xf32>, vector<8x8xf32> -> vector<8x8xf32>
    %c2_165 = arith.constant 2 : index
    %c0_166 = arith.constant 0 : index
    %c0_167 = arith.constant 0 : index
    %240 = vector.load %arg10[%c2_165, %c0_166, %c0_167] : memref<12x1x8xf32, #tpu.memory_space<vmem>>, vector<1x1x8xf32>
    %241 = vector.shape_cast %240 : vector<1x1x8xf32> to vector<1x8xf32>
    %242 = vector.broadcast %241 : vector<1x8xf32> to vector<8x8xf32>
    %243 = arith.addf %239, %242 : vector<8x8xf32>
    %c6_168 = arith.constant 6 : index
    %c0_169 = arith.constant 0 : index
    %c0_170 = arith.constant 0 : index
    %244 = vector.load %arg9[%c6_168, %c0_169, %c0_170] : memref<12x32x8xf32, #tpu.memory_space<vmem>>, vector<1x32x8xf32>
    %245 = vector.shape_cast %244 : vector<1x32x8xf32> to vector<32x8xf32>
    %cst_171 = arith.constant dense<0.000000e+00> : vector<8x8xf32>
    %246 = tpu.matmul %1, %245, %cst_171 {dimension_numbers = #tpu.dot_dimension_numbers<[1], [0], [0], [1], [0, 0, 1, 1], [], []>} : vector<8x32xf32>, vector<32x8xf32>, vector<8x8xf32> -> vector<8x8xf32>
    %c6_172 = arith.constant 6 : index
    %c0_173 = arith.constant 0 : index
    %c0_174 = arith.constant 0 : index
    %247 = vector.load %arg10[%c6_172, %c0_173, %c0_174] : memref<12x1x8xf32, #tpu.memory_space<vmem>>, vector<1x1x8xf32>
    %248 = vector.shape_cast %247 : vector<1x1x8xf32> to vector<1x8xf32>
    %249 = vector.broadcast %248 : vector<1x8xf32> to vector<8x8xf32>
    %250 = arith.addf %246, %249 : vector<8x8xf32>
    %c10_175 = arith.constant 10 : index
    %c0_176 = arith.constant 0 : index
    %c0_177 = arith.constant 0 : index
    %251 = vector.load %arg9[%c10_175, %c0_176, %c0_177] : memref<12x32x8xf32, #tpu.memory_space<vmem>>, vector<1x32x8xf32>
    %252 = vector.shape_cast %251 : vector<1x32x8xf32> to vector<32x8xf32>
    %cst_178 = arith.constant dense<0.000000e+00> : vector<8x8xf32>
    %253 = tpu.matmul %1, %252, %cst_178 {dimension_numbers = #tpu.dot_dimension_numbers<[1], [0], [0], [1], [0, 0, 1, 1], [], []>} : vector<8x32xf32>, vector<32x8xf32>, vector<8x8xf32> -> vector<8x8xf32>
    %c10_179 = arith.constant 10 : index
    %c0_180 = arith.constant 0 : index
    %c0_181 = arith.constant 0 : index
    %254 = vector.load %arg10[%c10_179, %c0_180, %c0_181] : memref<12x1x8xf32, #tpu.memory_space<vmem>>, vector<1x1x8xf32>
    %255 = vector.shape_cast %254 : vector<1x1x8xf32> to vector<1x8xf32>
    %256 = vector.broadcast %255 : vector<1x8xf32> to vector<8x8xf32>
    %257 = arith.addf %253, %256 : vector<8x8xf32>
    %cst_182 = arith.constant 0.353553385 : f32
    %258 = vector.broadcast %cst_182 : f32 to vector<8x8xf32>
    %259 = arith.mulf %243, %258 : vector<8x8xf32>
    %cst_183 = arith.constant dense<0.000000e+00> : vector<8x8xf32>
    %260 = tpu.matmul %259, %250, %cst_183 {dimension_numbers = #tpu.dot_dimension_numbers<[1], [1], [0], [0], [0, 0, 1, 0], [], []>} : vector<8x8xf32>, vector<8x8xf32>, vector<8x8xf32> -> vector<8x8xf32>
    %cst_184 = arith.constant dense<0xFF800000> : vector<8xf32>
    %261 = vector.multi_reduction <maximumf>, %260, %cst_184 [1] : vector<8x8xf32> to vector<8xf32>
    %262 = vector.shape_cast %261 : vector<8xf32> to vector<8x1xf32>
    %263 = vector.broadcast %262 : vector<8x1xf32> to vector<8x8xf32>
    %264 = arith.subf %260, %263 : vector<8x8xf32>
    %265 = math.exp %264 : vector<8x8xf32>
    %cst_185 = arith.constant dense<0.000000e+00> : vector<8xf32>
    %266 = vector.multi_reduction <add>, %265, %cst_185 [1] : vector<8x8xf32> to vector<8xf32>
    %267 = vector.shape_cast %266 : vector<8xf32> to vector<8x1xf32>
    %268 = vector.broadcast %267 : vector<8x1xf32> to vector<8x8xf32>
    %269 = arith.divf %265, %268 : vector<8x8xf32>
    %cst_186 = arith.constant dense<0.000000e+00> : vector<8x8xf32>
    %270 = tpu.matmul %269, %257, %cst_186 {dimension_numbers = #tpu.dot_dimension_numbers<[1], [0], [0], [1], [0, 0, 1, 1], [], []>} : vector<8x8xf32>, vector<8x8xf32>, vector<8x8xf32> -> vector<8x8xf32>
    %c3_187 = arith.constant 3 : index
    %c0_188 = arith.constant 0 : index
    %c0_189 = arith.constant 0 : index
    %271 = vector.load %arg9[%c3_187, %c0_188, %c0_189] : memref<12x32x8xf32, #tpu.memory_space<vmem>>, vector<1x32x8xf32>
    %272 = vector.shape_cast %271 : vector<1x32x8xf32> to vector<32x8xf32>
    %cst_190 = arith.constant dense<0.000000e+00> : vector<8x8xf32>
    %273 = tpu.matmul %168, %272, %cst_190 {dimension_numbers = #tpu.dot_dimension_numbers<[1], [0], [0], [1], [0, 0, 1, 1], [], []>} : vector<8x32xf32>, vector<32x8xf32>, vector<8x8xf32> -> vector<8x8xf32>
    %c3_191 = arith.constant 3 : index
    %c0_192 = arith.constant 0 : index
    %c0_193 = arith.constant 0 : index
    %274 = vector.load %arg10[%c3_191, %c0_192, %c0_193] : memref<12x1x8xf32, #tpu.memory_space<vmem>>, vector<1x1x8xf32>
    %275 = vector.shape_cast %274 : vector<1x1x8xf32> to vector<1x8xf32>
    %276 = vector.broadcast %275 : vector<1x8xf32> to vector<8x8xf32>
    %277 = arith.addf %273, %276 : vector<8x8xf32>
    %c7_194 = arith.constant 7 : index
    %c0_195 = arith.constant 0 : index
    %c0_196 = arith.constant 0 : index
    %278 = vector.load %arg9[%c7_194, %c0_195, %c0_196] : memref<12x32x8xf32, #tpu.memory_space<vmem>>, vector<1x32x8xf32>
    %279 = vector.shape_cast %278 : vector<1x32x8xf32> to vector<32x8xf32>
    %cst_197 = arith.constant dense<0.000000e+00> : vector<8x8xf32>
    %280 = tpu.matmul %1, %279, %cst_197 {dimension_numbers = #tpu.dot_dimension_numbers<[1], [0], [0], [1], [0, 0, 1, 1], [], []>} : vector<8x32xf32>, vector<32x8xf32>, vector<8x8xf32> -> vector<8x8xf32>
    %c7_198 = arith.constant 7 : index
    %c0_199 = arith.constant 0 : index
    %c0_200 = arith.constant 0 : index
    %281 = vector.load %arg10[%c7_198, %c0_199, %c0_200] : memref<12x1x8xf32, #tpu.memory_space<vmem>>, vector<1x1x8xf32>
    %282 = vector.shape_cast %281 : vector<1x1x8xf32> to vector<1x8xf32>
    %283 = vector.broadcast %282 : vector<1x8xf32> to vector<8x8xf32>
    %284 = arith.addf %280, %283 : vector<8x8xf32>
    %c11_201 = arith.constant 11 : index
    %c0_202 = arith.constant 0 : index
    %c0_203 = arith.constant 0 : index
    %285 = vector.load %arg9[%c11_201, %c0_202, %c0_203] : memref<12x32x8xf32, #tpu.memory_space<vmem>>, vector<1x32x8xf32>
    %286 = vector.shape_cast %285 : vector<1x32x8xf32> to vector<32x8xf32>
    %cst_204 = arith.constant dense<0.000000e+00> : vector<8x8xf32>
    %287 = tpu.matmul %1, %286, %cst_204 {dimension_numbers = #tpu.dot_dimension_numbers<[1], [0], [0], [1], [0, 0, 1, 1], [], []>} : vector<8x32xf32>, vector<32x8xf32>, vector<8x8xf32> -> vector<8x8xf32>
    %c11_205 = arith.constant 11 : index
    %c0_206 = arith.constant 0 : index
    %c0_207 = arith.constant 0 : index
    %288 = vector.load %arg10[%c11_205, %c0_206, %c0_207] : memref<12x1x8xf32, #tpu.memory_space<vmem>>, vector<1x1x8xf32>
    %289 = vector.shape_cast %288 : vector<1x1x8xf32> to vector<1x8xf32>
    %290 = vector.broadcast %289 : vector<1x8xf32> to vector<8x8xf32>
    %291 = arith.addf %287, %290 : vector<8x8xf32>
    %cst_208 = arith.constant 0.353553385 : f32
    %292 = vector.broadcast %cst_208 : f32 to vector<8x8xf32>
    %293 = arith.mulf %277, %292 : vector<8x8xf32>
    %cst_209 = arith.constant dense<0.000000e+00> : vector<8x8xf32>
    %294 = tpu.matmul %293, %284, %cst_209 {dimension_numbers = #tpu.dot_dimension_numbers<[1], [1], [0], [0], [0, 0, 1, 0], [], []>} : vector<8x8xf32>, vector<8x8xf32>, vector<8x8xf32> -> vector<8x8xf32>
    %cst_210 = arith.constant dense<0xFF800000> : vector<8xf32>
    %295 = vector.multi_reduction <maximumf>, %294, %cst_210 [1] : vector<8x8xf32> to vector<8xf32>
    %296 = vector.shape_cast %295 : vector<8xf32> to vector<8x1xf32>
    %297 = vector.broadcast %296 : vector<8x1xf32> to vector<8x8xf32>
    %298 = arith.subf %294, %297 : vector<8x8xf32>
    %299 = math.exp %298 : vector<8x8xf32>
    %cst_211 = arith.constant dense<0.000000e+00> : vector<8xf32>
    %300 = vector.multi_reduction <add>, %299, %cst_211 [1] : vector<8x8xf32> to vector<8xf32>
    %301 = vector.shape_cast %300 : vector<8xf32> to vector<8x1xf32>
    %302 = vector.broadcast %301 : vector<8x1xf32> to vector<8x8xf32>
    %303 = arith.divf %299, %302 : vector<8x8xf32>
    %cst_212 = arith.constant dense<0.000000e+00> : vector<8x8xf32>
    %304 = tpu.matmul %303, %291, %cst_212 {dimension_numbers = #tpu.dot_dimension_numbers<[1], [0], [0], [1], [0, 0, 1, 1], [], []>} : vector<8x8xf32>, vector<8x8xf32>, vector<8x8xf32> -> vector<8x8xf32>
    %305 = tpu.concatenate %202, %236, %270, %304 in 1 : vector<8x8xf32>, vector<8x8xf32>, vector<8x8xf32>, vector<8x8xf32> -> vector<8x32xf32>
    %c0_213 = arith.constant 0 : index
    %c0_214 = arith.constant 0 : index
    %306 = vector.load %arg11[%c0_213, %c0_214] : memref<32x32xf32, #tpu.memory_space<vmem>>, vector<32x32xf32>
    %cst_215 = arith.constant dense<0.000000e+00> : vector<8x32xf32>
    %307 = tpu.matmul %305, %306, %cst_215 {dimension_numbers = #tpu.dot_dimension_numbers<[1], [0], [0], [1], [0, 0, 1, 1], [], []>} : vector<8x32xf32>, vector<32x32xf32>, vector<8x32xf32> -> vector<8x32xf32>
    %c0_216 = arith.constant 0 : index
    %c0_217 = arith.constant 0 : index
    %308 = vector.load %arg12[%c0_216, %c0_217] : memref<1x32xf32, #tpu.memory_space<vmem>>, vector<1x32xf32>
    %309 = vector.broadcast %308 : vector<1x32xf32> to vector<8x32xf32>
    %310 = arith.addf %307, %309 : vector<8x32xf32>
    %311 = arith.addf %168, %310 : vector<8x32xf32>
    %c0_218 = arith.constant 0 : index
    %c0_219 = arith.constant 0 : index
    %312 = vector.load %arg13[%c0_218, %c0_219] : memref<1x32xf32, #tpu.memory_space<vmem>>, vector<1x32xf32>
    %c0_220 = arith.constant 0 : index
    %c0_221 = arith.constant 0 : index
    %313 = vector.load %arg14[%c0_220, %c0_221] : memref<1x32xf32, #tpu.memory_space<vmem>>, vector<1x32xf32>
    %cst_222 = arith.constant dense<0.000000e+00> : vector<8xf32>
    %314 = vector.multi_reduction <add>, %311, %cst_222 [1] : vector<8x32xf32> to vector<8xf32>
    %315 = vector.shape_cast %314 : vector<8xf32> to vector<8x1xf32>
    %cst_223 = arith.constant 3.200000e+01 : f32
    %316 = vector.broadcast %cst_223 : f32 to vector<8x1xf32>
    %317 = arith.divf %315, %316 : vector<8x1xf32>
    %318 = arith.mulf %311, %311 : vector<8x32xf32>
    %cst_224 = arith.constant dense<0.000000e+00> : vector<8xf32>
    %319 = vector.multi_reduction <add>, %318, %cst_224 [1] : vector<8x32xf32> to vector<8xf32>
    %320 = vector.shape_cast %319 : vector<8xf32> to vector<8x1xf32>
    %cst_225 = arith.constant 3.200000e+01 : f32
    %321 = vector.broadcast %cst_225 : f32 to vector<8x1xf32>
    %322 = arith.divf %320, %321 : vector<8x1xf32>
    %323 = arith.mulf %317, %317 : vector<8x1xf32>
    %324 = arith.subf %322, %323 : vector<8x1xf32>
    %325 = vector.broadcast %317 : vector<8x1xf32> to vector<8x32xf32>
    %326 = arith.subf %311, %325 : vector<8x32xf32>
    %cst_226 = arith.constant 9.99999974E-6 : f32
    %327 = vector.broadcast %cst_226 : f32 to vector<8x1xf32>
    %328 = arith.addf %324, %327 : vector<8x1xf32>
    %329 = math.rsqrt %328 : vector<8x1xf32>
    %330 = vector.broadcast %329 : vector<8x1xf32> to vector<8x32xf32>
    %331 = arith.mulf %326, %330 : vector<8x32xf32>
    %332 = vector.broadcast %312 : vector<1x32xf32> to vector<8x32xf32>
    %333 = arith.mulf %331, %332 : vector<8x32xf32>
    %334 = vector.broadcast %313 : vector<1x32xf32> to vector<8x32xf32>
    %335 = arith.addf %333, %334 : vector<8x32xf32>
    %c0_227 = arith.constant 0 : index
    %c0_228 = arith.constant 0 : index
    %336 = vector.load %arg15[%c0_227, %c0_228] : memref<32x64xf32, #tpu.memory_space<vmem>>, vector<32x64xf32>
    %cst_229 = arith.constant dense<0.000000e+00> : vector<8x64xf32>
    %337 = tpu.matmul %335, %336, %cst_229 {dimension_numbers = #tpu.dot_dimension_numbers<[1], [0], [0], [1], [0, 0, 1, 1], [], []>} : vector<8x32xf32>, vector<32x64xf32>, vector<8x64xf32> -> vector<8x64xf32>
    %c0_230 = arith.constant 0 : index
    %c0_231 = arith.constant 0 : index
    %338 = vector.load %arg16[%c0_230, %c0_231] : memref<1x64xf32, #tpu.memory_space<vmem>>, vector<1x64xf32>
    %339 = vector.broadcast %338 : vector<1x64xf32> to vector<8x64xf32>
    %340 = arith.addf %337, %339 : vector<8x64xf32>
    %cst_232 = arith.constant 0.000000e+00 : f32
    %341 = vector.broadcast %cst_232 : f32 to vector<8x64xf32>
    %342 = arith.maximumf %340, %341 : vector<8x64xf32>
    %c0_233 = arith.constant 0 : index
    %c0_234 = arith.constant 0 : index
    %343 = vector.load %arg17[%c0_233, %c0_234] : memref<64x32xf32, #tpu.memory_space<vmem>>, vector<64x32xf32>
    %cst_235 = arith.constant dense<0.000000e+00> : vector<8x32xf32>
    %344 = tpu.matmul %342, %343, %cst_235 {dimension_numbers = #tpu.dot_dimension_numbers<[1], [0], [0], [1], [0, 0, 1, 1], [], []>} : vector<8x64xf32>, vector<64x32xf32>, vector<8x32xf32> -> vector<8x32xf32>
    %c0_236 = arith.constant 0 : index
    %c0_237 = arith.constant 0 : index
    %345 = vector.load %arg18[%c0_236, %c0_237] : memref<1x32xf32, #tpu.memory_space<vmem>>, vector<1x32xf32>
    %346 = vector.broadcast %345 : vector<1x32xf32> to vector<8x32xf32>
    %347 = arith.addf %344, %346 : vector<8x32xf32>
    %348 = arith.addf %335, %347 : vector<8x32xf32>
    %c0_238 = arith.constant 0 : index
    %c0_239 = arith.constant 0 : index
    %349 = vector.load %arg19[%c0_238, %c0_239] : memref<1x32xf32, #tpu.memory_space<vmem>>, vector<1x32xf32>
    %c0_240 = arith.constant 0 : index
    %c0_241 = arith.constant 0 : index
    %350 = vector.load %arg20[%c0_240, %c0_241] : memref<1x32xf32, #tpu.memory_space<vmem>>, vector<1x32xf32>
    %cst_242 = arith.constant dense<0.000000e+00> : vector<8xf32>
    %351 = vector.multi_reduction <add>, %348, %cst_242 [1] : vector<8x32xf32> to vector<8xf32>
    %352 = vector.shape_cast %351 : vector<8xf32> to vector<8x1xf32>
    %cst_243 = arith.constant 3.200000e+01 : f32
    %353 = vector.broadcast %cst_243 : f32 to vector<8x1xf32>
    %354 = arith.divf %352, %353 : vector<8x1xf32>
    %355 = arith.mulf %348, %348 : vector<8x32xf32>
    %cst_244 = arith.constant dense<0.000000e+00> : vector<8xf32>
    %356 = vector.multi_reduction <add>, %355, %cst_244 [1] : vector<8x32xf32> to vector<8xf32>
    %357 = vector.shape_cast %356 : vector<8xf32> to vector<8x1xf32>
    %cst_245 = arith.constant 3.200000e+01 : f32
    %358 = vector.broadcast %cst_245 : f32 to vector<8x1xf32>
    %359 = arith.divf %357, %358 : vector<8x1xf32>
    %360 = arith.mulf %354, %354 : vector<8x1xf32>
    %361 = arith.subf %359, %360 : vector<8x1xf32>
    %362 = vector.broadcast %354 : vector<8x1xf32> to vector<8x32xf32>
    %363 = arith.subf %348, %362 : vector<8x32xf32>
    %cst_246 = arith.constant 9.99999974E-6 : f32
    %364 = vector.broadcast %cst_246 : f32 to vector<8x1xf32>
    %365 = arith.addf %361, %364 : vector<8x1xf32>
    %366 = math.rsqrt %365 : vector<8x1xf32>
    %367 = vector.broadcast %366 : vector<8x1xf32> to vector<8x32xf32>
    %368 = arith.mulf %363, %367 : vector<8x32xf32>
    %369 = vector.broadcast %349 : vector<1x32xf32> to vector<8x32xf32>
    %370 = arith.mulf %368, %369 : vector<8x32xf32>
    %371 = vector.broadcast %350 : vector<1x32xf32> to vector<8x32xf32>
    %372 = arith.addf %370, %371 : vector<8x32xf32>
    %c0_247 = arith.constant 0 : index
    %c0_248 = arith.constant 0 : index
    %373 = vector.load %arg21[%c0_247, %c0_248] : memref<8x32xf32, #tpu.memory_space<vmem>>, vector<8x32xf32>
    tpu.vector_store %arg21[%c0_247, %c0_248], %372 {strides = array<i32>} : memref<8x32xf32, #tpu.memory_space<vmem>>, vector<8x32xf32>,
    return
  }
  func.func @transform_0(%arg0: i32) -> (i32, i32) {
    %c0_i32 = arith.constant 0 : i32
    %c0_i32_0 = arith.constant 0 : i32
    return %arg0, %c0_i32 : i32, i32
  }
  func.func @transform_1(%arg0: i32) -> (i32, i32) {
    %c0_i32 = arith.constant 0 : i32
    %c0_i32_0 = arith.constant 0 : i32
    return %arg0, %c0_i32 : i32, i32
  }
  func.func @transform_2(%arg0: i32) -> (i32, i32, i32) {
    %c0_i32 = arith.constant 0 : i32
    %c0_i32_0 = arith.constant 0 : i32
    %c0_i32_1 = arith.constant 0 : i32
    %c0_i32_2 = arith.constant 0 : i32
    return %c0_i32, %c0_i32_0, %c0_i32_1 : i32, i32, i32
  }
  func.func @transform_3(%arg0: i32) -> (i32, i32, i32) {
    %c0_i32 = arith.constant 0 : i32
    %c0_i32_0 = arith.constant 0 : i32
    %c0_i32_1 = arith.constant 0 : i32
    %c0_i32_2 = arith.constant 0 : i32
    return %c0_i32, %c0_i32_0, %c0_i32_1 : i32, i32, i32
  }
  func.func @transform_4(%arg0: i32) -> (i32, i32) {
    %c0_i32 = arith.constant 0 : i32
    %c0_i32_0 = arith.constant 0 : i32
    %c0_i32_1 = arith.constant 0 : i32
    return %c0_i32, %c0_i32_0 : i32, i32
  }
  func.func @transform_5(%arg0: i32) -> (i32, i32) {
    %c0_i32 = arith.constant 0 : i32
    %c0_i32_0 = arith.constant 0 : i32
    %c0_i32_1 = arith.constant 0 : i32
    return %c0_i32, %c0_i32_0 : i32, i32
  }
  func.func @transform_6(%arg0: i32) -> (i32, i32) {
    %c0_i32 = arith.constant 0 : i32
    %c0_i32_0 = arith.constant 0 : i32
    %c0_i32_1 = arith.constant 0 : i32
    return %c0_i32, %c0_i32_0 : i32, i32
  }
  func.func @transform_7(%arg0: i32) -> (i32, i32) {
    %c0_i32 = arith.constant 0 : i32
    %c0_i32_0 = arith.constant 0 : i32
    %c0_i32_1 = arith.constant 0 : i32
    return %c0_i32, %c0_i32_0 : i32, i32
  }
  func.func @transform_8(%arg0: i32) -> (i32, i32, i32) {
    %c0_i32 = arith.constant 0 : i32
    %c0_i32_0 = arith.constant 0 : i32
    %c0_i32_1 = arith.constant 0 : i32
    %c0_i32_2 = arith.constant 0 : i32
    return %c0_i32, %c0_i32_0, %c0_i32_1 : i32, i32, i32
  }
  func.func @transform_9(%arg0: i32) -> (i32, i32, i32) {
    %c0_i32 = arith.constant 0 : i32
    %c0_i32_0 = arith.constant 0 : i32
    %c0_i32_1 = arith.constant 0 : i32
    %c0_i32_2 = arith.constant 0 : i32
    return %c0_i32, %c0_i32_0, %c0_i32_1 : i32, i32, i32
  }
  func.func @transform_10(%arg0: i32) -> (i32, i32) {
    %c0_i32 = arith.constant 0 : i32
    %c0_i32_0 = arith.constant 0 : i32
    %c0_i32_1 = arith.constant 0 : i32
    return %c0_i32, %c0_i32_0 : i32, i32
  }
  func.func @transform_11(%arg0: i32) -> (i32, i32) {
    %c0_i32 = arith.constant 0 : i32
    %c0_i32_0 = arith.constant 0 : i32
    %c0_i32_1 = arith.constant 0 : i32
    return %c0_i32, %c0_i32_0 : i32, i32
  }
  func.func @transform_12(%arg0: i32) -> (i32, i32) {
    %c0_i32 = arith.constant 0 : i32
    %c0_i32_0 = arith.constant 0 : i32
    %c0_i32_1 = arith.constant 0 : i32
    return %c0_i32, %c0_i32_0 : i32, i32
  }
  func.func @transform_13(%arg0: i32) -> (i32, i32) {
    %c0_i32 = arith.constant 0 : i32
    %c0_i32_0 = arith.constant 0 : i32
    %c0_i32_1 = arith.constant 0 : i32
    return %c0_i32, %c0_i32_0 : i32, i32
  }
  func.func @transform_14(%arg0: i32) -> (i32, i32) {
    %c0_i32 = arith.constant 0 : i32
    %c0_i32_0 = arith.constant 0 : i32
    %c0_i32_1 = arith.constant 0 : i32
    return %c0_i32, %c0_i32_0 : i32, i32
  }
  func.func @transform_15(%arg0: i32) -> (i32, i32) {
    %c0_i32 = arith.constant 0 : i32
    %c0_i32_0 = arith.constant 0 : i32
    %c0_i32_1 = arith.constant 0 : i32
    return %c0_i32, %c0_i32_0 : i32, i32
  }
  func.func @transform_16(%arg0: i32) -> (i32, i32) {
    %c0_i32 = arith.constant 0 : i32
    %c0_i32_0 = arith.constant 0 : i32
    %c0_i32_1 = arith.constant 0 : i32
    return %c0_i32, %c0_i32_0 : i32, i32
  }
  func.func @transform_17(%arg0: i32) -> (i32, i32) {
    %c0_i32 = arith.constant 0 : i32
    %c0_i32_0 = arith.constant 0 : i32
    %c0_i32_1 = arith.constant 0 : i32
    return %c0_i32, %c0_i32_0 : i32, i32
  }
  func.func @transform_18(%arg0: i32) -> (i32, i32) {
    %c0_i32 = arith.constant 0 : i32
    %c0_i32_0 = arith.constant 0 : i32
    %c0_i32_1 = arith.constant 0 : i32
    return %c0_i32, %c0_i32_0 : i32, i32
  }
  func.func @transform_19(%arg0: i32) -> (i32, i32) {
    %c0_i32 = arith.constant 0 : i32
    %c0_i32_0 = arith.constant 0 : i32
    %c0_i32_1 = arith.constant 0 : i32
    return %c0_i32, %c0_i32_0 : i32, i32
  }
  func.func @transform_20(%arg0: i32) -> (i32, i32) {
    %c0_i32 = arith.constant 0 : i32
    %c0_i32_0 = arith.constant 0 : i32
    return %arg0, %c0_i32 : i32, i32
  }
}

</mosaic_0001>

<llo_original>
// kernel: decoder_layer_forward.1
$region0: #{decoder_layer_forward.1}
  #allocation0 [shape = 'u32[]', space=smem, size = 0x4, offset = 0x4, fixed_abs, tag = 'smem constant byte address 0x4 - core index']
  #allocation1 [shape = 'u32[144,128]{1,0:T(1,128)}', space=vmem, size = 0x12000, scoped, tag = 'internal scratch']
  %s0 = inlined_call_operand.vmem [shape: f32[16,32], index: 0, kind: input, shape index: {}]
  %s1 = inlined_call_operand.vmem [shape: f32[16,32], index: 1, kind: input, shape index: {}]
  %s2 = inlined_call_operand.vmem [shape: f32[12,32,8], index: 2, kind: input, shape index: {}]
  %s3 = inlined_call_operand.vmem [shape: f32[12,1,8], index: 3, kind: input, shape index: {}]
  %s4 = inlined_call_operand.vmem [shape: f32[32,32], index: 4, kind: input, shape index: {}]
  %s5 = inlined_call_operand.vmem [shape: f32[1,32], index: 5, kind: input, shape index: {}]
  %s6 = inlined_call_operand.vmem [shape: f32[1,32], index: 6, kind: input, shape index: {}]
  %s7 = inlined_call_operand.vmem [shape: f32[1,32], index: 7, kind: input, shape index: {}]
  %s8 = inlined_call_operand.vmem [shape: f32[12,32,8], index: 8, kind: input, shape index: {}]
  %s9 = inlined_call_operand.vmem [shape: f32[12,1,8], index: 9, kind: input, shape index: {}]
  %s10 = inlined_call_operand.vmem [shape: f32[32,32], index: 10, kind: input, shape index: {}]
  %s11 = inlined_call_operand.vmem [shape: f32[1,32], index: 11, kind: input, shape index: {}]
  %s12 = inlined_call_operand.vmem [shape: f32[1,32], index: 12, kind: input, shape index: {}]
  %s13 = inlined_call_operand.vmem [shape: f32[1,32], index: 13, kind: input, shape index: {}]
  %s14 = inlined_call_operand.vmem [shape: f32[32,64], index: 14, kind: input, shape index: {}]
  %s15 = inlined_call_operand.vmem [shape: f32[1,64], index: 15, kind: input, shape index: {}]
  %s16 = inlined_call_operand.vmem [shape: f32[64,32], index: 16, kind: input, shape index: {}]
  %s17 = inlined_call_operand.vmem [shape: f32[1,32], index: 17, kind: input, shape index: {}]
  %s18 = inlined_call_operand.vmem [shape: f32[1,32], index: 18, kind: input, shape index: {}]
  %s19 = inlined_call_operand.vmem [shape: f32[1,32], index: 19, kind: input, shape index: {}]
  %s20 = inlined_call_operand.hbm [shape: f32[16,32], index: 20, kind: output, shape index: {}]
  %s21 = sld [smem:[#allocation0]]
  $region113: #{decoder_layer_forward.1} parent=0
    _
  %s23 = ssub.s32 1, %s21
  %s24 = scalar_select 0, %s23, %s21
  $region1: #{decoder_layer_forward.1} parent=0
    #allocation2 [shape = 'u8[8192]{0}', space=vmem, size = 0x2000, scoped, tag = 'output window, operand 0']
    #allocation3 [shape = 's32[2]{0}', space=sflag, size = 0x8, scoped, tag = 'scoped memory for decoder_layer_forward.1']
    %25 = vsyncpa [#allocation3], 0
    %s26 = scalar_lea.sflag [#allocation3], 1
    %27 = vsyncpa %s26, 0
    loop: start=0, step=1, limit=4
    $region2: #{decoder_layer_forward.1} parent=1 // loop_pre_header
      _
    $region3: #{decoder_layer_forward.1} parent=1 // loop_header
      %s29 = sphi 0, %s33
      %p30 = scmp.ge.s32.totalorder %s29, 4
      %s39 = sphi 0, %s41
      %s42 = sphi 0, %s39
      %s43 = sphi 0, %s42
      %s59 = sphi 0, %s43
      %s65 = sphi 0, %s67
      %s68 = sphi 0, %s65
      %s69 = sphi 0, %s68
      %s85 = sphi 0, %s69
      %s89 = sphi 0, %s89
      %s91 = sphi 0, %s89
      %s92 = sphi 0, %s91
      %s106 = sphi 0, %s92
      %s110 = sphi 0, %s110
      %s112 = sphi 0, %s110
      %s113 = sphi 0, %s112
      %s127 = sphi 0, %s113
      %s131 = sphi 0, %s131
      %s133 = sphi 0, %s131
      %s134 = sphi 0, %s133
      %s148 = sphi 0, %s134
      %s152 = sphi 0, %s152
      %s154 = sphi 0, %s152
      %s155 = sphi 0, %s154
      %s169 = sphi 0, %s155
      %s173 = sphi 0, %s173
      %s175 = sphi 0, %s173
      %s176 = sphi 0, %s175
      %s190 = sphi 0, %s176
      %s194 = sphi 0, %s194
      %s196 = sphi 0, %s194
      %s197 = sphi 0, %s196
      %s211 = sphi 0, %s197
      %s215 = sphi 0, %s215
      %s217 = sphi 0, %s215
      %s218 = sphi 0, %s217
      %s232 = sphi 0, %s218
      %s236 = sphi 0, %s236
      %s238 = sphi 0, %s236
      %s239 = sphi 0, %s238
      %s253 = sphi 0, %s239
      %s257 = sphi 0, %s257
      %s259 = sphi 0, %s257
      %s260 = sphi 0, %s259
      %s274 = sphi 0, %s260
      %s278 = sphi 0, %s278
      %s280 = sphi 0, %s278
      %s281 = sphi 0, %s280
      %s295 = sphi 0, %s281
      %s299 = sphi 0, %s299
      %s301 = sphi 0, %s299
      %s302 = sphi 0, %s301
      %s316 = sphi 0, %s302
      %s320 = sphi 0, %s320
      %s322 = sphi 0, %s320
      %s323 = sphi 0, %s322
      %s337 = sphi 0, %s323
      %s341 = sphi 0, %s341
      %s343 = sphi 0, %s341
      %s344 = sphi 0, %s343
      %s358 = sphi 0, %s344
      %s362 = sphi 0, %s362
      %s364 = sphi 0, %s362
      %s365 = sphi 0, %s364
      %s379 = sphi 0, %s365
      %s383 = sphi 0, %s383
      %s385 = sphi 0, %s383
      %s386 = sphi 0, %s385
      %s400 = sphi 0, %s386
      %s404 = sphi 0, %s404
      %s406 = sphi 0, %s404
      %s407 = sphi 0, %s406
      %s421 = sphi 0, %s407
      %s425 = sphi 0, %s425
      %s427 = sphi 0, %s425
      %s428 = sphi 0, %s427
      %s442 = sphi 0, %s428
      %s446 = sphi 0, %s446
      %s448 = sphi 0, %s446
      %s449 = sphi 0, %s448
      %s463 = sphi 0, %s449
      %s469 = sphi 0, %s471
      %s472 = sphi 0, %s469
      %s473 = sphi 0, %s472
      %s489 = sphi 0, %s473
    $region4: #{decoder_layer_forward.1} parent=1 // loop_header_branch
      %32 = sbr.rel (%p30) target = $region8
    $region5: #{decoder_layer_forward.1} parent=1 // loop_body
      %s34 = ssub.s32 %s29, 1
      %s35 = ssub.s32 %s29, 2
      %s36 = sadd.s32 %s29, 1
      %s37 = ssub.s32 %s29, %s36
      %p38 = scmp.eq.s32.totalorder %s37, 0
      %s40 = sadd.s32 %s39, 1
      %s41 = scalar_select %p38, %s39, %s40
      %p44 = pneg %p38
      %p45 = scmp.eq.s32.totalorder %s29, 1
      %p46 = por %p44, %p45
      %p47 = scmp.ne.s32.totalorder %s39, %s42
      %p48 = scmp.eq.s32.totalorder %s29, 0
      %p49 = por %p47, %p48
      %p50 = scmp.ne.s32.totalorder %s39, %s42
      %p51 = scmp.eq.s32.totalorder %s34, 1
      %p52 = por %p50, %p51
      %p53 = scmp.ne.s32.totalorder %s42, %s43
      %p54 = scmp.eq.s32.totalorder %s34, 0
      %p55 = por %p53, %p54
      %p56 = scmp.ne.s32.totalorder %s42, %s43
      %p57 = scmp.eq.s32.totalorder %s35, 1
      %p58 = por %p56, %p57
      %p60 = scmp.ne.s32.totalorder %s43, %s59
      %p61 = scmp.eq.s32.totalorder %s35, 0
      %p62 = por %p60, %p61
      %s63 = ssub.s32 %s29, %s36
      %p64 = scmp.eq.s32.totalorder %s63, 0
      %s66 = sadd.s32 %s65, 1
      %s67 = scalar_select %p64, %s65, %s66
      %p70 = pneg %p64
      %p71 = scmp.eq.s32.totalorder %s29, 1
      %p72 = por %p70, %p71
      %p73 = scmp.ne.s32.totalorder %s65, %s68
      %p74 = scmp.eq.s32.totalorder %s29, 0
      %p75 = por %p73, %p74
      %p76 = scmp.ne.s32.totalorder %s65, %s68
      %p77 = scmp.eq.s32.totalorder %s34, 1
      %p78 = por %p76, %p77
      %p79 = scmp.ne.s32.totalorder %s68, %s69
      %p80 = scmp.eq.s32.totalorder %s34, 0
      %p81 = por %p79, %p80
      %p82 = scmp.ne.s32.totalorder %s68, %s69
      %p83 = scmp.eq.s32.totalorder %s35, 1
      %p84 = por %p82, %p83
      %p86 = scmp.ne.s32.totalorder %s69, %s85
      %p87 = scmp.eq.s32.totalorder %s35, 0
      %p88 = por %p86, %p87
      %s90 = sadd.s32 %s89, 1
      %p93 = scmp.eq.s32.totalorder %s29, 1
      %p94 = scmp.ne.s32.totalorder %s89, %s91
      %p95 = scmp.eq.s32.totalorder %s29, 0
      %p96 = por %p94, %p95
      %p97 = scmp.ne.s32.totalorder %s89, %s91
      %p98 = scmp.eq.s32.totalorder %s34, 1
      %p99 = por %p97, %p98
      %p100 = scmp.ne.s32.totalorder %s91, %s92
      %p101 = scmp.eq.s32.totalorder %s34, 0
      %p102 = por %p100, %p101
      %p103 = scmp.ne.s32.totalorder %s91, %s92
      %p104 = scmp.eq.s32.totalorder %s35, 1
      %p105 = por %p103, %p104
      %p107 = scmp.ne.s32.totalorder %s92, %s106
      %p108 = scmp.eq.s32.totalorder %s35, 0
      %p109 = por %p107, %p108
      %s111 = sadd.s32 %s110, 1
      %p114 = scmp.eq.s32.totalorder %s29, 1
      %p115 = scmp.ne.s32.totalorder %s110, %s112
      %p116 = scmp.eq.s32.totalorder %s29, 0
      %p117 = por %p115, %p116
      %p118 = scmp.ne.s32.totalorder %s110, %s112
      %p119 = scmp.eq.s32.totalorder %s34, 1
      %p120 = por %p118, %p119
      %p121 = scmp.ne.s32.totalorder %s112, %s113
      %p122 = scmp.eq.s32.totalorder %s34, 0
      %p123 = por %p121, %p122
      %p124 = scmp.ne.s32.totalorder %s112, %s113
      %p125 = scmp.eq.s32.totalorder %s35, 1
      %p126 = por %p124, %p125
      %p128 = scmp.ne.s32.totalorder %s113, %s127
      %p129 = scmp.eq.s32.totalorder %s35, 0
      %p130 = por %p128, %p129
      %s132 = sadd.s32 %s131, 1
      %p135 = scmp.eq.s32.totalorder %s29, 1
      %p136 = scmp.ne.s32.totalorder %s131, %s133
      %p137 = scmp.eq.s32.totalorder %s29, 0
      %p138 = por %p136, %p137
      %p139 = scmp.ne.s32.totalorder %s131, %s133
      %p140 = scmp.eq.s32.totalorder %s34, 1
      %p141 = por %p139, %p140
      %p142 = scmp.ne.s32.totalorder %s133, %s134
      %p143 = scmp.eq.s32.totalorder %s34, 0
      %p144 = por %p142, %p143
      %p145 = scmp.ne.s32.totalorder %s133, %s134
      %p146 = scmp.eq.s32.totalorder %s35, 1
      %p147 = por %p145, %p146
      %p149 = scmp.ne.s32.totalorder %s134, %s148
      %p150 = scmp.eq.s32.totalorder %s35, 0
      %p151 = por %p149, %p150
      %s153 = sadd.s32 %s152, 1
      %p156 = scmp.eq.s32.totalorder %s29, 1
      %p157 = scmp.ne.s32.totalorder %s152, %s154
      %p158 = scmp.eq.s32.totalorder %s29, 0
      %p159 = por %p157, %p158
      %p160 = scmp.ne.s32.totalorder %s152, %s154
      %p161 = scmp.eq.s32.totalorder %s34, 1
      %p162 = por %p160, %p161
      %p163 = scmp.ne.s32.totalorder %s154, %s155
      %p164 = scmp.eq.s32.totalorder %s34, 0
      %p165 = por %p163, %p164
      %p166 = scmp.ne.s32.totalorder %s154, %s155
      %p167 = scmp.eq.s32.totalorder %s35, 1
      %p168 = por %p166, %p167
      %p170 = scmp.ne.s32.totalorder %s155, %s169
      %p171 = scmp.eq.s32.totalorder %s35, 0
      %p172 = por %p170, %p171
      %s174 = sadd.s32 %s173, 1
      %p177 = scmp.eq.s32.totalorder %s29, 1
      %p178 = scmp.ne.s32.totalorder %s173, %s175
      %p179 = scmp.eq.s32.totalorder %s29, 0
      %p180 = por %p178, %p179
      %p181 = scmp.ne.s32.totalorder %s173, %s175
      %p182 = scmp.eq.s32.totalorder %s34, 1
      %p183 = por %p181, %p182
      %p184 = scmp.ne.s32.totalorder %s175, %s176
      %p185 = scmp.eq.s32.totalorder %s34, 0
      %p186 = por %p184, %p185
      %p187 = scmp.ne.s32.totalorder %s175, %s176
      %p188 = scmp.eq.s32.totalorder %s35, 1
      %p189 = por %p187, %p188
      %p191 = scmp.ne.s32.totalorder %s176, %s190
      %p192 = scmp.eq.s32.totalorder %s35, 0
      %p193 = por %p191, %p192
      %s195 = sadd.s32 %s194, 1
      %p198 = scmp.eq.s32.totalorder %s29, 1
      %p199 = scmp.ne.s32.totalorder %s194, %s196
      %p200 = scmp.eq.s32.totalorder %s29, 0
      %p201 = por %p199, %p200
      %p202 = scmp.ne.s32.totalorder %s194, %s196
      %p203 = scmp.eq.s32.totalorder %s34, 1
      %p204 = por %p202, %p203
      %p205 = scmp.ne.s32.totalorder %s196, %s197
      %p206 = scmp.eq.s32.totalorder %s34, 0
      %p207 = por %p205, %p206
      %p208 = scmp.ne.s32.totalorder %s196, %s197
      %p209 = scmp.eq.s32.totalorder %s35, 1
      %p210 = por %p208, %p209
      %p212 = scmp.ne.s32.totalorder %s197, %s211
      %p213 = scmp.eq.s32.totalorder %s35, 0
      %p214 = por %p212, %p213
      %s216 = sadd.s32 %s215, 1
      %p219 = scmp.eq.s32.totalorder %s29, 1
      %p220 = scmp.ne.s32.totalorder %s215, %s217
      %p221 = scmp.eq.s32.totalorder %s29, 0
      %p222 = por %p220, %p221
      %p223 = scmp.ne.s32.totalorder %s215, %s217
      %p224 = scmp.eq.s32.totalorder %s34, 1
      %p225 = por %p223, %p224
      %p226 = scmp.ne.s32.totalorder %s217, %s218
      %p227 = scmp.eq.s32.totalorder %s34, 0
      %p228 = por %p226, %p227
      %p229 = scmp.ne.s32.totalorder %s217, %s218
      %p230 = scmp.eq.s32.totalorder %s35, 1
      %p231 = por %p229, %p230
      %p233 = scmp.ne.s32.totalorder %s218, %s232
      %p234 = scmp.eq.s32.totalorder %s35, 0
      %p235 = por %p233, %p234
      %s237 = sadd.s32 %s236, 1
      %p240 = scmp.eq.s32.totalorder %s29, 1
      %p241 = scmp.ne.s32.totalorder %s236, %s238
      %p242 = scmp.eq.s32.totalorder %s29, 0
      %p243 = por %p241, %p242
      %p244 = scmp.ne.s32.totalorder %s236, %s238
      %p245 = scmp.eq.s32.totalorder %s34, 1
      %p246 = por %p244, %p245
      %p247 = scmp.ne.s32.totalorder %s238, %s239
      %p248 = scmp.eq.s32.totalorder %s34, 0
      %p249 = por %p247, %p248
      %p250 = scmp.ne.s32.totalorder %s238, %s239
      %p251 = scmp.eq.s32.totalorder %s35, 1
      %p252 = por %p250, %p251
      %p254 = scmp.ne.s32.totalorder %s239, %s253
      %p255 = scmp.eq.s32.totalorder %s35, 0
      %p256 = por %p254, %p255
      %s258 = sadd.s32 %s257, 1
      %p261 = scmp.eq.s32.totalorder %s29, 1
      %p262 = scmp.ne.s32.totalorder %s257, %s259
      %p263 = scmp.eq.s32.totalorder %s29, 0
      %p264 = por %p262, %p263
      %p265 = scmp.ne.s32.totalorder %s257, %s259
      %p266 = scmp.eq.s32.totalorder %s34, 1
      %p267 = por %p265, %p266
      %p268 = scmp.ne.s32.totalorder %s259, %s260
      %p269 = scmp.eq.s32.totalorder %s34, 0
      %p270 = por %p268, %p269
      %p271 = scmp.ne.s32.totalorder %s259, %s260
      %p272 = scmp.eq.s32.totalorder %s35, 1
      %p273 = por %p271, %p272
      %p275 = scmp.ne.s32.totalorder %s260, %s274
      %p276 = scmp.eq.s32.totalorder %s35, 0
      %p277 = por %p275, %p276
      %s279 = sadd.s32 %s278, 1
      %p282 = scmp.eq.s32.totalorder %s29, 1
      %p283 = scmp.ne.s32.totalorder %s278, %s280
      %p284 = scmp.eq.s32.totalorder %s29, 0
      %p285 = por %p283, %p284
      %p286 = scmp.ne.s32.totalorder %s278, %s280
      %p287 = scmp.eq.s32.totalorder %s34, 1
      %p288 = por %p286, %p287
      %p289 = scmp.ne.s32.totalorder %s280, %s281
      %p290 = scmp.eq.s32.totalorder %s34, 0
      %p291 = por %p289, %p290
      %p292 = scmp.ne.s32.totalorder %s280, %s281
      %p293 = scmp.eq.s32.totalorder %s35, 1
      %p294 = por %p292, %p293
      %p296 = scmp.ne.s32.totalorder %s281, %s295
      %p297 = scmp.eq.s32.totalorder %s35, 0
      %p298 = por %p296, %p297
      %s300 = sadd.s32 %s299, 1
      %p303 = scmp.eq.s32.totalorder %s29, 1
      %p304 = scmp.ne.s32.totalorder %s299, %s301
      %p305 = scmp.eq.s32.totalorder %s29, 0
      %p306 = por %p304, %p305
      %p307 = scmp.ne.s32.totalorder %s299, %s301
      %p308 = scmp.eq.s32.totalorder %s34, 1
      %p309 = por %p307, %p308
      %p310 = scmp.ne.s32.totalorder %s301, %s302
      %p311 = scmp.eq.s32.totalorder %s34, 0
      %p312 = por %p310, %p311
      %p313 = scmp.ne.s32.totalorder %s301, %s302
      %p314 = scmp.eq.s32.totalorder %s35, 1
      %p315 = por %p313, %p314
      %p317 = scmp.ne.s32.totalorder %s302, %s316
      %p318 = scmp.eq.s32.totalorder %s35, 0
      %p319 = por %p317, %p318
      %s321 = sadd.s32 %s320, 1
      %p324 = scmp.eq.s32.totalorder %s29, 1
      %p325 = scmp.ne.s32.totalorder %s320, %s322
      %p326 = scmp.eq.s32.totalorder %s29, 0
      %p327 = por %p325, %p326
      %p328 = scmp.ne.s32.totalorder %s320, %s322
      %p329 = scmp.eq.s32.totalorder %s34, 1
      %p330 = por %p328, %p329
      %p331 = scmp.ne.s32.totalorder %s322, %s323
      %p332 = scmp.eq.s32.totalorder %s34, 0
      %p333 = por %p331, %p332
      %p334 = scmp.ne.s32.totalorder %s322, %s323
      %p335 = scmp.eq.s32.totalorder %s35, 1
      %p336 = por %p334, %p335
      %p338 = scmp.ne.s32.totalorder %s323, %s337
      %p339 = scmp.eq.s32.totalorder %s35, 0
      %p340 = por %p338, %p339
      %s342 = sadd.s32 %s341, 1
      %p345 = scmp.eq.s32.totalorder %s29, 1
      %p346 = scmp.ne.s32.totalorder %s341, %s343
      %p347 = scmp.eq.s32.totalorder %s29, 0
      %p348 = por %p346, %p347
      %p349 = scmp.ne.s32.totalorder %s341, %s343
      %p350 = scmp.eq.s32.totalorder %s34, 1
      %p351 = por %p349, %p350
      %p352 = scmp.ne.s32.totalorder %s343, %s344
      %p353 = scmp.eq.s32.totalorder %s34, 0
      %p354 = por %p352, %p353
      %p355 = scmp.ne.s32.totalorder %s343, %s344
      %p356 = scmp.eq.s32.totalorder %s35, 1
      %p357 = por %p355, %p356
      %p359 = scmp.ne.s32.totalorder %s344, %s358
      %p360 = scmp.eq.s32.totalorder %s35, 0
      %p361 = por %p359, %p360
      %s363 = sadd.s32 %s362, 1
      %p366 = scmp.eq.s32.totalorder %s29, 1
      %p367 = scmp.ne.s32.totalorder %s362, %s364
      %p368 = scmp.eq.s32.totalorder %s29, 0
      %p369 = por %p367, %p368
      %p370 = scmp.ne.s32.totalorder %s362, %s364
      %p371 = scmp.eq.s32.totalorder %s34, 1
      %p372 = por %p370, %p371
      %p373 = scmp.ne.s32.totalorder %s364, %s365
      %p374 = scmp.eq.s32.totalorder %s34, 0
      %p375 = por %p373, %p374
      %p376 = scmp.ne.s32.totalorder %s364, %s365
      %p377 = scmp.eq.s32.totalorder %s35, 1
      %p378 = por %p376, %p377
      %p380 = scmp.ne.s32.totalorder %s365, %s379
      %p381 = scmp.eq.s32.totalorder %s35, 0
      %p382 = por %p380, %p381
      %s384 = sadd.s32 %s383, 1
      %p387 = scmp.eq.s32.totalorder %s29, 1
      %p388 = scmp.ne.s32.totalorder %s383, %s385
      %p389 = scmp.eq.s32.totalorder %s29, 0
      %p390 = por %p388, %p389
      %p391 = scmp.ne.s32.totalorder %s383, %s385
      %p392 = scmp.eq.s32.totalorder %s34, 1
      %p393 = por %p391, %p392
      %p394 = scmp.ne.s32.totalorder %s385, %s386
      %p395 = scmp.eq.s32.totalorder %s34, 0
      %p396 = por %p394, %p395
      %p397 = scmp.ne.s32.totalorder %s385, %s386
      %p398 = scmp.eq.s32.totalorder %s35, 1
      %p399 = por %p397, %p398
      %p401 = scmp.ne.s32.totalorder %s386, %s400
      %p402 = scmp.eq.s32.totalorder %s35, 0
      %p403 = por %p401, %p402
      %s405 = sadd.s32 %s404, 1
      %p408 = scmp.eq.s32.totalorder %s29, 1
      %p409 = scmp.ne.s32.totalorder %s404, %s406
      %p410 = scmp.eq.s32.totalorder %s29, 0
      %p411 = por %p409, %p410
      %p412 = scmp.ne.s32.totalorder %s404, %s406
      %p413 = scmp.eq.s32.totalorder %s34, 1
      %p414 = por %p412, %p413
      %p415 = scmp.ne.s32.totalorder %s406, %s407
      %p416 = scmp.eq.s32.totalorder %s34, 0
      %p417 = por %p415, %p416
      %p418 = scmp.ne.s32.totalorder %s406, %s407
      %p419 = scmp.eq.s32.totalorder %s35, 1
      %p420 = por %p418, %p419
      %p422 = scmp.ne.s32.totalorder %s407, %s421
      %p423 = scmp.eq.s32.totalorder %s35, 0
      %p424 = por %p422, %p423
      %s426 = sadd.s32 %s425, 1
      %p429 = scmp.eq.s32.totalorder %s29, 1
      %p430 = scmp.ne.s32.totalorder %s425, %s427
      %p431 = scmp.eq.s32.totalorder %s29, 0
      %p432 = por %p430, %p431
      %p433 = scmp.ne.s32.totalorder %s425, %s427
      %p434 = scmp.eq.s32.totalorder %s34, 1
      %p435 = por %p433, %p434
      %p436 = scmp.ne.s32.totalorder %s427, %s428
      %p437 = scmp.eq.s32.totalorder %s34, 0
      %p438 = por %p436, %p437
      %p439 = scmp.ne.s32.totalorder %s427, %s428
      %p440 = scmp.eq.s32.totalorder %s35, 1
      %p441 = por %p439, %p440
      %p443 = scmp.ne.s32.totalorder %s428, %s442
      %p444 = scmp.eq.s32.totalorder %s35, 0
      %p445 = por %p443, %p444
      %s447 = sadd.s32 %s446, 1
      %p450 = scmp.eq.s32.totalorder %s29, 1
      %p451 = scmp.ne.s32.totalorder %s446, %s448
      %p452 = scmp.eq.s32.totalorder %s29, 0
      %p453 = por %p451, %p452
      %p454 = scmp.ne.s32.totalorder %s446, %s448
      %p455 = scmp.eq.s32.totalorder %s34, 1
      %p456 = por %p454, %p455
      %p457 = scmp.ne.s32.totalorder %s448, %s449
      %p458 = scmp.eq.s32.totalorder %s34, 0
      %p459 = por %p457, %p458
      %p460 = scmp.ne.s32.totalorder %s448, %s449
      %p461 = scmp.eq.s32.totalorder %s35, 1
      %p462 = por %p460, %p461
      %p464 = scmp.ne.s32.totalorder %s449, %s463
      %p465 = scmp.eq.s32.totalorder %s35, 0
      %p466 = por %p464, %p465
      %s467 = ssub.s32 %s29, %s36
      %p468 = scmp.eq.s32.totalorder %s467, 0
      %s470 = sadd.s32 %s469, 1
      %s471 = scalar_select %p468, %s469, %s470
      %p474 = pneg %p468
      %p475 = scmp.eq.s32.totalorder %s29, 1
      %p476 = por %p474, %p475
      %p477 = scmp.ne.s32.totalorder %s469, %s472
      %p478 = scmp.eq.s32.totalorder %s29, 0
      %p479 = por %p477, %p478
      %p480 = scmp.ne.s32.totalorder %s469, %s472
      %p481 = scmp.eq.s32.totalorder %s34, 1
      %p482 = por %p480, %p481
      %p483 = scmp.ne.s32.totalorder %s472, %s473
      %p484 = scmp.eq.s32.totalorder %s34, 0
      %p485 = por %p483, %p484
      %p486 = scmp.ne.s32.totalorder %s472, %s473
      %p487 = scmp.eq.s32.totalorder %s35, 1
      %p488 = por %p486, %p487
      %p490 = scmp.ne.s32.totalorder %s473, %s489
      %p491 = scmp.eq.s32.totalorder %s35, 0
      %p492 = por %p490, %p491
      %p493 = scmp.le.s32.totalorder 1, %s29
      %p494 = scmp.lt.s32.totalorder %s29, 3
      %p495 = pnand %p493, %p494
      %p496 = pneg %p495
      // Predicated region
      $region9: #{decoder_layer_forward.1} parent=5 // pred_check
        _
      $region10: #{decoder_layer_forward.1} parent=5 // pred_check_branch
        %498 = sbr.rel (%p495) target = $region12
      $region11: #{decoder_layer_forward.1} parent=5 // pred_region
        %s499 = ssub.s32 %s29, 1
        // Predicated region
        $region13: #{decoder_layer_forward.1} parent=11 // pred_check
          %p500 = pneg %p102
        $region14: #{decoder_layer_forward.1} parent=11 // pred_check_branch
          %502 = sbr.rel (%p500) target = $region16
        $region15: #{decoder_layer_forward.1} parent=11 // pred_region
          _
        $region16: #{decoder_layer_forward.1} parent=11 // pred_fallthru
          _
        // Predicated region
        $region17: #{decoder_layer_forward.1} parent=11 // pred_check
          %p503 = pneg %p123
        $region18: #{decoder_layer_forward.1} parent=11 // pred_check_branch
          %505 = sbr.rel (%p503) target = $region20
        $region19: #{decoder_layer_forward.1} parent=11 // pred_region
          _
        $region20: #{decoder_layer_forward.1} parent=11 // pred_fallthru
          _
        // Predicated region
        $region21: #{decoder_layer_forward.1} parent=11 // pred_check
          %p506 = pneg %p144
        $region22: #{decoder_layer_forward.1} parent=11 // pred_check_branch
          %508 = sbr.rel (%p506) target = $region24
        $region23: #{decoder_layer_forward.1} parent=11 // pred_region
          _
        $region24: #{decoder_layer_forward.1} parent=11 // pred_fallthru
          _
        // Predicated region
        $region25: #{decoder_layer_forward.1} parent=11 // pred_check
          %p509 = pneg %p165
        $region26: #{decoder_layer_forward.1} parent=11 // pred_check_branch
          %511 = sbr.rel (%p509) target = $region28
        $region27: #{decoder_layer_forward.1} parent=11 // pred_region
          _
        $region28: #{decoder_layer_forward.1} parent=11 // pred_fallthru
          _
        // Predicated region
        $region29: #{decoder_layer_forward.1} parent=11 // pred_check
          %p512 = pneg %p186
        $region30: #{decoder_layer_forward.1} parent=11 // pred_check_branch
          %514 = sbr.rel (%p512) target = $region32
        $region31: #{decoder_layer_forward.1} parent=11 // pred_region
          _
        $region32: #{decoder_layer_forward.1} parent=11 // pred_fallthru
          _
        // Predicated region
        $region33: #{decoder_layer_forward.1} parent=11 // pred_check
          %p515 = pneg %p207
        $region34: #{decoder_layer_forward.1} parent=11 // pred_check_branch
          %517 = sbr.rel (%p515) target = $region36
        $region35: #{decoder_layer_forward.1} parent=11 // pred_region
          _
        $region36: #{decoder_layer_forward.1} parent=11 // pred_fallthru
          _
        // Predicated region
        $region37: #{decoder_layer_forward.1} parent=11 // pred_check
          %p518 = pneg %p228
        $region38: #{decoder_layer_forward.1} parent=11 // pred_check_branch
          %520 = sbr.rel (%p518) target = $region40
        $region39: #{decoder_layer_forward.1} parent=11 // pred_region
          _
        $region40: #{decoder_layer_forward.1} parent=11 // pred_fallthru
          _
        // Predicated region
        $region41: #{decoder_layer_forward.1} parent=11 // pred_check
          %p521 = pneg %p249
        $region42: #{decoder_layer_forward.1} parent=11 // pred_check_branch
          %523 = sbr.rel (%p521) target = $region44
        $region43: #{decoder_layer_forward.1} parent=11 // pred_region
          _
        $region44: #{decoder_layer_forward.1} parent=11 // pred_fallthru
          _
        // Predicated region
        $region45: #{decoder_layer_forward.1} parent=11 // pred_check
          %p524 = pneg %p270
        $region46: #{decoder_layer_forward.1} parent=11 // pred_check_branch
          %526 = sbr.rel (%p524) target = $region48
        $region47: #{decoder_layer_forward.1} parent=11 // pred_region
          _
        $region48: #{decoder_layer_forward.1} parent=11 // pred_fallthru
          _
        // Predicated region
        $region49: #{decoder_layer_forward.1} parent=11 // pred_check
          %p527 = pneg %p291
        $region50: #{decoder_layer_forward.1} parent=11 // pred_check_branch
          %529 = sbr.rel (%p527) target = $region52
        $region51: #{decoder_layer_forward.1} parent=11 // pred_region
          _
        $region52: #{decoder_layer_forward.1} parent=11 // pred_fallthru
          _
        // Predicated region
        $region53: #{decoder_layer_forward.1} parent=11 // pred_check
          %p530 = pneg %p312
        $region54: #{decoder_layer_forward.1} parent=11 // pred_check_branch
          %532 = sbr.rel (%p530) target = $region56
        $region55: #{decoder_layer_forward.1} parent=11 // pred_region
          _
        $region56: #{decoder_layer_forward.1} parent=11 // pred_fallthru
          _
        // Predicated region
        $region57: #{decoder_layer_forward.1} parent=11 // pred_check
          %p533 = pneg %p333
        $region58: #{decoder_layer_forward.1} parent=11 // pred_check_branch
          %535 = sbr.rel (%p533) target = $region60
        $region59: #{decoder_layer_forward.1} parent=11 // pred_region
          _
        $region60: #{decoder_layer_forward.1} parent=11 // pred_fallthru
          _
        // Predicated region
        $region61: #{decoder_layer_forward.1} parent=11 // pred_check
          %p536 = pneg %p354
        $region62: #{decoder_layer_forward.1} parent=11 // pred_check_branch
          %538 = sbr.rel (%p536) target = $region64
        $region63: #{decoder_layer_forward.1} parent=11 // pred_region
          _
        $region64: #{decoder_layer_forward.1} parent=11 // pred_fallthru
          _
        // Predicated region
        $region65: #{decoder_layer_forward.1} parent=11 // pred_check
          %p539 = pneg %p375
        $region66: #{decoder_layer_forward.1} parent=11 // pred_check_branch
          %541 = sbr.rel (%p539) target = $region68
        $region67: #{decoder_layer_forward.1} parent=11 // pred_region
          _
        $region68: #{decoder_layer_forward.1} parent=11 // pred_fallthru
          _
        // Predicated region
        $region69: #{decoder_layer_forward.1} parent=11 // pred_check
          %p542 = pneg %p396
        $region70: #{decoder_layer_forward.1} parent=11 // pred_check_branch
          %544 = sbr.rel (%p542) target = $region72
        $region71: #{decoder_layer_forward.1} parent=11 // pred_region
          _
        $region72: #{decoder_layer_forward.1} parent=11 // pred_fallthru
          _
        // Predicated region
        $region73: #{decoder_layer_forward.1} parent=11 // pred_check
          %p545 = pneg %p417
        $region74: #{decoder_layer_forward.1} parent=11 // pred_check_branch
          %547 = sbr.rel (%p545) target = $region76
        $region75: #{decoder_layer_forward.1} parent=11 // pred_region
          _
        $region76: #{decoder_layer_forward.1} parent=11 // pred_fallthru
          _
        // Predicated region
        $region77: #{decoder_layer_forward.1} parent=11 // pred_check
          %p548 = pneg %p438
        $region78: #{decoder_layer_forward.1} parent=11 // pred_check_branch
          %550 = sbr.rel (%p548) target = $region80
        $region79: #{decoder_layer_forward.1} parent=11 // pred_region
          _
        $region80: #{decoder_layer_forward.1} parent=11 // pred_fallthru
          _
        // Predicated region
        $region81: #{decoder_layer_forward.1} parent=11 // pred_check
          %p551 = pneg %p459
        $region82: #{decoder_layer_forward.1} parent=11 // pred_check_branch
          %553 = sbr.rel (%p551) target = $region84
        $region83: #{decoder_layer_forward.1} parent=11 // pred_region
          _
        $region84: #{decoder_layer_forward.1} parent=11 // pred_fallthru
          _
      $region12: #{decoder_layer_forward.1} parent=5 // pred_fallthru
        _
      %p554 = scmp.lt.s32.totalorder %s29, 2
      // Predicated region
      $region85: #{decoder_layer_forward.1} parent=5 // pred_check
        %p555 = pneg %p554
      $region86: #{decoder_layer_forward.1} parent=5 // pred_check_branch
        %557 = sbr.rel (%p555) target = $region88
      $region87: #{decoder_layer_forward.1} parent=5 // pred_region
        // Predicated region
        $region89: #{decoder_layer_forward.1} parent=87 // pred_check
          %p558 = pneg %p49
        $region90: #{decoder_layer_forward.1} parent=87 // pred_check_branch
          %560 = sbr.rel (%p558) target = $region92
        $region91: #{decoder_layer_forward.1} parent=87 // pred_region
          %p561 = scmp.lt.s32.totalorder %s29, 1
          %s562 = scalar_select %p561, %s29, 1
          %s563 = smul.addr %s562, 8
          %s564 = scalar_lea.vmem %s0, %s563
        $region92: #{decoder_layer_forward.1} parent=87 // pred_fallthru
          _
        // Predicated region
        $region93: #{decoder_layer_forward.1} parent=87 // pred_check
          %p565 = pneg %p75
        $region94: #{decoder_layer_forward.1} parent=87 // pred_check_branch
          %567 = sbr.rel (%p565) target = $region96
        $region95: #{decoder_layer_forward.1} parent=87 // pred_region
          %p568 = scmp.lt.s32.totalorder %s29, 1
          %s569 = scalar_select %p568, %s29, 1
          %s570 = smul.addr %s569, 8
          %s571 = scalar_lea.vmem %s1, %s570
        $region96: #{decoder_layer_forward.1} parent=87 // pred_fallthru
          _
      $region88: #{decoder_layer_forward.1} parent=5 // pred_fallthru
        _
      %p572 = scmp.le.s32.totalorder 1, %s29
      %p573 = scmp.lt.s32.totalorder %s29, 3
      %p574 = pnand %p572, %p573
      %p575 = pneg %p574
      // Predicated region
      $region97: #{decoder_layer_forward.1} parent=5 // pred_check
        _
      $region98: #{decoder_layer_forward.1} parent=5 // pred_check_branch
        %577 = sbr.rel (%p574) target = $region100
      $region99: #{decoder_layer_forward.1} parent=5 // pred_region
        %s578 = ssub.s32 %s29, 1
        %p579 = scmp.lt.s32.totalorder %s34, 1
        %s580 = scalar_select %p579, %s34, 1
        %s581 = smul.addr %s580, 8
        %s582 = scalar_lea.vmem %s0, %s581
        %p583 = pneg %p55
        %p584 = pneg %p52
        %p585 = scmp.lt.s32.totalorder %s34, 1
        %s586 = scalar_select %p585, %s34, 1
        %s587 = smul.addr %s586, 8
        %s588 = scalar_lea.vmem %s1, %s587
        %p589 = pneg %p81
        %p590 = pneg %p78
        %p591 = pneg %p102
        %p592 = pneg %p99
        %p593 = pneg %p123
        %p594 = pneg %p120
        %p595 = pneg %p144
        %p596 = pneg %p141
        %p597 = pneg %p165
        %p598 = pneg %p162
        %p599 = pneg %p186
        %p600 = pneg %p183
        %p601 = pneg %p207
        %p602 = pneg %p204
        %p603 = pneg %p228
        %p604 = pneg %p225
        %p605 = pneg %p249
        %p606 = pneg %p246
        %p607 = pneg %p270
        %p608 = pneg %p267
        %p609 = pneg %p291
        %p610 = pneg %p288
        %p611 = pneg %p312
        %p612 = pneg %p309
        %p613 = pneg %p333
        %p614 = pneg %p330
        %p615 = pneg %p354
        %p616 = pneg %p351
        %p617 = pneg %p375
        %p618 = pneg %p372
        %p619 = pneg %p396
        %p620 = pneg %p393
        %p621 = pneg %p417
        %p622 = pneg %p414
        %p623 = pneg %p438
        %p624 = pneg %p435
        %p625 = pneg %p459
        %p626 = pneg %p456
        %p627 = pneg %p485
        %p628 = pneg %p482
        %s629 = sand.u32 %s472, 1
        %s630 = scalar_lea.sflag [#allocation3], %s629
        %s631 = sand.u32 %s472, 1
        %s632 = smul.addr %s631, 8
        %s633 = scalar_lea.vmem [#allocation2], %s632
        %p634 = scmp.lt.s32.totalorder %s34, 1
        %s635 = scalar_select %p634, %s34, 1
        %s636 = smul.addr %s635, 8
        %s637 = scalar_lea.vmem %s0, %s636
        %p638 = scmp.lt.s32.totalorder %s34, 1
        %s639 = scalar_select %p638, %s34, 1
        %s640 = smul.addr %s639, 8
        %s641 = scalar_lea.vmem %s1, %s640
        %v642 = vld [vmem:[%s637] sm:$0xff]
        %v643 = vld [vmem:[%s641] sm:$0xff]
        %v644 = vld [vmem:[%s2] sm:$0xff]
        %v645 = vld [vmem:[%s2 + $0x8] sm:$0xff]
        %v646 = vld [vmem:[%s2 + $0x10] sm:$0xff]
        %v647 = vld [vmem:[%s2 + $0x18] sm:$0xff]
        %v648 = vld [vmem:[%s3] sm:$0x1]
        %v650 = vlaneseq
        %v651 = vshrl.u32 %v650, 7
        %v652 = vsub.s32 0, %v651
        %v653 = vrot.slane %v648, %v652
        %vm655 = vcmask 261120
        %v657 = vsel %vm655, %v642, 0
        %659 = vmatprep.subr.mxu0 0.0
        %660 = vmatpush1.msra.mxu0 0.0
        %661 = vmatprep.subr.mxu0 0.0
        %662 = vmatpush1.msra.mxu0 0.0
        %663 = vmatprep.subr.mxu0 0.0
        %664 = vmatpush1.msra.mxu0 0.0
        %665 = vmatprep.subr.mxu0 0.0
        %666 = vmatpush1.msra.mxu0 0.0
        %667 = vmatprep.subr.mxu0 0.0
        %668 = vmatpush1.msra.mxu0 0.0
        %669 = vmatprep.subr.mxu0 0.0
        %670 = vmatpush1.msra.mxu0 0.0
        %671 = vmatprep.subr.mxu0 0.0
        %672 = vmatpush1.msra.mxu0 0.0
        %673 = vmatprep.subr.mxu0 0.0
        %674 = vmatpush1.msra.mxu0 0.0
        %675 = vmatprep.subr.mxu0 0.0
        %676 = vmatpush1.msra.mxu0 0.0
        %677 = vmatprep.subr.mxu0 0.0
        %678 = vmatpush1.msra.mxu0 0.0
        %679 = vmatprep.subr.mxu0 0.0
        %680 = vmatpush1.msra.mxu0 0.0
        %681 = vmatprep.subr.mxu0 0.0
        %682 = vmatpush1.msra.mxu0 0.0
        %683 = vmatprep.subr.mxu0 0.0
        %684 = vmatpush1.msra.mxu0 %v647
        %685 = vmatprep.subr.mxu0 0.0
        %686 = vmatpush1.msra.mxu0 %v646
        %687 = vmatprep.subr.mxu0 0.0
        %688 = vmatpush1.msra.mxu0 %v645
        %689 = vmatprep.subr.mxu0 0.0
        %690 = vmatpush1.msra.mxu0 %v644
        %691 = vmatprep.subr.mxu0 0.0
        %692 = vmatpush2.msra.mxu0 0.0
        %693 = vmatprep.subr.mxu0 0.0
        %694 = vmatpush2.msra.mxu0 0.0
        %695 = vmatprep.subr.mxu0 0.0
        %696 = vmatpush2.msra.mxu0 0.0
        %697 = vmatprep.subr.mxu0 0.0
        %698 = vmatpush2.msra.mxu0 0.0
        %699 = vmatprep.subr.mxu0 0.0
        %700 = vmatpush2.msra.mxu0 0.0
        %701 = vmatprep.subr.mxu0 0.0
        %702 = vmatpush2.msra.mxu0 0.0
        %703 = vmatprep.subr.mxu0 0.0
        %704 = vmatpush2.msra.mxu0 0.0
        %705 = vmatprep.subr.mxu0 0.0
        %706 = vmatpush2.msra.mxu0 0.0
        %707 = vmatprep.subr.mxu0 0.0
        %708 = vmatpush2.msra.mxu0 0.0
        %709 = vmatprep.subr.mxu0 0.0
        %710 = vmatpush2.msra.mxu0 0.0
        %711 = vmatprep.subr.mxu0 0.0
        %712 = vmatpush2.msra.mxu0 0.0
        %713 = vmatprep.subr.mxu0 0.0
        %714 = vmatpush2.msra.mxu0 0.0
        %715 = vmatprep.subr.mxu0 0.0
        %716 = vmatpush2.msra.mxu0 0.0
        %717 = vmatprep.subr.mxu0 0.0
        %718 = vmatpush2.msra.mxu0 0.0
        %719 = vmatprep.subr.mxu0 0.0
        %720 = vmatpush2.msra.mxu0 0.0
        %721 = vmatprep.subr.mxu0 0.0
        %722 = vmatpush2.msra.mxu0 0.0
        %723 = vmatprep.mubr.f32.mxu0 0.0
        %724 = vmatmul.mubr.f32.gmra.mxu0 %v657
        %v725 = vpop.f32.mrf.mxu0
        %v726 = vadd.f32 %v653, %v725
        %v727 = vpop.f32.mrf.mxu0
        %728 = vdwg.mxu0
        %s729 = scalar_lea.vmem %s2, 128
        %v730 = vld [vmem:[%s729] sm:$0xff]
        %v731 = vld [vmem:[%s729 + $0x8] sm:$0xff]
        %v732 = vld [vmem:[%s729 + $0x10] sm:$0xff]
        %v733 = vld [vmem:[%s729 + $0x18] sm:$0xff]
        %s734 = scalar_lea.vmem %s3, 4
        %v735 = vld [vmem:[%s734] sm:$0x1]
        %v737 = vlaneseq
        %v738 = vshrl.u32 %v737, 7
        %v739 = vsub.s32 0, %v738
        %v740 = vrot.slane %v735, %v739
        %742 = vmatprep.subr.mxu0 0.0
        %743 = vmatpush1.msra.mxu0 0.0
        %744 = vmatprep.subr.mxu0 0.0
        %745 = vmatpush1.msra.mxu0 0.0
        %746 = vmatprep.subr.mxu0 0.0
        %747 = vmatpush1.msra.mxu0 0.0
        %748 = vmatprep.subr.mxu0 0.0
        %749 = vmatpush1.msra.mxu0 0.0
        %750 = vmatprep.subr.mxu0 0.0
        %751 = vmatpush1.msra.mxu0 0.0
        %752 = vmatprep.subr.mxu0 0.0
        %753 = vmatpush1.msra.mxu0 0.0
        %754 = vmatprep.subr.mxu0 0.0
        %755 = vmatpush1.msra.mxu0 0.0
        %756 = vmatprep.subr.mxu0 0.0
        %757 = vmatpush1.msra.mxu0 0.0
        %758 = vmatprep.subr.mxu0 0.0
        %759 = vmatpush1.msra.mxu0 0.0
        %760 = vmatprep.subr.mxu0 0.0
        %761 = vmatpush1.msra.mxu0 0.0
        %762 = vmatprep.subr.mxu0 0.0
        %763 = vmatpush1.msra.mxu0 0.0
        %764 = vmatprep.subr.mxu0 0.0
        %765 = vmatpush1.msra.mxu0 0.0
        %766 = vmatprep.subr.mxu0 0.0
        %767 = vmatpush1.msra.mxu0 %v733
        %768 = vmatprep.subr.mxu0 0.0
        %769 = vmatpush1.msra.mxu0 %v732
        %770 = vmatprep.subr.mxu0 0.0
        %771 = vmatpush1.msra.mxu0 %v731
        %772 = vmatprep.subr.mxu0 0.0
        %773 = vmatpush1.msra.mxu0 %v730
        %774 = vmatprep.subr.mxu0 0.0
        %775 = vmatpush2.msra.mxu0 0.0
        %776 = vmatprep.subr.mxu0 0.0
        %777 = vmatpush2.msra.mxu0 0.0
        %778 = vmatprep.subr.mxu0 0.0
        %779 = vmatpush2.msra.mxu0 0.0
        %780 = vmatprep.subr.mxu0 0.0
        %781 = vmatpush2.msra.mxu0 0.0
        %782 = vmatprep.subr.mxu0 0.0
        %783 = vmatpush2.msra.mxu0 0.0
        %784 = vmatprep.subr.mxu0 0.0
        %785 = vmatpush2.msra.mxu0 0.0
        %786 = vmatprep.subr.mxu0 0.0
        %787 = vmatpush2.msra.mxu0 0.0
        %788 = vmatprep.subr.mxu0 0.0
        %789 = vmatpush2.msra.mxu0 0.0
        %790 = vmatprep.subr.mxu0 0.0
        %791 = vmatpush2.msra.mxu0 0.0
        %792 = vmatprep.subr.mxu0 0.0
        %793 = vmatpush2.msra.mxu0 0.0
        %794 = vmatprep.subr.mxu0 0.0
        %795 = vmatpush2.msra.mxu0 0.0
        %796 = vmatprep.subr.mxu0 0.0
        %797 = vmatpush2.msra.mxu0 0.0
        %798 = vmatprep.subr.mxu0 0.0
        %799 = vmatpush2.msra.mxu0 0.0
        %800 = vmatprep.subr.mxu0 0.0
        %801 = vmatpush2.msra.mxu0 0.0
        %802 = vmatprep.subr.mxu0 0.0
        %803 = vmatpush2.msra.mxu0 0.0
        %804 = vmatprep.subr.mxu0 0.0
        %805 = vmatpush2.msra.mxu0 0.0
        %806 = vmatprep.mubr.f32.mxu0 0.0
        %807 = vmatmul.mubr.f32.gmra.mxu0 %v657
        %v808 = vpop.f32.mrf.mxu0
        %v809 = vadd.f32 %v740, %v808
        %v810 = vpop.f32.mrf.mxu0
        %811 = vdwg.mxu0
        %s812 = scalar_lea.vmem %s2, 256
        %v813 = vld [vmem:[%s812] sm:$0xff]
        %v814 = vld [vmem:[%s812 + $0x8] sm:$0xff]
        %v815 = vld [vmem:[%s812 + $0x10] sm:$0xff]
        %v816 = vld [vmem:[%s812 + $0x18] sm:$0xff]
        %s817 = scalar_lea.vmem %s3, 8
        %v818 = vld [vmem:[%s817] sm:$0x1]
        %v820 = vlaneseq
        %v821 = vshrl.u32 %v820, 7
        %v822 = vsub.s32 0, %v821
        %v823 = vrot.slane %v818, %v822
        %825 = vmatprep.subr.mxu0 0.0
        %826 = vmatpush1.msra.mxu0 0.0
        %827 = vmatprep.subr.mxu0 0.0
        %828 = vmatpush1.msra.mxu0 0.0
        %829 = vmatprep.subr.mxu0 0.0
        %830 = vmatpush1.msra.mxu0 0.0
        %831 = vmatprep.subr.mxu0 0.0
        %832 = vmatpush1.msra.mxu0 0.0
        %833 = vmatprep.subr.mxu0 0.0
        %834 = vmatpush1.msra.mxu0 0.0
        %835 = vmatprep.subr.mxu0 0.0
        %836 = vmatpush1.msra.mxu0 0.0
        %837 = vmatprep.subr.mxu0 0.0
        %838 = vmatpush1.msra.mxu0 0.0
        %839 = vmatprep.subr.mxu0 0.0
        %840 = vmatpush1.msra.mxu0 0.0
        %841 = vmatprep.subr.mxu0 0.0
        %842 = vmatpush1.msra.mxu0 0.0
        %843 = vmatprep.subr.mxu0 0.0
        %844 = vmatpush1.msra.mxu0 0.0
        %845 = vmatprep.subr.mxu0 0.0
        %846 = vmatpush1.msra.mxu0 0.0
        %847 = vmatprep.subr.mxu0 0.0
        %848 = vmatpush1.msra.mxu0 0.0
        %849 = vmatprep.subr.mxu0 0.0
        %850 = vmatpush1.msra.mxu0 %v816
        %851 = vmatprep.subr.mxu0 0.0
        %852 = vmatpush1.msra.mxu0 %v815
        %853 = vmatprep.subr.mxu0 0.0
        %854 = vmatpush1.msra.mxu0 %v814
        %855 = vmatprep.subr.mxu0 0.0
        %856 = vmatpush1.msra.mxu0 %v813
        %857 = vmatprep.subr.mxu0 0.0
        %858 = vmatpush2.msra.mxu0 0.0
        %859 = vmatprep.subr.mxu0 0.0
        %860 = vmatpush2.msra.mxu0 0.0
        %861 = vmatprep.subr.mxu0 0.0
        %862 = vmatpush2.msra.mxu0 0.0
        %863 = vmatprep.subr.mxu0 0.0
        %864 = vmatpush2.msra.mxu0 0.0
        %865 = vmatprep.subr.mxu0 0.0
        %866 = vmatpush2.msra.mxu0 0.0
        %867 = vmatprep.subr.mxu0 0.0
        %868 = vmatpush2.msra.mxu0 0.0
        %869 = vmatprep.subr.mxu0 0.0
        %870 = vmatpush2.msra.mxu0 0.0
        %871 = vmatprep.subr.mxu0 0.0
        %872 = vmatpush2.msra.mxu0 0.0
        %873 = vmatprep.subr.mxu0 0.0
        %874 = vmatpush2.msra.mxu0 0.0
        %875 = vmatprep.subr.mxu0 0.0
        %876 = vmatpush2.msra.mxu0 0.0
        %877 = vmatprep.subr.mxu0 0.0
        %878 = vmatpush2.msra.mxu0 0.0
        %879 = vmatprep.subr.mxu0 0.0
        %880 = vmatpush2.msra.mxu0 0.0
        %881 = vmatprep.subr.mxu0 0.0
        %882 = vmatpush2.msra.mxu0 0.0
        %883 = vmatprep.subr.mxu0 0.0
        %884 = vmatpush2.msra.mxu0 0.0
        %885 = vmatprep.subr.mxu0 0.0
        %886 = vmatpush2.msra.mxu0 0.0
        %887 = vmatprep.subr.mxu0 0.0
        %888 = vmatpush2.msra.mxu0 0.0
        %889 = vmatprep.mubr.f32.mxu0 0.0
        %890 = vmatmul.mubr.f32.gmra.mxu0 %v657
        %v891 = vpop.f32.mrf.mxu0
        %v892 = vadd.f32 %v823, %v891
        %v893 = vpop.f32.mrf.mxu0
        %894 = vdwg.mxu0
        %v895 = vmul.f32 %v726, 0.35355338
        %vm896 = vcmask 64512
        %v898 = vsel %vm896, %v895, 0
        %v901 = vsel %vm896, %v809, 0
        %903 = vmatprep.subr.mxu0 0.0
        %904 = vmatpush1.xpose.msra.mxu0 0.0
        %905 = vmatprep.subr.mxu0 0.0
        %906 = vmatpush1.xpose.msra.mxu0 0.0
        %907 = vmatprep.subr.mxu0 0.0
        %908 = vmatpush1.xpose.msra.mxu0 0.0
        %909 = vmatprep.subr.mxu0 0.0
        %910 = vmatpush1.xpose.msra.mxu0 0.0
        %911 = vmatprep.subr.mxu0 0.0
        %912 = vmatpush1.xpose.msra.mxu0 0.0
        %913 = vmatprep.subr.mxu0 0.0
        %914 = vmatpush1.xpose.msra.mxu0 0.0
        %915 = vmatprep.subr.mxu0 0.0
        %916 = vmatpush1.xpose.msra.mxu0 0.0
        %917 = vmatprep.subr.mxu0 0.0
        %918 = vmatpush1.xpose.msra.mxu0 0.0
        %919 = vmatprep.subr.mxu0 0.0
        %920 = vmatpush1.xpose.msra.mxu0 0.0
        %921 = vmatprep.subr.mxu0 0.0
        %922 = vmatpush1.xpose.msra.mxu0 0.0
        %923 = vmatprep.subr.mxu0 0.0
        %924 = vmatpush1.xpose.msra.mxu0 0.0
        %925 = vmatprep.subr.mxu0 0.0
        %926 = vmatpush1.xpose.msra.mxu0 0.0
        %927 = vmatprep.subr.mxu0 0.0
        %928 = vmatpush1.xpose.msra.mxu0 0.0
        %929 = vmatprep.subr.mxu0 0.0
        %930 = vmatpush1.xpose.msra.mxu0 0.0
        %931 = vmatprep.subr.mxu0 0.0
        %932 = vmatpush1.xpose.msra.mxu0 0.0
        %933 = vmatprep.subr.mxu0 0.0
        %934 = vmatpush1.xpose.msra.mxu0 %v901
        %935 = vmatprep.subr.mxu0 0.0
        %936 = vmatpush2.xpose.msra.mxu0 0.0
        %937 = vmatprep.subr.mxu0 0.0
        %938 = vmatpush2.xpose.msra.mxu0 0.0
        %939 = vmatprep.subr.mxu0 0.0
        %940 = vmatpush2.xpose.msra.mxu0 0.0
        %941 = vmatprep.subr.mxu0 0.0
        %942 = vmatpush2.xpose.msra.mxu0 0.0
        %943 = vmatprep.subr.mxu0 0.0
        %944 = vmatpush2.xpose.msra.mxu0 0.0
        %945 = vmatprep.subr.mxu0 0.0
        %946 = vmatpush2.xpose.msra.mxu0 0.0
        %947 = vmatprep.subr.mxu0 0.0
        %948 = vmatpush2.xpose.msra.mxu0 0.0
        %949 = vmatprep.subr.mxu0 0.0
        %950 = vmatpush2.xpose.msra.mxu0 0.0
        %951 = vmatprep.subr.mxu0 0.0
        %952 = vmatpush2.xpose.msra.mxu0 0.0
        %953 = vmatprep.subr.mxu0 0.0
        %954 = vmatpush2.xpose.msra.mxu0 0.0
        %955 = vmatprep.subr.mxu0 0.0
        %956 = vmatpush2.xpose.msra.mxu0 0.0
        %957 = vmatprep.subr.mxu0 0.0
        %958 = vmatpush2.xpose.msra.mxu0 0.0
        %959 = vmatprep.subr.mxu0 0.0
        %960 = vmatpush2.xpose.msra.mxu0 0.0
        %961 = vmatprep.subr.mxu0 0.0
        %962 = vmatpush2.xpose.msra.mxu0 0.0
        %963 = vmatprep.subr.mxu0 0.0
        %964 = vmatpush2.xpose.msra.mxu0 0.0
        %965 = vmatprep.subr.mxu0 0.0
        %966 = vmatpush2.xpose.msra.mxu0 0.0
        %967 = vmatprep.mubr.f32.mxu0 0.0
        %968 = vmatmul.mubr.f32.gmra.mxu0 %v898
        %v969 = vpop.f32.mrf.mxu0
        %v970 = vadd.f32 0.0, %v969
        %v971 = vpop.f32.mrf.mxu0
        %972 = vdwg.mxu0
        %v973 = vsel %vm896, %v970, -inf
        %974 = vmax.xlane.f32.xlu0 %v973
        %v975 = vpop.xlane.xlu0 %974
        %v976 = vsub.f32 %v970, %v975
        %v977 = vmul.f32 %v976, 1.442695
        %v978 = vpow.pop %v977
        %v979 = vsel %vm896, %v978, 0.0
        %980 = vadd.xlane.f32.xlu0 %v979
        %v981 = vpop.xlane.xlu0 %980
        %v982 = vrcp.pop %v981
        %v983 = vmul.f32 %v978, %v982
        %v985 = vsel %vm896, %v983, 0
        %987 = vmatprep.subr.mxu0 0.0
        %988 = vmatpush1.msra.mxu0 0.0
        %989 = vmatprep.subr.mxu0 0.0
        %990 = vmatpush1.msra.mxu0 0.0
        %991 = vmatprep.subr.mxu0 0.0
        %992 = vmatpush1.msra.mxu0 0.0
        %993 = vmatprep.subr.mxu0 0.0
        %994 = vmatpush1.msra.mxu0 0.0
        %995 = vmatprep.subr.mxu0 0.0
        %996 = vmatpush1.msra.mxu0 0.0
        %997 = vmatprep.subr.mxu0 0.0
        %998 = vmatpush1.msra.mxu0 0.0
        %999 = vmatprep.subr.mxu0 0.0
        %1000 = vmatpush1.msra.mxu0 0.0
        %1001 = vmatprep.subr.mxu0 0.0
        %1002 = vmatpush1.msra.mxu0 0.0
        %1003 = vmatprep.subr.mxu0 0.0
        %1004 = vmatpush1.msra.mxu0 0.0
        %1005 = vmatprep.subr.mxu0 0.0
        %1006 = vmatpush1.msra.mxu0 0.0
        %1007 = vmatprep.subr.mxu0 0.0
        %1008 = vmatpush1.msra.mxu0 0.0
        %1009 = vmatprep.subr.mxu0 0.0
        %1010 = vmatpush1.msra.mxu0 0.0
        %1011 = vmatprep.subr.mxu0 0.0
        %1012 = vmatpush1.msra.mxu0 0.0
        %1013 = vmatprep.subr.mxu0 0.0
        %1014 = vmatpush1.msra.mxu0 0.0
        %1015 = vmatprep.subr.mxu0 0.0
        %1016 = vmatpush1.msra.mxu0 0.0
        %1017 = vmatprep.subr.mxu0 0.0
        %1018 = vmatpush1.msra.mxu0 %v892
        %1019 = vmatprep.subr.mxu0 0.0
        %1020 = vmatpush2.msra.mxu0 0.0
        %1021 = vmatprep.subr.mxu0 0.0
        %1022 = vmatpush2.msra.mxu0 0.0
        %1023 = vmatprep.subr.mxu0 0.0
        %1024 = vmatpush2.msra.mxu0 0.0
        %1025 = vmatprep.subr.mxu0 0.0
        %1026 = vmatpush2.msra.mxu0 0.0
        %1027 = vmatprep.subr.mxu0 0.0
        %1028 = vmatpush2.msra.mxu0 0.0
        %1029 = vmatprep.subr.mxu0 0.0
        %1030 = vmatpush2.msra.mxu0 0.0
        %1031 = vmatprep.subr.mxu0 0.0
        %1032 = vmatpush2.msra.mxu0 0.0
        %1033 = vmatprep.subr.mxu0 0.0
        %1034 = vmatpush2.msra.mxu0 0.0
        %1035 = vmatprep.subr.mxu0 0.0
        %1036 = vmatpush2.msra.mxu0 0.0
        %1037 = vmatprep.subr.mxu0 0.0
        %1038 = vmatpush2.msra.mxu0 0.0
        %1039 = vmatprep.subr.mxu0 0.0
        %1040 = vmatpush2.msra.mxu0 0.0
        %1041 = vmatprep.subr.mxu0 0.0
        %1042 = vmatpush2.msra.mxu0 0.0
        %1043 = vmatprep.subr.mxu0 0.0
        %1044 = vmatpush2.msra.mxu0 0.0
        %1045 = vmatprep.subr.mxu0 0.0
        %1046 = vmatpush2.msra.mxu0 0.0
        %1047 = vmatprep.subr.mxu0 0.0
        %1048 = vmatpush2.msra.mxu0 0.0
        %1049 = vmatprep.subr.mxu0 0.0
        %1050 = vmatpush2.msra.mxu0 0.0
        %1051 = vmatprep.mubr.f32.mxu0 0.0
        %1052 = vmatmul.mubr.f32.gmra.mxu0 %v985
        %v1053 = vpop.f32.mrf.mxu0
        %v1054 = vadd.f32 0.0, %v1053
        %v1055 = vpop.f32.mrf.mxu0
        %1056 = vdwg.mxu0
        %s1057 = scalar_lea.vmem %s2, 32
        %v1058 = vld [vmem:[%s1057] sm:$0xff]
        %v1059 = vld [vmem:[%s1057 + $0x8] sm:$0xff]
        %v1060 = vld [vmem:[%s1057 + $0x10] sm:$0xff]
        %v1061 = vld [vmem:[%s1057 + $0x18] sm:$0xff]
        %s1062 = scalar_lea.vmem %s3, 1
        %v1063 = vld [vmem:[%s1062] sm:$0x1]
        %v1065 = vlaneseq
        %v1066 = vshrl.u32 %v1065, 7
        %v1067 = vsub.s32 0, %v1066
        %v1068 = vrot.slane %v1063, %v1067
        %1070 = vmatprep.subr.mxu0 0.0
        %1071 = vmatpush1.msra.mxu0 0.0
        %1072 = vmatprep.subr.mxu0 0.0
        %1073 = vmatpush1.msra.mxu0 0.0
        %1074 = vmatprep.subr.mxu0 0.0
        %1075 = vmatpush1.msra.mxu0 0.0
        %1076 = vmatprep.subr.mxu0 0.0
        %1077 = vmatpush1.msra.mxu0 0.0
        %1078 = vmatprep.subr.mxu0 0.0
        %1079 = vmatpush1.msra.mxu0 0.0
        %1080 = vmatprep.subr.mxu0 0.0
        %1081 = vmatpush1.msra.mxu0 0.0
        %1082 = vmatprep.subr.mxu0 0.0
        %1083 = vmatpush1.msra.mxu0 0.0
        %1084 = vmatprep.subr.mxu0 0.0
        %1085 = vmatpush1.msra.mxu0 0.0
        %1086 = vmatprep.subr.mxu0 0.0
        %1087 = vmatpush1.msra.mxu0 0.0
        %1088 = vmatprep.subr.mxu0 0.0
        %1089 = vmatpush1.msra.mxu0 0.0
        %1090 = vmatprep.subr.mxu0 0.0
        %1091 = vmatpush1.msra.mxu0 0.0
        %1092 = vmatprep.subr.mxu0 0.0
        %1093 = vmatpush1.msra.mxu0 0.0
        %1094 = vmatprep.subr.mxu0 0.0
        %1095 = vmatpush1.msra.mxu0 %v1061
        %1096 = vmatprep.subr.mxu0 0.0
        %1097 = vmatpush1.msra.mxu0 %v1060
        %1098 = vmatprep.subr.mxu0 0.0
        %1099 = vmatpush1.msra.mxu0 %v1059
        %1100 = vmatprep.subr.mxu0 0.0
        %1101 = vmatpush1.msra.mxu0 %v1058
        %1102 = vmatprep.subr.mxu0 0.0
        %1103 = vmatpush2.msra.mxu0 0.0
        %1104 = vmatprep.subr.mxu0 0.0
        %1105 = vmatpush2.msra.mxu0 0.0
        %1106 = vmatprep.subr.mxu0 0.0
        %1107 = vmatpush2.msra.mxu0 0.0
        %1108 = vmatprep.subr.mxu0 0.0
        %1109 = vmatpush2.msra.mxu0 0.0
        %1110 = vmatprep.subr.mxu0 0.0
        %1111 = vmatpush2.msra.mxu0 0.0
        %1112 = vmatprep.subr.mxu0 0.0
        %1113 = vmatpush2.msra.mxu0 0.0
        %1114 = vmatprep.subr.mxu0 0.0
        %1115 = vmatpush2.msra.mxu0 0.0
        %1116 = vmatprep.subr.mxu0 0.0
        %1117 = vmatpush2.msra.mxu0 0.0
        %1118 = vmatprep.subr.mxu0 0.0
        %1119 = vmatpush2.msra.mxu0 0.0
        %1120 = vmatprep.subr.mxu0 0.0
        %1121 = vmatpush2.msra.mxu0 0.0
        %1122 = vmatprep.subr.mxu0 0.0
        %1123 = vmatpush2.msra.mxu0 0.0
        %1124 = vmatprep.subr.mxu0 0.0
        %1125 = vmatpush2.msra.mxu0 0.0
        %1126 = vmatprep.subr.mxu0 0.0
        %1127 = vmatpush2.msra.mxu0 0.0
        %1128 = vmatprep.subr.mxu0 0.0
        %1129 = vmatpush2.msra.mxu0 0.0
        %1130 = vmatprep.subr.mxu0 0.0
        %1131 = vmatpush2.msra.mxu0 0.0
        %1132 = vmatprep.subr.mxu0 0.0
        %1133 = vmatpush2.msra.mxu0 0.0
        %1134 = vmatprep.mubr.f32.mxu0 0.0
        %1135 = vmatmul.mubr.f32.gmra.mxu0 %v657
        %v1136 = vpop.f32.mrf.mxu0
        %v1137 = vadd.f32 %v1068, %v1136
        %v1138 = vpop.f32.mrf.mxu0
        %1139 = vdwg.mxu0
        %s1140 = scalar_lea.vmem %s2, 160
        %v1141 = vld [vmem:[%s1140] sm:$0xff]
        %v1142 = vld [vmem:[%s1140 + $0x8] sm:$0xff]
        %v1143 = vld [vmem:[%s1140 + $0x10] sm:$0xff]
        %v1144 = vld [vmem:[%s1140 + $0x18] sm:$0xff]
        %s1145 = scalar_lea.vmem %s3, 5
        %v1146 = vld [vmem:[%s1145] sm:$0x1]
        %v1148 = vlaneseq
        %v1149 = vshrl.u32 %v1148, 7
        %v1150 = vsub.s32 0, %v1149
        %v1151 = vrot.slane %v1146, %v1150
        %1153 = vmatprep.subr.mxu0 0.0
        %1154 = vmatpush1.msra.mxu0 0.0
        %1155 = vmatprep.subr.mxu0 0.0
        %1156 = vmatpush1.msra.mxu0 0.0
        %1157 = vmatprep.subr.mxu0 0.0
        %1158 = vmatpush1.msra.mxu0 0.0
        %1159 = vmatprep.subr.mxu0 0.0
        %1160 = vmatpush1.msra.mxu0 0.0
        %1161 = vmatprep.subr.mxu0 0.0
        %1162 = vmatpush1.msra.mxu0 0.0
        %1163 = vmatprep.subr.mxu0 0.0
        %1164 = vmatpush1.msra.mxu0 0.0
        %1165 = vmatprep.subr.mxu0 0.0
        %1166 = vmatpush1.msra.mxu0 0.0
        %1167 = vmatprep.subr.mxu0 0.0
        %1168 = vmatpush1.msra.mxu0 0.0
        %1169 = vmatprep.subr.mxu0 0.0
        %1170 = vmatpush1.msra.mxu0 0.0
        %1171 = vmatprep.subr.mxu0 0.0
        %1172 = vmatpush1.msra.mxu0 0.0
        %1173 = vmatprep.subr.mxu0 0.0
        %1174 = vmatpush1.msra.mxu0 0.0
        %1175 = vmatprep.subr.mxu0 0.0
        %1176 = vmatpush1.msra.mxu0 0.0
        %1177 = vmatprep.subr.mxu0 0.0
        %1178 = vmatpush1.msra.mxu0 %v1144
        %1179 = vmatprep.subr.mxu0 0.0
        %1180 = vmatpush1.msra.mxu0 %v1143
        %1181 = vmatprep.subr.mxu0 0.0
        %1182 = vmatpush1.msra.mxu0 %v1142
        %1183 = vmatprep.subr.mxu0 0.0
        %1184 = vmatpush1.msra.mxu0 %v1141
        %1185 = vmatprep.subr.mxu0 0.0
        %1186 = vmatpush2.msra.mxu0 0.0
        %1187 = vmatprep.subr.mxu0 0.0
        %1188 = vmatpush2.msra.mxu0 0.0
        %1189 = vmatprep.subr.mxu0 0.0
        %1190 = vmatpush2.msra.mxu0 0.0
        %1191 = vmatprep.subr.mxu0 0.0
        %1192 = vmatpush2.msra.mxu0 0.0
        %1193 = vmatprep.subr.mxu0 0.0
        %1194 = vmatpush2.msra.mxu0 0.0
        %1195 = vmatprep.subr.mxu0 0.0
        %1196 = vmatpush2.msra.mxu0 0.0
        %1197 = vmatprep.subr.mxu0 0.0
        %1198 = vmatpush2.msra.mxu0 0.0
        %1199 = vmatprep.subr.mxu0 0.0
        %1200 = vmatpush2.msra.mxu0 0.0
        %1201 = vmatprep.subr.mxu0 0.0
        %1202 = vmatpush2.msra.mxu0 0.0
        %1203 = vmatprep.subr.mxu0 0.0
        %1204 = vmatpush2.msra.mxu0 0.0
        %1205 = vmatprep.subr.mxu0 0.0
        %1206 = vmatpush2.msra.mxu0 0.0
        %1207 = vmatprep.subr.mxu0 0.0
        %1208 = vmatpush2.msra.mxu0 0.0
        %1209 = vmatprep.subr.mxu0 0.0
        %1210 = vmatpush2.msra.mxu0 0.0
        %1211 = vmatprep.subr.mxu0 0.0
        %1212 = vmatpush2.msra.mxu0 0.0
        %1213 = vmatprep.subr.mxu0 0.0
        %1214 = vmatpush2.msra.mxu0 0.0
        %1215 = vmatprep.subr.mxu0 0.0
        %1216 = vmatpush2.msra.mxu0 0.0
        %1217 = vmatprep.mubr.f32.mxu0 0.0
        %1218 = vmatmul.mubr.f32.gmra.mxu0 %v657
        %v1219 = vpop.f32.mrf.mxu0
        %v1220 = vadd.f32 %v1151, %v1219
        %v1221 = vpop.f32.mrf.mxu0
        %1222 = vdwg.mxu0
        %s1223 = scalar_lea.vmem %s2, 288
        %v1224 = vld [vmem:[%s1223] sm:$0xff]
        %v1225 = vld [vmem:[%s1223 + $0x8] sm:$0xff]
        %v1226 = vld [vmem:[%s1223 + $0x10] sm:$0xff]
        %v1227 = vld [vmem:[%s1223 + $0x18] sm:$0xff]
        %s1228 = scalar_lea.vmem %s3, 9
        %v1229 = vld [vmem:[%s1228] sm:$0x1]
        %v1231 = vlaneseq
        %v1232 = vshrl.u32 %v1231, 7
        %v1233 = vsub.s32 0, %v1232
        %v1234 = vrot.slane %v1229, %v1233
        %1236 = vmatprep.subr.mxu0 0.0
        %1237 = vmatpush1.msra.mxu0 0.0
        %1238 = vmatprep.subr.mxu0 0.0
        %1239 = vmatpush1.msra.mxu0 0.0
        %1240 = vmatprep.subr.mxu0 0.0
        %1241 = vmatpush1.msra.mxu0 0.0
        %1242 = vmatprep.subr.mxu0 0.0
        %1243 = vmatpush1.msra.mxu0 0.0
        %1244 = vmatprep.subr.mxu0 0.0
        %1245 = vmatpush1.msra.mxu0 0.0
        %1246 = vmatprep.subr.mxu0 0.0
        %1247 = vmatpush1.msra.mxu0 0.0
        %1248 = vmatprep.subr.mxu0 0.0
        %1249 = vmatpush1.msra.mxu0 0.0
        %1250 = vmatprep.subr.mxu0 0.0
        %1251 = vmatpush1.msra.mxu0 0.0
        %1252 = vmatprep.subr.mxu0 0.0
        %1253 = vmatpush1.msra.mxu0 0.0
        %1254 = vmatprep.subr.mxu0 0.0
        %1255 = vmatpush1.msra.mxu0 0.0
        %1256 = vmatprep.subr.mxu0 0.0
        %1257 = vmatpush1.msra.mxu0 0.0
        %1258 = vmatprep.subr.mxu0 0.0
        %1259 = vmatpush1.msra.mxu0 0.0
        %1260 = vmatprep.subr.mxu0 0.0
        %1261 = vmatpush1.msra.mxu0 %v1227
        %1262 = vmatprep.subr.mxu0 0.0
        %1263 = vmatpush1.msra.mxu0 %v1226
        %1264 = vmatprep.subr.mxu0 0.0
        %1265 = vmatpush1.msra.mxu0 %v1225
        %1266 = vmatprep.subr.mxu0 0.0
        %1267 = vmatpush1.msra.mxu0 %v1224
        %1268 = vmatprep.subr.mxu0 0.0
        %1269 = vmatpush2.msra.mxu0 0.0
        %1270 = vmatprep.subr.mxu0 0.0
        %1271 = vmatpush2.msra.mxu0 0.0
        %1272 = vmatprep.subr.mxu0 0.0
        %1273 = vmatpush2.msra.mxu0 0.0
        %1274 = vmatprep.subr.mxu0 0.0
        %1275 = vmatpush2.msra.mxu0 0.0
        %1276 = vmatprep.subr.mxu0 0.0
        %1277 = vmatpush2.msra.mxu0 0.0
        %1278 = vmatprep.subr.mxu0 0.0
        %1279 = vmatpush2.msra.mxu0 0.0
        %1280 = vmatprep.subr.mxu0 0.0
        %1281 = vmatpush2.msra.mxu0 0.0
        %1282 = vmatprep.subr.mxu0 0.0
        %1283 = vmatpush2.msra.mxu0 0.0
        %1284 = vmatprep.subr.mxu0 0.0
        %1285 = vmatpush2.msra.mxu0 0.0
        %1286 = vmatprep.subr.mxu0 0.0
        %1287 = vmatpush2.msra.mxu0 0.0
        %1288 = vmatprep.subr.mxu0 0.0
        %1289 = vmatpush2.msra.mxu0 0.0
        %1290 = vmatprep.subr.mxu0 0.0
        %1291 = vmatpush2.msra.mxu0 0.0
        %1292 = vmatprep.subr.mxu0 0.0
        %1293 = vmatpush2.msra.mxu0 0.0
        %1294 = vmatprep.subr.mxu0 0.0
        %1295 = vmatpush2.msra.mxu0 0.0
        %1296 = vmatprep.subr.mxu0 0.0
        %1297 = vmatpush2.msra.mxu0 0.0
        %1298 = vmatprep.subr.mxu0 0.0
        %1299 = vmatpush2.msra.mxu0 0.0
        %1300 = vmatprep.mubr.f32.mxu0 0.0
        %1301 = vmatmul.mubr.f32.gmra.mxu0 %v657
        %v1302 = vpop.f32.mrf.mxu0
        %v1303 = vadd.f32 %v1234, %v1302
        %v1304 = vpop.f32.mrf.mxu0
        %1305 = vdwg.mxu0
        %v1306 = vmul.f32 %v1137, 0.35355338
        %v1308 = vsel %vm896, %v1306, 0
        %v1311 = vsel %vm896, %v1220, 0
        %1313 = vmatprep.subr.mxu0 0.0
        %1314 = vmatpush1.xpose.msra.mxu0 0.0
        %1315 = vmatprep.subr.mxu0 0.0
        %1316 = vmatpush1.xpose.msra.mxu0 0.0
        %1317 = vmatprep.subr.mxu0 0.0
        %1318 = vmatpush1.xpose.msra.mxu0 0.0
        %1319 = vmatprep.subr.mxu0 0.0
        %1320 = vmatpush1.xpose.msra.mxu0 0.0
        %1321 = vmatprep.subr.mxu0 0.0
        %1322 = vmatpush1.xpose.msra.mxu0 0.0
        %1323 = vmatprep.subr.mxu0 0.0
        %1324 = vmatpush1.xpose.msra.mxu0 0.0
        %1325 = vmatprep.subr.mxu0 0.0
        %1326 = vmatpush1.xpose.msra.mxu0 0.0
        %1327 = vmatprep.subr.mxu0 0.0
        %1328 = vmatpush1.xpose.msra.mxu0 0.0
        %1329 = vmatprep.subr.mxu0 0.0
        %1330 = vmatpush1.xpose.msra.mxu0 0.0
        %1331 = vmatprep.subr.mxu0 0.0
        %1332 = vmatpush1.xpose.msra.mxu0 0.0
        %1333 = vmatprep.subr.mxu0 0.0
        %1334 = vmatpush1.xpose.msra.mxu0 0.0
        %1335 = vmatprep.subr.mxu0 0.0
        %1336 = vmatpush1.xpose.msra.mxu0 0.0
        %1337 = vmatprep.subr.mxu0 0.0
        %1338 = vmatpush1.xpose.msra.mxu0 0.0
        %1339 = vmatprep.subr.mxu0 0.0
        %1340 = vmatpush1.xpose.msra.mxu0 0.0
        %1341 = vmatprep.subr.mxu0 0.0
        %1342 = vmatpush1.xpose.msra.mxu0 0.0
        %1343 = vmatprep.subr.mxu0 0.0
        %1344 = vmatpush1.xpose.msra.mxu0 %v1311
        %1345 = vmatprep.subr.mxu0 0.0
        %1346 = vmatpush2.xpose.msra.mxu0 0.0
        %1347 = vmatprep.subr.mxu0 0.0
        %1348 = vmatpush2.xpose.msra.mxu0 0.0
        %1349 = vmatprep.subr.mxu0 0.0
        %1350 = vmatpush2.xpose.msra.mxu0 0.0
        %1351 = vmatprep.subr.mxu0 0.0
        %1352 = vmatpush2.xpose.msra.mxu0 0.0
        %1353 = vmatprep.subr.mxu0 0.0
        %1354 = vmatpush2.xpose.msra.mxu0 0.0
        %1355 = vmatprep.subr.mxu0 0.0
        %1356 = vmatpush2.xpose.msra.mxu0 0.0
        %1357 = vmatprep.subr.mxu0 0.0
        %1358 = vmatpush2.xpose.msra.mxu0 0.0
        %1359 = vmatprep.subr.mxu0 0.0
        %1360 = vmatpush2.xpose.msra.mxu0 0.0
        %1361 = vmatprep.subr.mxu0 0.0
        %1362 = vmatpush2.xpose.msra.mxu0 0.0
        %1363 = vmatprep.subr.mxu0 0.0
        %1364 = vmatpush2.xpose.msra.mxu0 0.0
        %1365 = vmatprep.subr.mxu0 0.0
        %1366 = vmatpush2.xpose.msra.mxu0 0.0
        %1367 = vmatprep.subr.mxu0 0.0
        %1368 = vmatpush2.xpose.msra.mxu0 0.0
        %1369 = vmatprep.subr.mxu0 0.0
        %1370 = vmatpush2.xpose.msra.mxu0 0.0
        %1371 = vmatprep.subr.mxu0 0.0
        %1372 = vmatpush2.xpose.msra.mxu0 0.0
        %1373 = vmatprep.subr.mxu0 0.0
        %1374 = vmatpush2.xpose.msra.mxu0 0.0
        %1375 = vmatprep.subr.mxu0 0.0
        %1376 = vmatpush2.xpose.msra.mxu0 0.0
        %1377 = vmatprep.mubr.f32.mxu0 0.0
        %1378 = vmatmul.mubr.f32.gmra.mxu0 %v1308
        %v1379 = vpop.f32.mrf.mxu0
        %v1380 = vadd.f32 0.0, %v1379
        %v1381 = vpop.f32.mrf.mxu0
        %1382 = vdwg.mxu0
        %v1383 = vsel %vm896, %v1380, -inf
        %1384 = vmax.xlane.f32.xlu0 %v1383
        %v1385 = vpop.xlane.xlu0 %1384
        %v1386 = vsub.f32 %v1380, %v1385
        %v1387 = vmul.f32 %v1386, 1.442695
        %v1388 = vpow.pop %v1387
        %v1389 = vsel %vm896, %v1388, 0.0
        %1390 = vadd.xlane.f32.xlu0 %v1389
        %v1391 = vpop.xlane.xlu0 %1390
        %v1392 = vrcp.pop %v1391
        %v1393 = vmul.f32 %v1388, %v1392
        %v1395 = vsel %vm896, %v1393, 0
        %1397 = vmatprep.subr.mxu0 0.0
        %1398 = vmatpush1.msra.mxu0 0.0
        %1399 = vmatprep.subr.mxu0 0.0
        %1400 = vmatpush1.msra.mxu0 0.0
        %1401 = vmatprep.subr.mxu0 0.0
        %1402 = vmatpush1.msra.mxu0 0.0
        %1403 = vmatprep.subr.mxu0 0.0
        %1404 = vmatpush1.msra.mxu0 0.0
        %1405 = vmatprep.subr.mxu0 0.0
        %1406 = vmatpush1.msra.mxu0 0.0
        %1407 = vmatprep.subr.mxu0 0.0
        %1408 = vmatpush1.msra.mxu0 0.0
        %1409 = vmatprep.subr.mxu0 0.0
        %1410 = vmatpush1.msra.mxu0 0.0
        %1411 = vmatprep.subr.mxu0 0.0
        %1412 = vmatpush1.msra.mxu0 0.0
        %1413 = vmatprep.subr.mxu0 0.0
        %1414 = vmatpush1.msra.mxu0 0.0
        %1415 = vmatprep.subr.mxu0 0.0
        %1416 = vmatpush1.msra.mxu0 0.0
        %1417 = vmatprep.subr.mxu0 0.0
        %1418 = vmatpush1.msra.mxu0 0.0
        %1419 = vmatprep.subr.mxu0 0.0
        %1420 = vmatpush1.msra.mxu0 0.0
        %1421 = vmatprep.subr.mxu0 0.0
        %1422 = vmatpush1.msra.mxu0 0.0
        %1423 = vmatprep.subr.mxu0 0.0
        %1424 = vmatpush1.msra.mxu0 0.0
        %1425 = vmatprep.subr.mxu0 0.0
        %1426 = vmatpush1.msra.mxu0 0.0
        %1427 = vmatprep.subr.mxu0 0.0
        %1428 = vmatpush1.msra.mxu0 %v1303
        %1429 = vmatprep.subr.mxu0 0.0
        %1430 = vmatpush2.msra.mxu0 0.0
        %1431 = vmatprep.subr.mxu0 0.0
        %1432 = vmatpush2.msra.mxu0 0.0
        %1433 = vmatprep.subr.mxu0 0.0
        %1434 = vmatpush2.msra.mxu0 0.0
        %1435 = vmatprep.subr.mxu0 0.0
        %1436 = vmatpush2.msra.mxu0 0.0
        %1437 = vmatprep.subr.mxu0 0.0
        %1438 = vmatpush2.msra.mxu0 0.0
        %1439 = vmatprep.subr.mxu0 0.0
        %1440 = vmatpush2.msra.mxu0 0.0
        %1441 = vmatprep.subr.mxu0 0.0
        %1442 = vmatpush2.msra.mxu0 0.0
        %1443 = vmatprep.subr.mxu0 0.0
        %1444 = vmatpush2.msra.mxu0 0.0
        %1445 = vmatprep.subr.mxu0 0.0
        %1446 = vmatpush2.msra.mxu0 0.0
        %1447 = vmatprep.subr.mxu0 0.0
        %1448 = vmatpush2.msra.mxu0 0.0
        %1449 = vmatprep.subr.mxu0 0.0
        %1450 = vmatpush2.msra.mxu0 0.0
        %1451 = vmatprep.subr.mxu0 0.0
        %1452 = vmatpush2.msra.mxu0 0.0
        %1453 = vmatprep.subr.mxu0 0.0
        %1454 = vmatpush2.msra.mxu0 0.0
        %1455 = vmatprep.subr.mxu0 0.0
        %1456 = vmatpush2.msra.mxu0 0.0
        %1457 = vmatprep.subr.mxu0 0.0
        %1458 = vmatpush2.msra.mxu0 0.0
        %1459 = vmatprep.subr.mxu0 0.0
        %1460 = vmatpush2.msra.mxu0 0.0
        %1461 = vmatprep.mubr.f32.mxu0 0.0
        %1462 = vmatmul.mubr.f32.gmra.mxu0 %v1395
        %v1463 = vpop.f32.mrf.mxu0
        %v1464 = vadd.f32 0.0, %v1463
        %v1465 = vpop.f32.mrf.mxu0
        %1466 = vdwg.mxu0
        %s1467 = scalar_lea.vmem %s2, 64
        %v1468 = vld [vmem:[%s1467] sm:$0xff]
        %v1469 = vld [vmem:[%s1467 + $0x8] sm:$0xff]
        %v1470 = vld [vmem:[%s1467 + $0x10] sm:$0xff]
        %v1471 = vld [vmem:[%s1467 + $0x18] sm:$0xff]
        %s1472 = scalar_lea.vmem %s3, 2
        %v1473 = vld [vmem:[%s1472] sm:$0x1]
        %v1475 = vlaneseq
        %v1476 = vshrl.u32 %v1475, 7
        %v1477 = vsub.s32 0, %v1476
        %v1478 = vrot.slane %v1473, %v1477
        %1480 = vmatprep.subr.mxu0 0.0
        %1481 = vmatpush1.msra.mxu0 0.0
        %1482 = vmatprep.subr.mxu0 0.0
        %1483 = vmatpush1.msra.mxu0 0.0
        %1484 = vmatprep.subr.mxu0 0.0
        %1485 = vmatpush1.msra.mxu0 0.0
        %1486 = vmatprep.subr.mxu0 0.0
        %1487 = vmatpush1.msra.mxu0 0.0
        %1488 = vmatprep.subr.mxu0 0.0
        %1489 = vmatpush1.msra.mxu0 0.0
        %1490 = vmatprep.subr.mxu0 0.0
        %1491 = vmatpush1.msra.mxu0 0.0
        %1492 = vmatprep.subr.mxu0 0.0
        %1493 = vmatpush1.msra.mxu0 0.0
        %1494 = vmatprep.subr.mxu0 0.0
        %1495 = vmatpush1.msra.mxu0 0.0
        %1496 = vmatprep.subr.mxu0 0.0
        %1497 = vmatpush1.msra.mxu0 0.0
        %1498 = vmatprep.subr.mxu0 0.0
        %1499 = vmatpush1.msra.mxu0 0.0
        %1500 = vmatprep.subr.mxu0 0.0
        %1501 = vmatpush1.msra.mxu0 0.0
        %1502 = vmatprep.subr.mxu0 0.0
        %1503 = vmatpush1.msra.mxu0 0.0
        %1504 = vmatprep.subr.mxu0 0.0
        %1505 = vmatpush1.msra.mxu0 %v1471
        %1506 = vmatprep.subr.mxu0 0.0
        %1507 = vmatpush1.msra.mxu0 %v1470
        %1508 = vmatprep.subr.mxu0 0.0
        %1509 = vmatpush1.msra.mxu0 %v1469
        %1510 = vmatprep.subr.mxu0 0.0
        %1511 = vmatpush1.msra.mxu0 %v1468
        %1512 = vmatprep.subr.mxu0 0.0
        %1513 = vmatpush2.msra.mxu0 0.0
        %1514 = vmatprep.subr.mxu0 0.0
        %1515 = vmatpush2.msra.mxu0 0.0
        %1516 = vmatprep.subr.mxu0 0.0
        %1517 = vmatpush2.msra.mxu0 0.0
        %1518 = vmatprep.subr.mxu0 0.0
        %1519 = vmatpush2.msra.mxu0 0.0
        %1520 = vmatprep.subr.mxu0 0.0
        %1521 = vmatpush2.msra.mxu0 0.0
        %1522 = vmatprep.subr.mxu0 0.0
        %1523 = vmatpush2.msra.mxu0 0.0
        %1524 = vmatprep.subr.mxu0 0.0
        %1525 = vmatpush2.msra.mxu0 0.0
        %1526 = vmatprep.subr.mxu0 0.0
        %1527 = vmatpush2.msra.mxu0 0.0
        %1528 = vmatprep.subr.mxu0 0.0
        %1529 = vmatpush2.msra.mxu0 0.0
        %1530 = vmatprep.subr.mxu0 0.0
        %1531 = vmatpush2.msra.mxu0 0.0
        %1532 = vmatprep.subr.mxu0 0.0
        %1533 = vmatpush2.msra.mxu0 0.0
        %1534 = vmatprep.subr.mxu0 0.0
        %1535 = vmatpush2.msra.mxu0 0.0
        %1536 = vmatprep.subr.mxu0 0.0
        %1537 = vmatpush2.msra.mxu0 0.0
        %1538 = vmatprep.subr.mxu0 0.0
        %1539 = vmatpush2.msra.mxu0 0.0
        %1540 = vmatprep.subr.mxu0 0.0
        %1541 = vmatpush2.msra.mxu0 0.0
        %1542 = vmatprep.subr.mxu0 0.0
        %1543 = vmatpush2.msra.mxu0 0.0
        %1544 = vmatprep.mubr.f32.mxu0 0.0
        %1545 = vmatmul.mubr.f32.gmra.mxu0 %v657
        %v1546 = vpop.f32.mrf.mxu0
        %v1547 = vadd.f32 %v1478, %v1546
        %v1548 = vpop.f32.mrf.mxu0
        %1549 = vdwg.mxu0
        %s1550 = scalar_lea.vmem %s2, 192
        %v1551 = vld [vmem:[%s1550] sm:$0xff]
        %v1552 = vld [vmem:[%s1550 + $0x8] sm:$0xff]
        %v1553 = vld [vmem:[%s1550 + $0x10] sm:$0xff]
        %v1554 = vld [vmem:[%s1550 + $0x18] sm:$0xff]
        %s1555 = scalar_lea.vmem %s3, 6
        %v1556 = vld [vmem:[%s1555] sm:$0x1]
        %v1558 = vlaneseq
        %v1559 = vshrl.u32 %v1558, 7
        %v1560 = vsub.s32 0, %v1559
        %v1561 = vrot.slane %v1556, %v1560
        %1563 = vmatprep.subr.mxu0 0.0
        %1564 = vmatpush1.msra.mxu0 0.0
        %1565 = vmatprep.subr.mxu0 0.0
        %1566 = vmatpush1.msra.mxu0 0.0
        %1567 = vmatprep.subr.mxu0 0.0
        %1568 = vmatpush1.msra.mxu0 0.0
        %1569 = vmatprep.subr.mxu0 0.0
        %1570 = vmatpush1.msra.mxu0 0.0
        %1571 = vmatprep.subr.mxu0 0.0
        %1572 = vmatpush1.msra.mxu0 0.0
        %1573 = vmatprep.subr.mxu0 0.0
        %1574 = vmatpush1.msra.mxu0 0.0
        %1575 = vmatprep.subr.mxu0 0.0
        %1576 = vmatpush1.msra.mxu0 0.0
        %1577 = vmatprep.subr.mxu0 0.0
        %1578 = vmatpush1.msra.mxu0 0.0
        %1579 = vmatprep.subr.mxu0 0.0
        %1580 = vmatpush1.msra.mxu0 0.0
        %1581 = vmatprep.subr.mxu0 0.0
        %1582 = vmatpush1.msra.mxu0 0.0
        %1583 = vmatprep.subr.mxu0 0.0
        %1584 = vmatpush1.msra.mxu0 0.0
        %1585 = vmatprep.subr.mxu0 0.0
        %1586 = vmatpush1.msra.mxu0 0.0
        %1587 = vmatprep.subr.mxu0 0.0
        %1588 = vmatpush1.msra.mxu0 %v1554
        %1589 = vmatprep.subr.mxu0 0.0
        %1590 = vmatpush1.msra.mxu0 %v1553
        %1591 = vmatprep.subr.mxu0 0.0
        %1592 = vmatpush1.msra.mxu0 %v1552
        %1593 = vmatprep.subr.mxu0 0.0
        %1594 = vmatpush1.msra.mxu0 %v1551
        %1595 = vmatprep.subr.mxu0 0.0
        %1596 = vmatpush2.msra.mxu0 0.0
        %1597 = vmatprep.subr.mxu0 0.0
        %1598 = vmatpush2.msra.mxu0 0.0
        %1599 = vmatprep.subr.mxu0 0.0
        %1600 = vmatpush2.msra.mxu0 0.0
        %1601 = vmatprep.subr.mxu0 0.0
        %1602 = vmatpush2.msra.mxu0 0.0
        %1603 = vmatprep.subr.mxu0 0.0
        %1604 = vmatpush2.msra.mxu0 0.0
        %1605 = vmatprep.subr.mxu0 0.0
        %1606 = vmatpush2.msra.mxu0 0.0
        %1607 = vmatprep.subr.mxu0 0.0
        %1608 = vmatpush2.msra.mxu0 0.0
        %1609 = vmatprep.subr.mxu0 0.0
        %1610 = vmatpush2.msra.mxu0 0.0
        %1611 = vmatprep.subr.mxu0 0.0
        %1612 = vmatpush2.msra.mxu0 0.0
        %1613 = vmatprep.subr.mxu0 0.0
        %1614 = vmatpush2.msra.mxu0 0.0
        %1615 = vmatprep.subr.mxu0 0.0
        %1616 = vmatpush2.msra.mxu0 0.0
        %1617 = vmatprep.subr.mxu0 0.0
        %1618 = vmatpush2.msra.mxu0 0.0
        %1619 = vmatprep.subr.mxu0 0.0
        %1620 = vmatpush2.msra.mxu0 0.0
        %1621 = vmatprep.subr.mxu0 0.0
        %1622 = vmatpush2.msra.mxu0 0.0
        %1623 = vmatprep.subr.mxu0 0.0
        %1624 = vmatpush2.msra.mxu0 0.0
        %1625 = vmatprep.subr.mxu0 0.0
        %1626 = vmatpush2.msra.mxu0 0.0
        %1627 = vmatprep.mubr.f32.mxu0 0.0
        %1628 = vmatmul.mubr.f32.gmra.mxu0 %v657
        %v1629 = vpop.f32.mrf.mxu0
        %v1630 = vadd.f32 %v1561, %v1629
        %v1631 = vpop.f32.mrf.mxu0
        %1632 = vdwg.mxu0
        %s1633 = scalar_lea.vmem %s2, 320
        %v1634 = vld [vmem:[%s1633] sm:$0xff]
        %v1635 = vld [vmem:[%s1633 + $0x8] sm:$0xff]
        %v1636 = vld [vmem:[%s1633 + $0x10] sm:$0xff]
        %v1637 = vld [vmem:[%s1633 + $0x18] sm:$0xff]
        %s1638 = scalar_lea.vmem %s3, 10
        %v1639 = vld [vmem:[%s1638] sm:$0x1]
        %v1641 = vlaneseq
        %v1642 = vshrl.u32 %v1641, 7
        %v1643 = vsub.s32 0, %v1642
        %v1644 = vrot.slane %v1639, %v1643
        %1646 = vmatprep.subr.mxu0 0.0
        %1647 = vmatpush1.msra.mxu0 0.0
        %1648 = vmatprep.subr.mxu0 0.0
        %1649 = vmatpush1.msra.mxu0 0.0
        %1650 = vmatprep.subr.mxu0 0.0
        %1651 = vmatpush1.msra.mxu0 0.0
        %1652 = vmatprep.subr.mxu0 0.0
        %1653 = vmatpush1.msra.mxu0 0.0
        %1654 = vmatprep.subr.mxu0 0.0
        %1655 = vmatpush1.msra.mxu0 0.0
        %1656 = vmatprep.subr.mxu0 0.0
        %1657 = vmatpush1.msra.mxu0 0.0
        %1658 = vmatprep.subr.mxu0 0.0
        %1659 = vmatpush1.msra.mxu0 0.0
        %1660 = vmatprep.subr.mxu0 0.0
        %1661 = vmatpush1.msra.mxu0 0.0
        %1662 = vmatprep.subr.mxu0 0.0
        %1663 = vmatpush1.msra.mxu0 0.0
        %1664 = vmatprep.subr.mxu0 0.0
        %1665 = vmatpush1.msra.mxu0 0.0
        %1666 = vmatprep.subr.mxu0 0.0
        %1667 = vmatpush1.msra.mxu0 0.0
        %1668 = vmatprep.subr.mxu0 0.0
        %1669 = vmatpush1.msra.mxu0 0.0
        %1670 = vmatprep.subr.mxu0 0.0
        %1671 = vmatpush1.msra.mxu0 %v1637
        %1672 = vmatprep.subr.mxu0 0.0
        %1673 = vmatpush1.msra.mxu0 %v1636
        %1674 = vmatprep.subr.mxu0 0.0
        %1675 = vmatpush1.msra.mxu0 %v1635
        %1676 = vmatprep.subr.mxu0 0.0
        %1677 = vmatpush1.msra.mxu0 %v1634
        %1678 = vmatprep.subr.mxu0 0.0
        %1679 = vmatpush2.msra.mxu0 0.0
        %1680 = vmatprep.subr.mxu0 0.0
        %1681 = vmatpush2.msra.mxu0 0.0
        %1682 = vmatprep.subr.mxu0 0.0
        %1683 = vmatpush2.msra.mxu0 0.0
        %1684 = vmatprep.subr.mxu0 0.0
        %1685 = vmatpush2.msra.mxu0 0.0
        %1686 = vmatprep.subr.mxu0 0.0
        %1687 = vmatpush2.msra.mxu0 0.0
        %1688 = vmatprep.subr.mxu0 0.0
        %1689 = vmatpush2.msra.mxu0 0.0
        %1690 = vmatprep.subr.mxu0 0.0
        %1691 = vmatpush2.msra.mxu0 0.0
        %1692 = vmatprep.subr.mxu0 0.0
        %1693 = vmatpush2.msra.mxu0 0.0
        %1694 = vmatprep.subr.mxu0 0.0
        %1695 = vmatpush2.msra.mxu0 0.0
        %1696 = vmatprep.subr.mxu0 0.0
        %1697 = vmatpush2.msra.mxu0 0.0
        %1698 = vmatprep.subr.mxu0 0.0
        %1699 = vmatpush2.msra.mxu0 0.0
        %1700 = vmatprep.subr.mxu0 0.0
        %1701 = vmatpush2.msra.mxu0 0.0
        %1702 = vmatprep.subr.mxu0 0.0
        %1703 = vmatpush2.msra.mxu0 0.0
        %1704 = vmatprep.subr.mxu0 0.0
        %1705 = vmatpush2.msra.mxu0 0.0
        %1706 = vmatprep.subr.mxu0 0.0
        %1707 = vmatpush2.msra.mxu0 0.0
        %1708 = vmatprep.subr.mxu0 0.0
        %1709 = vmatpush2.msra.mxu0 0.0
        %1710 = vmatprep.mubr.f32.mxu0 0.0
        %1711 = vmatmul.mubr.f32.gmra.mxu0 %v657
        %v1712 = vpop.f32.mrf.mxu0
        %v1713 = vadd.f32 %v1644, %v1712
        %v1714 = vpop.f32.mrf.mxu0
        %1715 = vdwg.mxu0
        %v1716 = vmul.f32 %v1547, 0.35355338
        %v1718 = vsel %vm896, %v1716, 0
        %v1721 = vsel %vm896, %v1630, 0
        %1723 = vmatprep.subr.mxu0 0.0
        %1724 = vmatpush1.xpose.msra.mxu0 0.0
        %1725 = vmatprep.subr.mxu0 0.0
        %1726 = vmatpush1.xpose.msra.mxu0 0.0
        %1727 = vmatprep.subr.mxu0 0.0
        %1728 = vmatpush1.xpose.msra.mxu0 0.0
        %1729 = vmatprep.subr.mxu0 0.0
        %1730 = vmatpush1.xpose.msra.mxu0 0.0
        %1731 = vmatprep.subr.mxu0 0.0
        %1732 = vmatpush1.xpose.msra.mxu0 0.0
        %1733 = vmatprep.subr.mxu0 0.0
        %1734 = vmatpush1.xpose.msra.mxu0 0.0
        %1735 = vmatprep.subr.mxu0 0.0
        %1736 = vmatpush1.xpose.msra.mxu0 0.0
        %1737 = vmatprep.subr.mxu0 0.0
        %1738 = vmatpush1.xpose.msra.mxu0 0.0
        %1739 = vmatprep.subr.mxu0 0.0
        %1740 = vmatpush1.xpose.msra.mxu0 0.0
        %1741 = vmatprep.subr.mxu0 0.0
        %1742 = vmatpush1.xpose.msra.mxu0 0.0
        %1743 = vmatprep.subr.mxu0 0.0
        %1744 = vmatpush1.xpose.msra.mxu0 0.0
        %1745 = vmatprep.subr.mxu0 0.0
        %1746 = vmatpush1.xpose.msra.mxu0 0.0
        %1747 = vmatprep.subr.mxu0 0.0
        %1748 = vmatpush1.xpose.msra.mxu0 0.0
        %1749 = vmatprep.subr.mxu0 0.0
        %1750 = vmatpush1.xpose.msra.mxu0 0.0
        %1751 = vmatprep.subr.mxu0 0.0
        %1752 = vmatpush1.xpose.msra.mxu0 0.0
        %1753 = vmatprep.subr.mxu0 0.0
        %1754 = vmatpush1.xpose.msra.mxu0 %v1721
        %1755 = vmatprep.subr.mxu0 0.0
        %1756 = vmatpush2.xpose.msra.mxu0 0.0
        %1757 = vmatprep.subr.mxu0 0.0
        %1758 = vmatpush2.xpose.msra.mxu0 0.0
        %1759 = vmatprep.subr.mxu0 0.0
        %1760 = vmatpush2.xpose.msra.mxu0 0.0
        %1761 = vmatprep.subr.mxu0 0.0
        %1762 = vmatpush2.xpose.msra.mxu0 0.0
        %1763 = vmatprep.subr.mxu0 0.0
        %1764 = vmatpush2.xpose.msra.mxu0 0.0
        %1765 = vmatprep.subr.mxu0 0.0
        %1766 = vmatpush2.xpose.msra.mxu0 0.0
        %1767 = vmatprep.subr.mxu0 0.0
        %1768 = vmatpush2.xpose.msra.mxu0 0.0
        %1769 = vmatprep.subr.mxu0 0.0
        %1770 = vmatpush2.xpose.msra.mxu0 0.0
        %1771 = vmatprep.subr.mxu0 0.0
        %1772 = vmatpush2.xpose.msra.mxu0 0.0
        %1773 = vmatprep.subr.mxu0 0.0
        %1774 = vmatpush2.xpose.msra.mxu0 0.0
        %1775 = vmatprep.subr.mxu0 0.0
        %1776 = vmatpush2.xpose.msra.mxu0 0.0
        %1777 = vmatprep.subr.mxu0 0.0
        %1778 = vmatpush2.xpose.msra.mxu0 0.0
        %1779 = vmatprep.subr.mxu0 0.0
        %1780 = vmatpush2.xpose.msra.mxu0 0.0
        %1781 = vmatprep.subr.mxu0 0.0
        %1782 = vmatpush2.xpose.msra.mxu0 0.0
        %1783 = vmatprep.subr.mxu0 0.0
        %1784 = vmatpush2.xpose.msra.mxu0 0.0
        %1785 = vmatprep.subr.mxu0 0.0
        %1786 = vmatpush2.xpose.msra.mxu0 0.0
        %1787 = vmatprep.mubr.f32.mxu0 0.0
        %1788 = vmatmul.mubr.f32.gmra.mxu0 %v1718
        %v1789 = vpop.f32.mrf.mxu0
        %v1790 = vadd.f32 0.0, %v1789
        %v1791 = vpop.f32.mrf.mxu0
        %1792 = vdwg.mxu0
        %v1793 = vsel %vm896, %v1790, -inf
        %1794 = vmax.xlane.f32.xlu0 %v1793
        %v1795 = vpop.xlane.xlu0 %1794
        %v1796 = vsub.f32 %v1790, %v1795
        %v1797 = vmul.f32 %v1796, 1.442695
        %v1798 = vpow.pop %v1797
        %v1799 = vsel %vm896, %v1798, 0.0
        %1800 = vadd.xlane.f32.xlu0 %v1799
        %v1801 = vpop.xlane.xlu0 %1800
        %v1802 = vrcp.pop %v1801
        %v1803 = vmul.f32 %v1798, %v1802
        %v1805 = vsel %vm896, %v1803, 0
        %1807 = vmatprep.subr.mxu0 0.0
        %1808 = vmatpush1.msra.mxu0 0.0
        %1809 = vmatprep.subr.mxu0 0.0
        %1810 = vmatpush1.msra.mxu0 0.0
        %1811 = vmatprep.subr.mxu0 0.0
        %1812 = vmatpush1.msra.mxu0 0.0
        %1813 = vmatprep.subr.mxu0 0.0
        %1814 = vmatpush1.msra.mxu0 0.0
        %1815 = vmatprep.subr.mxu0 0.0
        %1816 = vmatpush1.msra.mxu0 0.0
        %1817 = vmatprep.subr.mxu0 0.0
        %1818 = vmatpush1.msra.mxu0 0.0
        %1819 = vmatprep.subr.mxu0 0.0
        %1820 = vmatpush1.msra.mxu0 0.0
        %1821 = vmatprep.subr.mxu0 0.0
        %1822 = vmatpush1.msra.mxu0 0.0
        %1823 = vmatprep.subr.mxu0 0.0
        %1824 = vmatpush1.msra.mxu0 0.0
        %1825 = vmatprep.subr.mxu0 0.0
        %1826 = vmatpush1.msra.mxu0 0.0
        %1827 = vmatprep.subr.mxu0 0.0
        %1828 = vmatpush1.msra.mxu0 0.0
        %1829 = vmatprep.subr.mxu0 0.0
        %1830 = vmatpush1.msra.mxu0 0.0
        %1831 = vmatprep.subr.mxu0 0.0
        %1832 = vmatpush1.msra.mxu0 0.0
        %1833 = vmatprep.subr.mxu0 0.0
        %1834 = vmatpush1.msra.mxu0 0.0
        %1835 = vmatprep.subr.mxu0 0.0
        %1836 = vmatpush1.msra.mxu0 0.0
        %1837 = vmatprep.subr.mxu0 0.0
        %1838 = vmatpush1.msra.mxu0 %v1713
        %1839 = vmatprep.subr.mxu0 0.0
        %1840 = vmatpush2.msra.mxu0 0.0
        %1841 = vmatprep.subr.mxu0 0.0
        %1842 = vmatpush2.msra.mxu0 0.0
        %1843 = vmatprep.subr.mxu0 0.0
        %1844 = vmatpush2.msra.mxu0 0.0
        %1845 = vmatprep.subr.mxu0 0.0
        %1846 = vmatpush2.msra.mxu0 0.0
        %1847 = vmatprep.subr.mxu0 0.0
        %1848 = vmatpush2.msra.mxu0 0.0
        %1849 = vmatprep.subr.mxu0 0.0
        %1850 = vmatpush2.msra.mxu0 0.0
        %1851 = vmatprep.subr.mxu0 0.0
        %1852 = vmatpush2.msra.mxu0 0.0
        %1853 = vmatprep.subr.mxu0 0.0
        %1854 = vmatpush2.msra.mxu0 0.0
        %1855 = vmatprep.subr.mxu0 0.0
        %1856 = vmatpush2.msra.mxu0 0.0
        %1857 = vmatprep.subr.mxu0 0.0
        %1858 = vmatpush2.msra.mxu0 0.0
        %1859 = vmatprep.subr.mxu0 0.0
        %1860 = vmatpush2.msra.mxu0 0.0
        %1861 = vmatprep.subr.mxu0 0.0
        %1862 = vmatpush2.msra.mxu0 0.0
        %1863 = vmatprep.subr.mxu0 0.0
        %1864 = vmatpush2.msra.mxu0 0.0
        %1865 = vmatprep.subr.mxu0 0.0
        %1866 = vmatpush2.msra.mxu0 0.0
        %1867 = vmatprep.subr.mxu0 0.0
        %1868 = vmatpush2.msra.mxu0 0.0
        %1869 = vmatprep.subr.mxu0 0.0
        %1870 = vmatpush2.msra.mxu0 0.0
        %1871 = vmatprep.mubr.f32.mxu0 0.0
        %1872 = vmatmul.mubr.f32.gmra.mxu0 %v1805
        %v1873 = vpop.f32.mrf.mxu0
        %v1874 = vadd.f32 0.0, %v1873
        %v1875 = vpop.f32.mrf.mxu0
        %1876 = vdwg.mxu0
        %s1877 = scalar_lea.vmem %s2, 96
        %v1878 = vld [vmem:[%s1877] sm:$0xff]
        %v1879 = vld [vmem:[%s1877 + $0x8] sm:$0xff]
        %v1880 = vld [vmem:[%s1877 + $0x10] sm:$0xff]
        %v1881 = vld [vmem:[%s1877 + $0x18] sm:$0xff]
        %s1882 = scalar_lea.vmem %s3, 3
        %v1883 = vld [vmem:[%s1882] sm:$0x1]
        %v1885 = vlaneseq
        %v1886 = vshrl.u32 %v1885, 7
        %v1887 = vsub.s32 0, %v1886
        %v1888 = vrot.slane %v1883, %v1887
        %1890 = vmatprep.subr.mxu0 0.0
        %1891 = vmatpush1.msra.mxu0 0.0
        %1892 = vmatprep.subr.mxu0 0.0
        %1893 = vmatpush1.msra.mxu0 0.0
        %1894 = vmatprep.subr.mxu0 0.0
        %1895 = vmatpush1.msra.mxu0 0.0
        %1896 = vmatprep.subr.mxu0 0.0
        %1897 = vmatpush1.msra.mxu0 0.0
        %1898 = vmatprep.subr.mxu0 0.0
        %1899 = vmatpush1.msra.mxu0 0.0
        %1900 = vmatprep.subr.mxu0 0.0
        %1901 = vmatpush1.msra.mxu0 0.0
        %1902 = vmatprep.subr.mxu0 0.0
        %1903 = vmatpush1.msra.mxu0 0.0
        %1904 = vmatprep.subr.mxu0 0.0
        %1905 = vmatpush1.msra.mxu0 0.0
        %1906 = vmatprep.subr.mxu0 0.0
        %1907 = vmatpush1.msra.mxu0 0.0
        %1908 = vmatprep.subr.mxu0 0.0
        %1909 = vmatpush1.msra.mxu0 0.0
        %1910 = vmatprep.subr.mxu0 0.0
        %1911 = vmatpush1.msra.mxu0 0.0
        %1912 = vmatprep.subr.mxu0 0.0
        %1913 = vmatpush1.msra.mxu0 0.0
        %1914 = vmatprep.subr.mxu0 0.0
        %1915 = vmatpush1.msra.mxu0 %v1881
        %1916 = vmatprep.subr.mxu0 0.0
        %1917 = vmatpush1.msra.mxu0 %v1880
        %1918 = vmatprep.subr.mxu0 0.0
        %1919 = vmatpush1.msra.mxu0 %v1879
        %1920 = vmatprep.subr.mxu0 0.0
        %1921 = vmatpush1.msra.mxu0 %v1878
        %1922 = vmatprep.subr.mxu0 0.0
        %1923 = vmatpush2.msra.mxu0 0.0
        %1924 = vmatprep.subr.mxu0 0.0
        %1925 = vmatpush2.msra.mxu0 0.0
        %1926 = vmatprep.subr.mxu0 0.0
        %1927 = vmatpush2.msra.mxu0 0.0
        %1928 = vmatprep.subr.mxu0 0.0
        %1929 = vmatpush2.msra.mxu0 0.0
        %1930 = vmatprep.subr.mxu0 0.0
        %1931 = vmatpush2.msra.mxu0 0.0
        %1932 = vmatprep.subr.mxu0 0.0
        %1933 = vmatpush2.msra.mxu0 0.0
        %1934 = vmatprep.subr.mxu0 0.0
        %1935 = vmatpush2.msra.mxu0 0.0
        %1936 = vmatprep.subr.mxu0 0.0
        %1937 = vmatpush2.msra.mxu0 0.0
        %1938 = vmatprep.subr.mxu0 0.0
        %1939 = vmatpush2.msra.mxu0 0.0
        %1940 = vmatprep.subr.mxu0 0.0
        %1941 = vmatpush2.msra.mxu0 0.0
        %1942 = vmatprep.subr.mxu0 0.0
        %1943 = vmatpush2.msra.mxu0 0.0
        %1944 = vmatprep.subr.mxu0 0.0
        %1945 = vmatpush2.msra.mxu0 0.0
        %1946 = vmatprep.subr.mxu0 0.0
        %1947 = vmatpush2.msra.mxu0 0.0
        %1948 = vmatprep.subr.mxu0 0.0
        %1949 = vmatpush2.msra.mxu0 0.0
        %1950 = vmatprep.subr.mxu0 0.0
        %1951 = vmatpush2.msra.mxu0 0.0
        %1952 = vmatprep.subr.mxu0 0.0
        %1953 = vmatpush2.msra.mxu0 0.0
        %1954 = vmatprep.mubr.f32.mxu0 0.0
        %1955 = vmatmul.mubr.f32.gmra.mxu0 %v657
        %v1956 = vpop.f32.mrf.mxu0
        %v1957 = vadd.f32 %v1888, %v1956
        %v1958 = vpop.f32.mrf.mxu0
        %1959 = vdwg.mxu0
        %s1960 = scalar_lea.vmem %s2, 224
        %v1961 = vld [vmem:[%s1960] sm:$0xff]
        %v1962 = vld [vmem:[%s1960 + $0x8] sm:$0xff]
        %v1963 = vld [vmem:[%s1960 + $0x10] sm:$0xff]
        %v1964 = vld [vmem:[%s1960 + $0x18] sm:$0xff]
        %s1965 = scalar_lea.vmem %s3, 7
        %v1966 = vld [vmem:[%s1965] sm:$0x1]
        %v1968 = vlaneseq
        %v1969 = vshrl.u32 %v1968, 7
        %v1970 = vsub.s32 0, %v1969
        %v1971 = vrot.slane %v1966, %v1970
        %1973 = vmatprep.subr.mxu0 0.0
        %1974 = vmatpush1.msra.mxu0 0.0
        %1975 = vmatprep.subr.mxu0 0.0
        %1976 = vmatpush1.msra.mxu0 0.0
        %1977 = vmatprep.subr.mxu0 0.0
        %1978 = vmatpush1.msra.mxu0 0.0
        %1979 = vmatprep.subr.mxu0 0.0
        %1980 = vmatpush1.msra.mxu0 0.0
        %1981 = vmatprep.subr.mxu0 0.0
        %1982 = vmatpush1.msra.mxu0 0.0
        %1983 = vmatprep.subr.mxu0 0.0
        %1984 = vmatpush1.msra.mxu0 0.0
        %1985 = vmatprep.subr.mxu0 0.0
        %1986 = vmatpush1.msra.mxu0 0.0
        %1987 = vmatprep.subr.mxu0 0.0
        %1988 = vmatpush1.msra.mxu0 0.0
        %1989 = vmatprep.subr.mxu0 0.0
        %1990 = vmatpush1.msra.mxu0 0.0
        %1991 = vmatprep.subr.mxu0 0.0
        %1992 = vmatpush1.msra.mxu0 0.0
        %1993 = vmatprep.subr.mxu0 0.0
        %1994 = vmatpush1.msra.mxu0 0.0
        %1995 = vmatprep.subr.mxu0 0.0
        %1996 = vmatpush1.msra.mxu0 0.0
        %1997 = vmatprep.subr.mxu0 0.0
        %1998 = vmatpush1.msra.mxu0 %v1964
        %1999 = vmatprep.subr.mxu0 0.0
        %2000 = vmatpush1.msra.mxu0 %v1963
        %2001 = vmatprep.subr.mxu0 0.0
        %2002 = vmatpush1.msra.mxu0 %v1962
        %2003 = vmatprep.subr.mxu0 0.0
        %2004 = vmatpush1.msra.mxu0 %v1961
        %2005 = vmatprep.subr.mxu0 0.0
        %2006 = vmatpush2.msra.mxu0 0.0
        %2007 = vmatprep.subr.mxu0 0.0
        %2008 = vmatpush2.msra.mxu0 0.0
        %2009 = vmatprep.subr.mxu0 0.0
        %2010 = vmatpush2.msra.mxu0 0.0
        %2011 = vmatprep.subr.mxu0 0.0
        %2012 = vmatpush2.msra.mxu0 0.0
        %2013 = vmatprep.subr.mxu0 0.0
        %2014 = vmatpush2.msra.mxu0 0.0
        %2015 = vmatprep.subr.mxu0 0.0
        %2016 = vmatpush2.msra.mxu0 0.0
        %2017 = vmatprep.subr.mxu0 0.0
        %2018 = vmatpush2.msra.mxu0 0.0
        %2019 = vmatprep.subr.mxu0 0.0
        %2020 = vmatpush2.msra.mxu0 0.0
        %2021 = vmatprep.subr.mxu0 0.0
        %2022 = vmatpush2.msra.mxu0 0.0
        %2023 = vmatprep.subr.mxu0 0.0
        %2024 = vmatpush2.msra.mxu0 0.0
        %2025 = vmatprep.subr.mxu0 0.0
        %2026 = vmatpush2.msra.mxu0 0.0
        %2027 = vmatprep.subr.mxu0 0.0
        %2028 = vmatpush2.msra.mxu0 0.0
        %2029 = vmatprep.subr.mxu0 0.0
        %2030 = vmatpush2.msra.mxu0 0.0
        %2031 = vmatprep.subr.mxu0 0.0
        %2032 = vmatpush2.msra.mxu0 0.0
        %2033 = vmatprep.subr.mxu0 0.0
        %2034 = vmatpush2.msra.mxu0 0.0
        %2035 = vmatprep.subr.mxu0 0.0
        %2036 = vmatpush2.msra.mxu0 0.0
        %2037 = vmatprep.mubr.f32.mxu0 0.0
        %2038 = vmatmul.mubr.f32.gmra.mxu0 %v657
        %v2039 = vpop.f32.mrf.mxu0
        %v2040 = vadd.f32 %v1971, %v2039
        %v2041 = vpop.f32.mrf.mxu0
        %2042 = vdwg.mxu0
        %s2043 = scalar_lea.vmem %s2, 352
        %v2044 = vld [vmem:[%s2043] sm:$0xff]
        %v2045 = vld [vmem:[%s2043 + $0x8] sm:$0xff]
        %v2046 = vld [vmem:[%s2043 + $0x10] sm:$0xff]
        %v2047 = vld [vmem:[%s2043 + $0x18] sm:$0xff]
        %s2048 = scalar_lea.vmem %s3, 11
        %v2049 = vld [vmem:[%s2048] sm:$0x1]
        %v2051 = vlaneseq
        %v2052 = vshrl.u32 %v2051, 7
        %v2053 = vsub.s32 0, %v2052
        %v2054 = vrot.slane %v2049, %v2053
        %2056 = vmatprep.subr.mxu0 0.0
        %2057 = vmatpush1.msra.mxu0 0.0
        %2058 = vmatprep.subr.mxu0 0.0
        %2059 = vmatpush1.msra.mxu0 0.0
        %2060 = vmatprep.subr.mxu0 0.0
        %2061 = vmatpush1.msra.mxu0 0.0
        %2062 = vmatprep.subr.mxu0 0.0
        %2063 = vmatpush1.msra.mxu0 0.0
        %2064 = vmatprep.subr.mxu0 0.0
        %2065 = vmatpush1.msra.mxu0 0.0
        %2066 = vmatprep.subr.mxu0 0.0
        %2067 = vmatpush1.msra.mxu0 0.0
        %2068 = vmatprep.subr.mxu0 0.0
        %2069 = vmatpush1.msra.mxu0 0.0
        %2070 = vmatprep.subr.mxu0 0.0
        %2071 = vmatpush1.msra.mxu0 0.0
        %2072 = vmatprep.subr.mxu0 0.0
        %2073 = vmatpush1.msra.mxu0 0.0
        %2074 = vmatprep.subr.mxu0 0.0
        %2075 = vmatpush1.msra.mxu0 0.0
        %2076 = vmatprep.subr.mxu0 0.0
        %2077 = vmatpush1.msra.mxu0 0.0
        %2078 = vmatprep.subr.mxu0 0.0
        %2079 = vmatpush1.msra.mxu0 0.0
        %2080 = vmatprep.subr.mxu0 0.0
        %2081 = vmatpush1.msra.mxu0 %v2047
        %2082 = vmatprep.subr.mxu0 0.0
        %2083 = vmatpush1.msra.mxu0 %v2046
        %2084 = vmatprep.subr.mxu0 0.0
        %2085 = vmatpush1.msra.mxu0 %v2045
        %2086 = vmatprep.subr.mxu0 0.0
        %2087 = vmatpush1.msra.mxu0 %v2044
        %2088 = vmatprep.subr.mxu0 0.0
        %2089 = vmatpush2.msra.mxu0 0.0
        %2090 = vmatprep.subr.mxu0 0.0
        %2091 = vmatpush2.msra.mxu0 0.0
        %2092 = vmatprep.subr.mxu0 0.0
        %2093 = vmatpush2.msra.mxu0 0.0
        %2094 = vmatprep.subr.mxu0 0.0
        %2095 = vmatpush2.msra.mxu0 0.0
        %2096 = vmatprep.subr.mxu0 0.0
        %2097 = vmatpush2.msra.mxu0 0.0
        %2098 = vmatprep.subr.mxu0 0.0
        %2099 = vmatpush2.msra.mxu0 0.0
        %2100 = vmatprep.subr.mxu0 0.0
        %2101 = vmatpush2.msra.mxu0 0.0
        %2102 = vmatprep.subr.mxu0 0.0
        %2103 = vmatpush2.msra.mxu0 0.0
        %2104 = vmatprep.subr.mxu0 0.0
        %2105 = vmatpush2.msra.mxu0 0.0
        %2106 = vmatprep.subr.mxu0 0.0
        %2107 = vmatpush2.msra.mxu0 0.0
        %2108 = vmatprep.subr.mxu0 0.0
        %2109 = vmatpush2.msra.mxu0 0.0
        %2110 = vmatprep.subr.mxu0 0.0
        %2111 = vmatpush2.msra.mxu0 0.0
        %2112 = vmatprep.subr.mxu0 0.0
        %2113 = vmatpush2.msra.mxu0 0.0
        %2114 = vmatprep.subr.mxu0 0.0
        %2115 = vmatpush2.msra.mxu0 0.0
        %2116 = vmatprep.subr.mxu0 0.0
        %2117 = vmatpush2.msra.mxu0 0.0
        %2118 = vmatprep.subr.mxu0 0.0
        %2119 = vmatpush2.msra.mxu0 0.0
        %2120 = vmatprep.mubr.f32.mxu0 0.0
        %2121 = vmatmul.mubr.f32.gmra.mxu0 %v657
        %v2122 = vpop.f32.mrf.mxu0
        %v2123 = vadd.f32 %v2054, %v2122
        %v2124 = vpop.f32.mrf.mxu0
        %2125 = vdwg.mxu0
        %v2126 = vmul.f32 %v1957, 0.35355338
        %v2128 = vsel %vm896, %v2126, 0
        %v2131 = vsel %vm896, %v2040, 0
        %2133 = vmatprep.subr.mxu0 0.0
        %2134 = vmatpush1.xpose.msra.mxu0 0.0
        %2135 = vmatprep.subr.mxu0 0.0
        %2136 = vmatpush1.xpose.msra.mxu0 0.0
        %2137 = vmatprep.subr.mxu0 0.0
        %2138 = vmatpush1.xpose.msra.mxu0 0.0
        %2139 = vmatprep.subr.mxu0 0.0
        %2140 = vmatpush1.xpose.msra.mxu0 0.0
        %2141 = vmatprep.subr.mxu0 0.0
        %2142 = vmatpush1.xpose.msra.mxu0 0.0
        %2143 = vmatprep.subr.mxu0 0.0
        %2144 = vmatpush1.xpose.msra.mxu0 0.0
        %2145 = vmatprep.subr.mxu0 0.0
        %2146 = vmatpush1.xpose.msra.mxu0 0.0
        %2147 = vmatprep.subr.mxu0 0.0
        %2148 = vmatpush1.xpose.msra.mxu0 0.0
        %2149 = vmatprep.subr.mxu0 0.0
        %2150 = vmatpush1.xpose.msra.mxu0 0.0
        %2151 = vmatprep.subr.mxu0 0.0
        %2152 = vmatpush1.xpose.msra.mxu0 0.0
        %2153 = vmatprep.subr.mxu0 0.0
        %2154 = vmatpush1.xpose.msra.mxu0 0.0
        %2155 = vmatprep.subr.mxu0 0.0
        %2156 = vmatpush1.xpose.msra.mxu0 0.0
        %2157 = vmatprep.subr.mxu0 0.0
        %2158 = vmatpush1.xpose.msra.mxu0 0.0
        %2159 = vmatprep.subr.mxu0 0.0
        %2160 = vmatpush1.xpose.msra.mxu0 0.0
        %2161 = vmatprep.subr.mxu0 0.0
        %2162 = vmatpush1.xpose.msra.mxu0 0.0
        %2163 = vmatprep.subr.mxu0 0.0
        %2164 = vmatpush1.xpose.msra.mxu0 %v2131
        %2165 = vmatprep.subr.mxu0 0.0
        %2166 = vmatpush2.xpose.msra.mxu0 0.0
        %2167 = vmatprep.subr.mxu0 0.0
        %2168 = vmatpush2.xpose.msra.mxu0 0.0
        %2169 = vmatprep.subr.mxu0 0.0
        %2170 = vmatpush2.xpose.msra.mxu0 0.0
        %2171 = vmatprep.subr.mxu0 0.0
        %2172 = vmatpush2.xpose.msra.mxu0 0.0
        %2173 = vmatprep.subr.mxu0 0.0
        %2174 = vmatpush2.xpose.msra.mxu0 0.0
        %2175 = vmatprep.subr.mxu0 0.0
        %2176 = vmatpush2.xpose.msra.mxu0 0.0
        %2177 = vmatprep.subr.mxu0 0.0
        %2178 = vmatpush2.xpose.msra.mxu0 0.0
        %2179 = vmatprep.subr.mxu0 0.0
        %2180 = vmatpush2.xpose.msra.mxu0 0.0
        %2181 = vmatprep.subr.mxu0 0.0
        %2182 = vmatpush2.xpose.msra.mxu0 0.0
        %2183 = vmatprep.subr.mxu0 0.0
        %2184 = vmatpush2.xpose.msra.mxu0 0.0
        %2185 = vmatprep.subr.mxu0 0.0
        %2186 = vmatpush2.xpose.msra.mxu0 0.0
        %2187 = vmatprep.subr.mxu0 0.0
        %2188 = vmatpush2.xpose.msra.mxu0 0.0
        %2189 = vmatprep.subr.mxu0 0.0
        %2190 = vmatpush2.xpose.msra.mxu0 0.0
        %2191 = vmatprep.subr.mxu0 0.0
        %2192 = vmatpush2.xpose.msra.mxu0 0.0
        %2193 = vmatprep.subr.mxu0 0.0
        %2194 = vmatpush2.xpose.msra.mxu0 0.0
        %2195 = vmatprep.subr.mxu0 0.0
        %2196 = vmatpush2.xpose.msra.mxu0 0.0
        %2197 = vmatprep.mubr.f32.mxu0 0.0
        %2198 = vmatmul.mubr.f32.gmra.mxu0 %v2128
        %v2199 = vpop.f32.mrf.mxu0
        %v2200 = vadd.f32 0.0, %v2199
        %v2201 = vpop.f32.mrf.mxu0
        %2202 = vdwg.mxu0
        %v2203 = vsel %vm896, %v2200, -inf
        %2204 = vmax.xlane.f32.xlu0 %v2203
        %v2205 = vpop.xlane.xlu0 %2204
        %v2206 = vsub.f32 %v2200, %v2205
        %v2207 = vmul.f32 %v2206, 1.442695
        %v2208 = vpow.pop %v2207
        %v2209 = vsel %vm896, %v2208, 0.0
        %2210 = vadd.xlane.f32.xlu0 %v2209
        %v2211 = vpop.xlane.xlu0 %2210
        %v2212 = vrcp.pop %v2211
        %v2213 = vmul.f32 %v2208, %v2212
        %v2215 = vsel %vm896, %v2213, 0
        %2217 = vmatprep.subr.mxu0 0.0
        %2218 = vmatpush1.msra.mxu0 0.0
        %2219 = vmatprep.subr.mxu0 0.0
        %2220 = vmatpush1.msra.mxu0 0.0
        %2221 = vmatprep.subr.mxu0 0.0
        %2222 = vmatpush1.msra.mxu0 0.0
        %2223 = vmatprep.subr.mxu0 0.0
        %2224 = vmatpush1.msra.mxu0 0.0
        %2225 = vmatprep.subr.mxu0 0.0
        %2226 = vmatpush1.msra.mxu0 0.0
        %2227 = vmatprep.subr.mxu0 0.0
        %2228 = vmatpush1.msra.mxu0 0.0
        %2229 = vmatprep.subr.mxu0 0.0
        %2230 = vmatpush1.msra.mxu0 0.0
        %2231 = vmatprep.subr.mxu0 0.0
        %2232 = vmatpush1.msra.mxu0 0.0
        %2233 = vmatprep.subr.mxu0 0.0
        %2234 = vmatpush1.msra.mxu0 0.0
        %2235 = vmatprep.subr.mxu0 0.0
        %2236 = vmatpush1.msra.mxu0 0.0
        %2237 = vmatprep.subr.mxu0 0.0
        %2238 = vmatpush1.msra.mxu0 0.0
        %2239 = vmatprep.subr.mxu0 0.0
        %2240 = vmatpush1.msra.mxu0 0.0
        %2241 = vmatprep.subr.mxu0 0.0
        %2242 = vmatpush1.msra.mxu0 0.0
        %2243 = vmatprep.subr.mxu0 0.0
        %2244 = vmatpush1.msra.mxu0 0.0
        %2245 = vmatprep.subr.mxu0 0.0
        %2246 = vmatpush1.msra.mxu0 0.0
        %2247 = vmatprep.subr.mxu0 0.0
        %2248 = vmatpush1.msra.mxu0 %v2123
        %2249 = vmatprep.subr.mxu0 0.0
        %2250 = vmatpush2.msra.mxu0 0.0
        %2251 = vmatprep.subr.mxu0 0.0
        %2252 = vmatpush2.msra.mxu0 0.0
        %2253 = vmatprep.subr.mxu0 0.0
        %2254 = vmatpush2.msra.mxu0 0.0
        %2255 = vmatprep.subr.mxu0 0.0
        %2256 = vmatpush2.msra.mxu0 0.0
        %2257 = vmatprep.subr.mxu0 0.0
        %2258 = vmatpush2.msra.mxu0 0.0
        %2259 = vmatprep.subr.mxu0 0.0
        %2260 = vmatpush2.msra.mxu0 0.0
        %2261 = vmatprep.subr.mxu0 0.0
        %2262 = vmatpush2.msra.mxu0 0.0
        %2263 = vmatprep.subr.mxu0 0.0
        %2264 = vmatpush2.msra.mxu0 0.0
        %2265 = vmatprep.subr.mxu0 0.0
        %2266 = vmatpush2.msra.mxu0 0.0
        %2267 = vmatprep.subr.mxu0 0.0
        %2268 = vmatpush2.msra.mxu0 0.0
        %2269 = vmatprep.subr.mxu0 0.0
        %2270 = vmatpush2.msra.mxu0 0.0
        %2271 = vmatprep.subr.mxu0 0.0
        %2272 = vmatpush2.msra.mxu0 0.0
        %2273 = vmatprep.subr.mxu0 0.0
        %2274 = vmatpush2.msra.mxu0 0.0
        %2275 = vmatprep.subr.mxu0 0.0
        %2276 = vmatpush2.msra.mxu0 0.0
        %2277 = vmatprep.subr.mxu0 0.0
        %2278 = vmatpush2.msra.mxu0 0.0
        %2279 = vmatprep.subr.mxu0 0.0
        %2280 = vmatpush2.msra.mxu0 0.0
        %2281 = vmatprep.mubr.f32.mxu0 0.0
        %2282 = vmatmul.mubr.f32.gmra.mxu0 %v2215
        %v2283 = vpop.f32.mrf.mxu0
        %v2284 = vadd.f32 0.0, %v2283
        %v2285 = vpop.f32.mrf.mxu0
        %2286 = vdwg.mxu0
        %2288 = vrot.lane.b32.xlu0 %v1464, 8
        %v2289 = vpop.permute.xlu0 %2288
        %2292 = vrot.lane.b32.xlu0 %v1874, 16
        %v2293 = vpop.permute.xlu0 %2292
        %2296 = vrot.lane.b32.xlu0 %v2284, 24
        %v2297 = vpop.permute.xlu0 %2296
        %v2299 = vsel %vm896, %v1054, %v2289
        %vm2300 = vcmask 130048
        %v2301 = vsel %vm2300, %v2299, %v2293
        %vm2302 = vcmask 195584
        %v2303 = vsel %vm2302, %v2301, %v2297
        %v2304 = vld [vmem:[%s4] sm:$0xff]
        %v2305 = vld [vmem:[%s4 + $0x8] sm:$0xff]
        %v2306 = vld [vmem:[%s4 + $0x10] sm:$0xff]
        %v2307 = vld [vmem:[%s4 + $0x18] sm:$0xff]
        %v2308 = vld [vmem:[%s5] sm:$0x1]
        %v2310 = vlaneseq
        %v2311 = vshrl.u32 %v2310, 7
        %v2312 = vsub.s32 0, %v2311
        %v2313 = vrot.slane %v2308, %v2312
        %v2316 = vsel %vm655, %v2303, 0
        %2318 = vmatprep.subr.mxu0 0.0
        %2319 = vmatpush1.msra.mxu0 0.0
        %2320 = vmatprep.subr.mxu0 0.0
        %2321 = vmatpush1.msra.mxu0 0.0
        %2322 = vmatprep.subr.mxu0 0.0
        %2323 = vmatpush1.msra.mxu0 0.0
        %2324 = vmatprep.subr.mxu0 0.0
        %2325 = vmatpush1.msra.mxu0 0.0
        %2326 = vmatprep.subr.mxu0 0.0
        %2327 = vmatpush1.msra.mxu0 0.0
        %2328 = vmatprep.subr.mxu0 0.0
        %2329 = vmatpush1.msra.mxu0 0.0
        %2330 = vmatprep.subr.mxu0 0.0
        %2331 = vmatpush1.msra.mxu0 0.0
        %2332 = vmatprep.subr.mxu0 0.0
        %2333 = vmatpush1.msra.mxu0 0.0
        %2334 = vmatprep.subr.mxu0 0.0
        %2335 = vmatpush1.msra.mxu0 0.0
        %2336 = vmatprep.subr.mxu0 0.0
        %2337 = vmatpush1.msra.mxu0 0.0
        %2338 = vmatprep.subr.mxu0 0.0
        %2339 = vmatpush1.msra.mxu0 0.0
        %2340 = vmatprep.subr.mxu0 0.0
        %2341 = vmatpush1.msra.mxu0 0.0
        %2342 = vmatprep.subr.mxu0 0.0
        %2343 = vmatpush1.msra.mxu0 %v2307
        %2344 = vmatprep.subr.mxu0 0.0
        %2345 = vmatpush1.msra.mxu0 %v2306
        %2346 = vmatprep.subr.mxu0 0.0
        %2347 = vmatpush1.msra.mxu0 %v2305
        %2348 = vmatprep.subr.mxu0 0.0
        %2349 = vmatpush1.msra.mxu0 %v2304
        %2350 = vmatprep.subr.mxu0 0.0
        %2351 = vmatpush2.msra.mxu0 0.0
        %2352 = vmatprep.subr.mxu0 0.0
        %2353 = vmatpush2.msra.mxu0 0.0
        %2354 = vmatprep.subr.mxu0 0.0
        %2355 = vmatpush2.msra.mxu0 0.0
        %2356 = vmatprep.subr.mxu0 0.0
        %2357 = vmatpush2.msra.mxu0 0.0
        %2358 = vmatprep.subr.mxu0 0.0
        %2359 = vmatpush2.msra.mxu0 0.0
        %2360 = vmatprep.subr.mxu0 0.0
        %2361 = vmatpush2.msra.mxu0 0.0
        %2362 = vmatprep.subr.mxu0 0.0
        %2363 = vmatpush2.msra.mxu0 0.0
        %2364 = vmatprep.subr.mxu0 0.0
        %2365 = vmatpush2.msra.mxu0 0.0
        %2366 = vmatprep.subr.mxu0 0.0
        %2367 = vmatpush2.msra.mxu0 0.0
        %2368 = vmatprep.subr.mxu0 0.0
        %2369 = vmatpush2.msra.mxu0 0.0
        %2370 = vmatprep.subr.mxu0 0.0
        %2371 = vmatpush2.msra.mxu0 0.0
        %2372 = vmatprep.subr.mxu0 0.0
        %2373 = vmatpush2.msra.mxu0 0.0
        %2374 = vmatprep.subr.mxu0 0.0
        %2375 = vmatpush2.msra.mxu0 0.0
        %2376 = vmatprep.subr.mxu0 0.0
        %2377 = vmatpush2.msra.mxu0 0.0
        %2378 = vmatprep.subr.mxu0 0.0
        %2379 = vmatpush2.msra.mxu0 0.0
        %2380 = vmatprep.subr.mxu0 0.0
        %2381 = vmatpush2.msra.mxu0 0.0
        %2382 = vmatprep.mubr.f32.mxu0 0.0
        %2383 = vmatmul.mubr.f32.gmra.mxu0 %v2316
        %v2384 = vpop.f32.mrf.mxu0
        %v2385 = vadd.f32 %v2313, %v2384
        %v2386 = vpop.f32.mrf.mxu0
        %2387 = vdwg.mxu0
        %v2388 = vadd.f32 %v642, %v2385
        %v2389 = vld [vmem:[%s6] sm:$0x1]
        %v2390 = vld [vmem:[%s7] sm:$0x1]
        %v2391 = vsel %vm655, %v2388, 0.0
        %2392 = vadd.xlane.f32.xlu0 %v2391
        %v2393 = vpop.xlane.xlu0 %2392
        %v2394 = vrcp.pop 32.0
        %v2395 = vmul.f32 %v2393, %v2394
        %v2396 = vmul.f32 %v2388, %v2388
        %v2397 = vsel %vm655, %v2396, 0.0
        %2398 = vadd.xlane.f32.xlu0 %v2397
        %v2399 = vpop.xlane.xlu0 %2398
        %v2400 = vmul.f32 %v2399, %v2394
        %v2401 = vmul.f32 %v2395, %v2395
        %v2402 = vsub.f32 %v2400, %v2401
        %v2403 = vsub.f32 %v2388, %v2395
        %v2404 = vadd.f32 %v2402, 1e-05
        %v2405 = vrsqrt.pop %v2404
        %v2406 = vmul.f32 %v2403, %v2405
        %v2408 = vlaneseq
        %v2409 = vshrl.u32 %v2408, 7
        %v2410 = vsub.s32 0, %v2409
        %v2411 = vrot.slane %v2389, %v2410
        %v2413 = vmul.f32 %v2406, %v2411
        %v2415 = vlaneseq
        %v2416 = vshrl.u32 %v2415, 7
        %v2417 = vsub.s32 0, %v2416
        %v2418 = vrot.slane %v2390, %v2417
        %v2420 = vadd.f32 %v2413, %v2418
        %v2421 = vld [vmem:[%s8] sm:$0xff]
        %v2422 = vld [vmem:[%s8 + $0x8] sm:$0xff]
        %v2423 = vld [vmem:[%s8 + $0x10] sm:$0xff]
        %v2424 = vld [vmem:[%s8 + $0x18] sm:$0xff]
        %v2425 = vld [vmem:[%s9] sm:$0x1]
        %v2427 = vlaneseq
        %v2428 = vshrl.u32 %v2427, 7
        %v2429 = vsub.s32 0, %v2428
        %v2430 = vrot.slane %v2425, %v2429
        %v2433 = vsel %vm655, %v2420, 0
        %2435 = vmatprep.subr.mxu0 0.0
        %2436 = vmatpush1.msra.mxu0 0.0
        %2437 = vmatprep.subr.mxu0 0.0
        %2438 = vmatpush1.msra.mxu0 0.0
        %2439 = vmatprep.subr.mxu0 0.0
        %2440 = vmatpush1.msra.mxu0 0.0
        %2441 = vmatprep.subr.mxu0 0.0
        %2442 = vmatpush1.msra.mxu0 0.0
        %2443 = vmatprep.subr.mxu0 0.0
        %2444 = vmatpush1.msra.mxu0 0.0
        %2445 = vmatprep.subr.mxu0 0.0
        %2446 = vmatpush1.msra.mxu0 0.0
        %2447 = vmatprep.subr.mxu0 0.0
        %2448 = vmatpush1.msra.mxu0 0.0
        %2449 = vmatprep.subr.mxu0 0.0
        %2450 = vmatpush1.msra.mxu0 0.0
        %2451 = vmatprep.subr.mxu0 0.0
        %2452 = vmatpush1.msra.mxu0 0.0
        %2453 = vmatprep.subr.mxu0 0.0
        %2454 = vmatpush1.msra.mxu0 0.0
        %2455 = vmatprep.subr.mxu0 0.0
        %2456 = vmatpush1.msra.mxu0 0.0
        %2457 = vmatprep.subr.mxu0 0.0
        %2458 = vmatpush1.msra.mxu0 0.0
        %2459 = vmatprep.subr.mxu0 0.0
        %2460 = vmatpush1.msra.mxu0 %v2424
        %2461 = vmatprep.subr.mxu0 0.0
        %2462 = vmatpush1.msra.mxu0 %v2423
        %2463 = vmatprep.subr.mxu0 0.0
        %2464 = vmatpush1.msra.mxu0 %v2422
        %2465 = vmatprep.subr.mxu0 0.0
        %2466 = vmatpush1.msra.mxu0 %v2421
        %2467 = vmatprep.subr.mxu0 0.0
        %2468 = vmatpush2.msra.mxu0 0.0
        %2469 = vmatprep.subr.mxu0 0.0
        %2470 = vmatpush2.msra.mxu0 0.0
        %2471 = vmatprep.subr.mxu0 0.0
        %2472 = vmatpush2.msra.mxu0 0.0
        %2473 = vmatprep.subr.mxu0 0.0
        %2474 = vmatpush2.msra.mxu0 0.0
        %2475 = vmatprep.subr.mxu0 0.0
        %2476 = vmatpush2.msra.mxu0 0.0
        %2477 = vmatprep.subr.mxu0 0.0
        %2478 = vmatpush2.msra.mxu0 0.0
        %2479 = vmatprep.subr.mxu0 0.0
        %2480 = vmatpush2.msra.mxu0 0.0
        %2481 = vmatprep.subr.mxu0 0.0
        %2482 = vmatpush2.msra.mxu0 0.0
        %2483 = vmatprep.subr.mxu0 0.0
        %2484 = vmatpush2.msra.mxu0 0.0
        %2485 = vmatprep.subr.mxu0 0.0
        %2486 = vmatpush2.msra.mxu0 0.0
        %2487 = vmatprep.subr.mxu0 0.0
        %2488 = vmatpush2.msra.mxu0 0.0
        %2489 = vmatprep.subr.mxu0 0.0
        %2490 = vmatpush2.msra.mxu0 0.0
        %2491 = vmatprep.subr.mxu0 0.0
        %2492 = vmatpush2.msra.mxu0 0.0
        %2493 = vmatprep.subr.mxu0 0.0
        %2494 = vmatpush2.msra.mxu0 0.0
        %2495 = vmatprep.subr.mxu0 0.0
        %2496 = vmatpush2.msra.mxu0 0.0
        %2497 = vmatprep.subr.mxu0 0.0
        %2498 = vmatpush2.msra.mxu0 0.0
        %2499 = vmatprep.mubr.f32.mxu0 0.0
        %2500 = vmatmul.mubr.f32.gmra.mxu0 %v2433
        %v2501 = vpop.f32.mrf.mxu0
        %v2502 = vadd.f32 %v2430, %v2501
        %v2503 = vpop.f32.mrf.mxu0
        %2504 = vdwg.mxu0
        %s2505 = scalar_lea.vmem %s8, 128
        %v2506 = vld [vmem:[%s2505] sm:$0xff]
        %v2507 = vld [vmem:[%s2505 + $0x8] sm:$0xff]
        %v2508 = vld [vmem:[%s2505 + $0x10] sm:$0xff]
        %v2509 = vld [vmem:[%s2505 + $0x18] sm:$0xff]
        %s2510 = scalar_lea.vmem %s9, 4
        %v2511 = vld [vmem:[%s2510] sm:$0x1]
        %v2513 = vlaneseq
        %v2514 = vshrl.u32 %v2513, 7
        %v2515 = vsub.s32 0, %v2514
        %v2516 = vrot.slane %v2511, %v2515
        %v2519 = vsel %vm655, %v643, 0
        %2521 = vmatprep.subr.mxu0 0.0
        %2522 = vmatpush1.msra.mxu0 0.0
        %2523 = vmatprep.subr.mxu0 0.0
        %2524 = vmatpush1.msra.mxu0 0.0
        %2525 = vmatprep.subr.mxu0 0.0
        %2526 = vmatpush1.msra.mxu0 0.0
        %2527 = vmatprep.subr.mxu0 0.0
        %2528 = vmatpush1.msra.mxu0 0.0
        %2529 = vmatprep.subr.mxu0 0.0
        %2530 = vmatpush1.msra.mxu0 0.0
        %2531 = vmatprep.subr.mxu0 0.0
        %2532 = vmatpush1.msra.mxu0 0.0
        %2533 = vmatprep.subr.mxu0 0.0
        %2534 = vmatpush1.msra.mxu0 0.0
        %2535 = vmatprep.subr.mxu0 0.0
        %2536 = vmatpush1.msra.mxu0 0.0
        %2537 = vmatprep.subr.mxu0 0.0
        %2538 = vmatpush1.msra.mxu0 0.0
        %2539 = vmatprep.subr.mxu0 0.0
        %2540 = vmatpush1.msra.mxu0 0.0
        %2541 = vmatprep.subr.mxu0 0.0
        %2542 = vmatpush1.msra.mxu0 0.0
        %2543 = vmatprep.subr.mxu0 0.0
        %2544 = vmatpush1.msra.mxu0 0.0
        %2545 = vmatprep.subr.mxu0 0.0
        %2546 = vmatpush1.msra.mxu0 %v2509
        %2547 = vmatprep.subr.mxu0 0.0
        %2548 = vmatpush1.msra.mxu0 %v2508
        %2549 = vmatprep.subr.mxu0 0.0
        %2550 = vmatpush1.msra.mxu0 %v2507
        %2551 = vmatprep.subr.mxu0 0.0
        %2552 = vmatpush1.msra.mxu0 %v2506
        %2553 = vmatprep.subr.mxu0 0.0
        %2554 = vmatpush2.msra.mxu0 0.0
        %2555 = vmatprep.subr.mxu0 0.0
        %2556 = vmatpush2.msra.mxu0 0.0
        %2557 = vmatprep.subr.mxu0 0.0
        %2558 = vmatpush2.msra.mxu0 0.0
        %2559 = vmatprep.subr.mxu0 0.0
        %2560 = vmatpush2.msra.mxu0 0.0
        %2561 = vmatprep.subr.mxu0 0.0
        %2562 = vmatpush2.msra.mxu0 0.0
        %2563 = vmatprep.subr.mxu0 0.0
        %2564 = vmatpush2.msra.mxu0 0.0
        %2565 = vmatprep.subr.mxu0 0.0
        %2566 = vmatpush2.msra.mxu0 0.0
        %2567 = vmatprep.subr.mxu0 0.0
        %2568 = vmatpush2.msra.mxu0 0.0
        %2569 = vmatprep.subr.mxu0 0.0
        %2570 = vmatpush2.msra.mxu0 0.0
        %2571 = vmatprep.subr.mxu0 0.0
        %2572 = vmatpush2.msra.mxu0 0.0
        %2573 = vmatprep.subr.mxu0 0.0
        %2574 = vmatpush2.msra.mxu0 0.0
        %2575 = vmatprep.subr.mxu0 0.0
        %2576 = vmatpush2.msra.mxu0 0.0
        %2577 = vmatprep.subr.mxu0 0.0
        %2578 = vmatpush2.msra.mxu0 0.0
        %2579 = vmatprep.subr.mxu0 0.0
        %2580 = vmatpush2.msra.mxu0 0.0
        %2581 = vmatprep.subr.mxu0 0.0
        %2582 = vmatpush2.msra.mxu0 0.0
        %2583 = vmatprep.subr.mxu0 0.0
        %2584 = vmatpush2.msra.mxu0 0.0
        %2585 = vmatprep.mubr.f32.mxu0 0.0
        %2586 = vmatmul.mubr.f32.gmra.mxu0 %v2519
        %v2587 = vpop.f32.mrf.mxu0
        %v2588 = vadd.f32 %v2516, %v2587
        %v2589 = vpop.f32.mrf.mxu0
        %2590 = vdwg.mxu0
        %s2591 = scalar_lea.vmem %s8, 256
        %v2592 = vld [vmem:[%s2591] sm:$0xff]
        %v2593 = vld [vmem:[%s2591 + $0x8] sm:$0xff]
        %v2594 = vld [vmem:[%s2591 + $0x10] sm:$0xff]
        %v2595 = vld [vmem:[%s2591 + $0x18] sm:$0xff]
        %s2596 = scalar_lea.vmem %s9, 8
        %v2597 = vld [vmem:[%s2596] sm:$0x1]
        %v2599 = vlaneseq
        %v2600 = vshrl.u32 %v2599, 7
        %v2601 = vsub.s32 0, %v2600
        %v2602 = vrot.slane %v2597, %v2601
        %2604 = vmatprep.subr.mxu0 0.0
        %2605 = vmatpush1.msra.mxu0 0.0
        %2606 = vmatprep.subr.mxu0 0.0
        %2607 = vmatpush1.msra.mxu0 0.0
        %2608 = vmatprep.subr.mxu0 0.0
        %2609 = vmatpush1.msra.mxu0 0.0
        %2610 = vmatprep.subr.mxu0 0.0
        %2611 = vmatpush1.msra.mxu0 0.0
        %2612 = vmatprep.subr.mxu0 0.0
        %2613 = vmatpush1.msra.mxu0 0.0
        %2614 = vmatprep.subr.mxu0 0.0
        %2615 = vmatpush1.msra.mxu0 0.0
        %2616 = vmatprep.subr.mxu0 0.0
        %2617 = vmatpush1.msra.mxu0 0.0
        %2618 = vmatprep.subr.mxu0 0.0
        %2619 = vmatpush1.msra.mxu0 0.0
        %2620 = vmatprep.subr.mxu0 0.0
        %2621 = vmatpush1.msra.mxu0 0.0
        %2622 = vmatprep.subr.mxu0 0.0
        %2623 = vmatpush1.msra.mxu0 0.0
        %2624 = vmatprep.subr.mxu0 0.0
        %2625 = vmatpush1.msra.mxu0 0.0
        %2626 = vmatprep.subr.mxu0 0.0
        %2627 = vmatpush1.msra.mxu0 0.0
        %2628 = vmatprep.subr.mxu0 0.0
        %2629 = vmatpush1.msra.mxu0 %v2595
        %2630 = vmatprep.subr.mxu0 0.0
        %2631 = vmatpush1.msra.mxu0 %v2594
        %2632 = vmatprep.subr.mxu0 0.0
        %2633 = vmatpush1.msra.mxu0 %v2593
        %2634 = vmatprep.subr.mxu0 0.0
        %2635 = vmatpush1.msra.mxu0 %v2592
        %2636 = vmatprep.subr.mxu0 0.0
        %2637 = vmatpush2.msra.mxu0 0.0
        %2638 = vmatprep.subr.mxu0 0.0
        %2639 = vmatpush2.msra.mxu0 0.0
        %2640 = vmatprep.subr.mxu0 0.0
        %2641 = vmatpush2.msra.mxu0 0.0
        %2642 = vmatprep.subr.mxu0 0.0
        %2643 = vmatpush2.msra.mxu0 0.0
        %2644 = vmatprep.subr.mxu0 0.0
        %2645 = vmatpush2.msra.mxu0 0.0
        %2646 = vmatprep.subr.mxu0 0.0
        %2647 = vmatpush2.msra.mxu0 0.0
        %2648 = vmatprep.subr.mxu0 0.0
        %2649 = vmatpush2.msra.mxu0 0.0
        %2650 = vmatprep.subr.mxu0 0.0
        %2651 = vmatpush2.msra.mxu0 0.0
        %2652 = vmatprep.subr.mxu0 0.0
        %2653 = vmatpush2.msra.mxu0 0.0
        %2654 = vmatprep.subr.mxu0 0.0
        %2655 = vmatpush2.msra.mxu0 0.0
        %2656 = vmatprep.subr.mxu0 0.0
        %2657 = vmatpush2.msra.mxu0 0.0
        %2658 = vmatprep.subr.mxu0 0.0
        %2659 = vmatpush2.msra.mxu0 0.0
        %2660 = vmatprep.subr.mxu0 0.0
        %2661 = vmatpush2.msra.mxu0 0.0
        %2662 = vmatprep.subr.mxu0 0.0
        %2663 = vmatpush2.msra.mxu0 0.0
        %2664 = vmatprep.subr.mxu0 0.0
        %2665 = vmatpush2.msra.mxu0 0.0
        %2666 = vmatprep.subr.mxu0 0.0
        %2667 = vmatpush2.msra.mxu0 0.0
        %2668 = vmatprep.mubr.f32.mxu0 0.0
        %2669 = vmatmul.mubr.f32.gmra.mxu0 %v2519
        %v2670 = vpop.f32.mrf.mxu0
        %v2671 = vadd.f32 %v2602, %v2670
        %v2672 = vpop.f32.mrf.mxu0
        %2673 = vdwg.mxu0
        %v2674 = vmul.f32 %v2502, 0.35355338
        %v2676 = vsel %vm896, %v2674, 0
        %v2679 = vsel %vm896, %v2588, 0
        %2681 = vmatprep.subr.mxu0 0.0
        %2682 = vmatpush1.xpose.msra.mxu0 0.0
        %2683 = vmatprep.subr.mxu0 0.0
        %2684 = vmatpush1.xpose.msra.mxu0 0.0
        %2685 = vmatprep.subr.mxu0 0.0
        %2686 = vmatpush1.xpose.msra.mxu0 0.0
        %2687 = vmatprep.subr.mxu0 0.0
        %2688 = vmatpush1.xpose.msra.mxu0 0.0
        %2689 = vmatprep.subr.mxu0 0.0
        %2690 = vmatpush1.xpose.msra.mxu0 0.0
        %2691 = vmatprep.subr.mxu0 0.0
        %2692 = vmatpush1.xpose.msra.mxu0 0.0
        %2693 = vmatprep.subr.mxu0 0.0
        %2694 = vmatpush1.xpose.msra.mxu0 0.0
        %2695 = vmatprep.subr.mxu0 0.0
        %2696 = vmatpush1.xpose.msra.mxu0 0.0
        %2697 = vmatprep.subr.mxu0 0.0
        %2698 = vmatpush1.xpose.msra.mxu0 0.0
        %2699 = vmatprep.subr.mxu0 0.0
        %2700 = vmatpush1.xpose.msra.mxu0 0.0
        %2701 = vmatprep.subr.mxu0 0.0
        %2702 = vmatpush1.xpose.msra.mxu0 0.0
        %2703 = vmatprep.subr.mxu0 0.0
        %2704 = vmatpush1.xpose.msra.mxu0 0.0
        %2705 = vmatprep.subr.mxu0 0.0
        %2706 = vmatpush1.xpose.msra.mxu0 0.0
        %2707 = vmatprep.subr.mxu0 0.0
        %2708 = vmatpush1.xpose.msra.mxu0 0.0
        %2709 = vmatprep.subr.mxu0 0.0
        %2710 = vmatpush1.xpose.msra.mxu0 0.0
        %2711 = vmatprep.subr.mxu0 0.0
        %2712 = vmatpush1.xpose.msra.mxu0 %v2679
        %2713 = vmatprep.subr.mxu0 0.0
        %2714 = vmatpush2.xpose.msra.mxu0 0.0
        %2715 = vmatprep.subr.mxu0 0.0
        %2716 = vmatpush2.xpose.msra.mxu0 0.0
        %2717 = vmatprep.subr.mxu0 0.0
        %2718 = vmatpush2.xpose.msra.mxu0 0.0
        %2719 = vmatprep.subr.mxu0 0.0
        %2720 = vmatpush2.xpose.msra.mxu0 0.0
        %2721 = vmatprep.subr.mxu0 0.0
        %2722 = vmatpush2.xpose.msra.mxu0 0.0
        %2723 = vmatprep.subr.mxu0 0.0
        %2724 = vmatpush2.xpose.msra.mxu0 0.0
        %2725 = vmatprep.subr.mxu0 0.0
        %2726 = vmatpush2.xpose.msra.mxu0 0.0
        %2727 = vmatprep.subr.mxu0 0.0
        %2728 = vmatpush2.xpose.msra.mxu0 0.0
        %2729 = vmatprep.subr.mxu0 0.0
        %2730 = vmatpush2.xpose.msra.mxu0 0.0
        %2731 = vmatprep.subr.mxu0 0.0
        %2732 = vmatpush2.xpose.msra.mxu0 0.0
        %2733 = vmatprep.subr.mxu0 0.0
        %2734 = vmatpush2.xpose.msra.mxu0 0.0
        %2735 = vmatprep.subr.mxu0 0.0
        %2736 = vmatpush2.xpose.msra.mxu0 0.0
        %2737 = vmatprep.subr.mxu0 0.0
        %2738 = vmatpush2.xpose.msra.mxu0 0.0
        %2739 = vmatprep.subr.mxu0 0.0
        %2740 = vmatpush2.xpose.msra.mxu0 0.0
        %2741 = vmatprep.subr.mxu0 0.0
        %2742 = vmatpush2.xpose.msra.mxu0 0.0
        %2743 = vmatprep.subr.mxu0 0.0
        %2744 = vmatpush2.xpose.msra.mxu0 0.0
        %2745 = vmatprep.mubr.f32.mxu0 0.0
        %2746 = vmatmul.mubr.f32.gmra.mxu0 %v2676
        %v2747 = vpop.f32.mrf.mxu0
        %v2748 = vadd.f32 0.0, %v2747
        %v2749 = vpop.f32.mrf.mxu0
        %2750 = vdwg.mxu0
        %v2751 = vsel %vm896, %v2748, -inf
        %2752 = vmax.xlane.f32.xlu0 %v2751
        %v2753 = vpop.xlane.xlu0 %2752
        %v2754 = vsub.f32 %v2748, %v2753
        %v2755 = vmul.f32 %v2754, 1.442695
        %v2756 = vpow.pop %v2755
        %v2757 = vsel %vm896, %v2756, 0.0
        %2758 = vadd.xlane.f32.xlu0 %v2757
        %v2759 = vpop.xlane.xlu0 %2758
        %v2760 = vrcp.pop %v2759
        %v2761 = vmul.f32 %v2756, %v2760
        %v2763 = vsel %vm896, %v2761, 0
        %2765 = vmatprep.subr.mxu0 0.0
        %2766 = vmatpush1.msra.mxu0 0.0
        %2767 = vmatprep.subr.mxu0 0.0
        %2768 = vmatpush1.msra.mxu0 0.0
        %2769 = vmatprep.subr.mxu0 0.0
        %2770 = vmatpush1.msra.mxu0 0.0
        %2771 = vmatprep.subr.mxu0 0.0
        %2772 = vmatpush1.msra.mxu0 0.0
        %2773 = vmatprep.subr.mxu0 0.0
        %2774 = vmatpush1.msra.mxu0 0.0
        %2775 = vmatprep.subr.mxu0 0.0
        %2776 = vmatpush1.msra.mxu0 0.0
        %2777 = vmatprep.subr.mxu0 0.0
        %2778 = vmatpush1.msra.mxu0 0.0
        %2779 = vmatprep.subr.mxu0 0.0
        %2780 = vmatpush1.msra.mxu0 0.0
        %2781 = vmatprep.subr.mxu0 0.0
        %2782 = vmatpush1.msra.mxu0 0.0
        %2783 = vmatprep.subr.mxu0 0.0
        %2784 = vmatpush1.msra.mxu0 0.0
        %2785 = vmatprep.subr.mxu0 0.0
        %2786 = vmatpush1.msra.mxu0 0.0
        %2787 = vmatprep.subr.mxu0 0.0
        %2788 = vmatpush1.msra.mxu0 0.0
        %2789 = vmatprep.subr.mxu0 0.0
        %2790 = vmatpush1.msra.mxu0 0.0
        %2791 = vmatprep.subr.mxu0 0.0
        %2792 = vmatpush1.msra.mxu0 0.0
        %2793 = vmatprep.subr.mxu0 0.0
        %2794 = vmatpush1.msra.mxu0 0.0
        %2795 = vmatprep.subr.mxu0 0.0
        %2796 = vmatpush1.msra.mxu0 %v2671
        %2797 = vmatprep.subr.mxu0 0.0
        %2798 = vmatpush2.msra.mxu0 0.0
        %2799 = vmatprep.subr.mxu0 0.0
        %2800 = vmatpush2.msra.mxu0 0.0
        %2801 = vmatprep.subr.mxu0 0.0
        %2802 = vmatpush2.msra.mxu0 0.0
        %2803 = vmatprep.subr.mxu0 0.0
        %2804 = vmatpush2.msra.mxu0 0.0
        %2805 = vmatprep.subr.mxu0 0.0
        %2806 = vmatpush2.msra.mxu0 0.0
        %2807 = vmatprep.subr.mxu0 0.0
        %2808 = vmatpush2.msra.mxu0 0.0
        %2809 = vmatprep.subr.mxu0 0.0
        %2810 = vmatpush2.msra.mxu0 0.0
        %2811 = vmatprep.subr.mxu0 0.0
        %2812 = vmatpush2.msra.mxu0 0.0
        %2813 = vmatprep.subr.mxu0 0.0
        %2814 = vmatpush2.msra.mxu0 0.0
        %2815 = vmatprep.subr.mxu0 0.0
        %2816 = vmatpush2.msra.mxu0 0.0
        %2817 = vmatprep.subr.mxu0 0.0
        %2818 = vmatpush2.msra.mxu0 0.0
        %2819 = vmatprep.subr.mxu0 0.0
        %2820 = vmatpush2.msra.mxu0 0.0
        %2821 = vmatprep.subr.mxu0 0.0
        %2822 = vmatpush2.msra.mxu0 0.0
        %2823 = vmatprep.subr.mxu0 0.0
        %2824 = vmatpush2.msra.mxu0 0.0
        %2825 = vmatprep.subr.mxu0 0.0
        %2826 = vmatpush2.msra.mxu0 0.0
        %2827 = vmatprep.subr.mxu0 0.0
        %2828 = vmatpush2.msra.mxu0 0.0
        %2829 = vmatprep.mubr.f32.mxu0 0.0
        %2830 = vmatmul.mubr.f32.gmra.mxu0 %v2763
        %v2831 = vpop.f32.mrf.mxu0
        %v2832 = vadd.f32 0.0, %v2831
        %v2833 = vpop.f32.mrf.mxu0
        %2834 = vdwg.mxu0
        %s2835 = scalar_lea.vmem %s8, 32
        %v2836 = vld [vmem:[%s2835] sm:$0xff]
        %v2837 = vld [vmem:[%s2835 + $0x8] sm:$0xff]
        %v2838 = vld [vmem:[%s2835 + $0x10] sm:$0xff]
        %v2839 = vld [vmem:[%s2835 + $0x18] sm:$0xff]
        %s2840 = scalar_lea.vmem %s9, 1
        %v2841 = vld [vmem:[%s2840] sm:$0x1]
        %v2843 = vlaneseq
        %v2844 = vshrl.u32 %v2843, 7
        %v2845 = vsub.s32 0, %v2844
        %v2846 = vrot.slane %v2841, %v2845
        %2848 = vmatprep.subr.mxu0 0.0
        %2849 = vmatpush1.msra.mxu0 0.0
        %2850 = vmatprep.subr.mxu0 0.0
        %2851 = vmatpush1.msra.mxu0 0.0
        %2852 = vmatprep.subr.mxu0 0.0
        %2853 = vmatpush1.msra.mxu0 0.0
        %2854 = vmatprep.subr.mxu0 0.0
        %2855 = vmatpush1.msra.mxu0 0.0
        %2856 = vmatprep.subr.mxu0 0.0
        %2857 = vmatpush1.msra.mxu0 0.0
        %2858 = vmatprep.subr.mxu0 0.0
        %2859 = vmatpush1.msra.mxu0 0.0
        %2860 = vmatprep.subr.mxu0 0.0
        %2861 = vmatpush1.msra.mxu0 0.0
        %2862 = vmatprep.subr.mxu0 0.0
        %2863 = vmatpush1.msra.mxu0 0.0
        %2864 = vmatprep.subr.mxu0 0.0
        %2865 = vmatpush1.msra.mxu0 0.0
        %2866 = vmatprep.subr.mxu0 0.0
        %2867 = vmatpush1.msra.mxu0 0.0
        %2868 = vmatprep.subr.mxu0 0.0
        %2869 = vmatpush1.msra.mxu0 0.0
        %2870 = vmatprep.subr.mxu0 0.0
        %2871 = vmatpush1.msra.mxu0 0.0
        %2872 = vmatprep.subr.mxu0 0.0
        %2873 = vmatpush1.msra.mxu0 %v2839
        %2874 = vmatprep.subr.mxu0 0.0
        %2875 = vmatpush1.msra.mxu0 %v2838
        %2876 = vmatprep.subr.mxu0 0.0
        %2877 = vmatpush1.msra.mxu0 %v2837
        %2878 = vmatprep.subr.mxu0 0.0
        %2879 = vmatpush1.msra.mxu0 %v2836
        %2880 = vmatprep.subr.mxu0 0.0
        %2881 = vmatpush2.msra.mxu0 0.0
        %2882 = vmatprep.subr.mxu0 0.0
        %2883 = vmatpush2.msra.mxu0 0.0
        %2884 = vmatprep.subr.mxu0 0.0
        %2885 = vmatpush2.msra.mxu0 0.0
        %2886 = vmatprep.subr.mxu0 0.0
        %2887 = vmatpush2.msra.mxu0 0.0
        %2888 = vmatprep.subr.mxu0 0.0
        %2889 = vmatpush2.msra.mxu0 0.0
        %2890 = vmatprep.subr.mxu0 0.0
        %2891 = vmatpush2.msra.mxu0 0.0
        %2892 = vmatprep.subr.mxu0 0.0
        %2893 = vmatpush2.msra.mxu0 0.0
        %2894 = vmatprep.subr.mxu0 0.0
        %2895 = vmatpush2.msra.mxu0 0.0
        %2896 = vmatprep.subr.mxu0 0.0
        %2897 = vmatpush2.msra.mxu0 0.0
        %2898 = vmatprep.subr.mxu0 0.0
        %2899 = vmatpush2.msra.mxu0 0.0
        %2900 = vmatprep.subr.mxu0 0.0
        %2901 = vmatpush2.msra.mxu0 0.0
        %2902 = vmatprep.subr.mxu0 0.0
        %2903 = vmatpush2.msra.mxu0 0.0
        %2904 = vmatprep.subr.mxu0 0.0
        %2905 = vmatpush2.msra.mxu0 0.0
        %2906 = vmatprep.subr.mxu0 0.0
        %2907 = vmatpush2.msra.mxu0 0.0
        %2908 = vmatprep.subr.mxu0 0.0
        %2909 = vmatpush2.msra.mxu0 0.0
        %2910 = vmatprep.subr.mxu0 0.0
        %2911 = vmatpush2.msra.mxu0 0.0
        %2912 = vmatprep.mubr.f32.mxu0 0.0
        %2913 = vmatmul.mubr.f32.gmra.mxu0 %v2433
        %v2914 = vpop.f32.mrf.mxu0
        %v2915 = vadd.f32 %v2846, %v2914
        %v2916 = vpop.f32.mrf.mxu0
        %2917 = vdwg.mxu0
        %s2918 = scalar_lea.vmem %s8, 160
        %v2919 = vld [vmem:[%s2918] sm:$0xff]
        %v2920 = vld [vmem:[%s2918 + $0x8] sm:$0xff]
        %v2921 = vld [vmem:[%s2918 + $0x10] sm:$0xff]
        %v2922 = vld [vmem:[%s2918 + $0x18] sm:$0xff]
        %s2923 = scalar_lea.vmem %s9, 5
        %v2924 = vld [vmem:[%s2923] sm:$0x1]
        %v2926 = vlaneseq
        %v2927 = vshrl.u32 %v2926, 7
        %v2928 = vsub.s32 0, %v2927
        %v2929 = vrot.slane %v2924, %v2928
        %2931 = vmatprep.subr.mxu0 0.0
        %2932 = vmatpush1.msra.mxu0 0.0
        %2933 = vmatprep.subr.mxu0 0.0
        %2934 = vmatpush1.msra.mxu0 0.0
        %2935 = vmatprep.subr.mxu0 0.0
        %2936 = vmatpush1.msra.mxu0 0.0
        %2937 = vmatprep.subr.mxu0 0.0
        %2938 = vmatpush1.msra.mxu0 0.0
        %2939 = vmatprep.subr.mxu0 0.0
        %2940 = vmatpush1.msra.mxu0 0.0
        %2941 = vmatprep.subr.mxu0 0.0
        %2942 = vmatpush1.msra.mxu0 0.0
        %2943 = vmatprep.subr.mxu0 0.0
        %2944 = vmatpush1.msra.mxu0 0.0
        %2945 = vmatprep.subr.mxu0 0.0
        %2946 = vmatpush1.msra.mxu0 0.0
        %2947 = vmatprep.subr.mxu0 0.0
        %2948 = vmatpush1.msra.mxu0 0.0
        %2949 = vmatprep.subr.mxu0 0.0
        %2950 = vmatpush1.msra.mxu0 0.0
        %2951 = vmatprep.subr.mxu0 0.0
        %2952 = vmatpush1.msra.mxu0 0.0
        %2953 = vmatprep.subr.mxu0 0.0
        %2954 = vmatpush1.msra.mxu0 0.0
        %2955 = vmatprep.subr.mxu0 0.0
        %2956 = vmatpush1.msra.mxu0 %v2922
        %2957 = vmatprep.subr.mxu0 0.0
        %2958 = vmatpush1.msra.mxu0 %v2921
        %2959 = vmatprep.subr.mxu0 0.0
        %2960 = vmatpush1.msra.mxu0 %v2920
        %2961 = vmatprep.subr.mxu0 0.0
        %2962 = vmatpush1.msra.mxu0 %v2919
        %2963 = vmatprep.subr.mxu0 0.0
        %2964 = vmatpush2.msra.mxu0 0.0
        %2965 = vmatprep.subr.mxu0 0.0
        %2966 = vmatpush2.msra.mxu0 0.0
        %2967 = vmatprep.subr.mxu0 0.0
        %2968 = vmatpush2.msra.mxu0 0.0
        %2969 = vmatprep.subr.mxu0 0.0
        %2970 = vmatpush2.msra.mxu0 0.0
        %2971 = vmatprep.subr.mxu0 0.0
        %2972 = vmatpush2.msra.mxu0 0.0
        %2973 = vmatprep.subr.mxu0 0.0
        %2974 = vmatpush2.msra.mxu0 0.0
        %2975 = vmatprep.subr.mxu0 0.0
        %2976 = vmatpush2.msra.mxu0 0.0
        %2977 = vmatprep.subr.mxu0 0.0
        %2978 = vmatpush2.msra.mxu0 0.0
        %2979 = vmatprep.subr.mxu0 0.0
        %2980 = vmatpush2.msra.mxu0 0.0
        %2981 = vmatprep.subr.mxu0 0.0
        %2982 = vmatpush2.msra.mxu0 0.0
        %2983 = vmatprep.subr.mxu0 0.0
        %2984 = vmatpush2.msra.mxu0 0.0
        %2985 = vmatprep.subr.mxu0 0.0
        %2986 = vmatpush2.msra.mxu0 0.0
        %2987 = vmatprep.subr.mxu0 0.0
        %2988 = vmatpush2.msra.mxu0 0.0
        %2989 = vmatprep.subr.mxu0 0.0
        %2990 = vmatpush2.msra.mxu0 0.0
        %2991 = vmatprep.subr.mxu0 0.0
        %2992 = vmatpush2.msra.mxu0 0.0
        %2993 = vmatprep.subr.mxu0 0.0
        %2994 = vmatpush2.msra.mxu0 0.0
        %2995 = vmatprep.mubr.f32.mxu0 0.0
        %2996 = vmatmul.mubr.f32.gmra.mxu0 %v2519
        %v2997 = vpop.f32.mrf.mxu0
        %v2998 = vadd.f32 %v2929, %v2997
        %v2999 = vpop.f32.mrf.mxu0
        %3000 = vdwg.mxu0
        %s3001 = scalar_lea.vmem %s8, 288
        %v3002 = vld [vmem:[%s3001] sm:$0xff]
        %v3003 = vld [vmem:[%s3001 + $0x8] sm:$0xff]
        %v3004 = vld [vmem:[%s3001 + $0x10] sm:$0xff]
        %v3005 = vld [vmem:[%s3001 + $0x18] sm:$0xff]
        %s3006 = scalar_lea.vmem %s9, 9
        %v3007 = vld [vmem:[%s3006] sm:$0x1]
        %v3009 = vlaneseq
        %v3010 = vshrl.u32 %v3009, 7
        %v3011 = vsub.s32 0, %v3010
        %v3012 = vrot.slane %v3007, %v3011
        %3014 = vmatprep.subr.mxu0 0.0
        %3015 = vmatpush1.msra.mxu0 0.0
        %3016 = vmatprep.subr.mxu0 0.0
        %3017 = vmatpush1.msra.mxu0 0.0
        %3018 = vmatprep.subr.mxu0 0.0
        %3019 = vmatpush1.msra.mxu0 0.0
        %3020 = vmatprep.subr.mxu0 0.0
        %3021 = vmatpush1.msra.mxu0 0.0
        %3022 = vmatprep.subr.mxu0 0.0
        %3023 = vmatpush1.msra.mxu0 0.0
        %3024 = vmatprep.subr.mxu0 0.0
        %3025 = vmatpush1.msra.mxu0 0.0
        %3026 = vmatprep.subr.mxu0 0.0
        %3027 = vmatpush1.msra.mxu0 0.0
        %3028 = vmatprep.subr.mxu0 0.0
        %3029 = vmatpush1.msra.mxu0 0.0
        %3030 = vmatprep.subr.mxu0 0.0
        %3031 = vmatpush1.msra.mxu0 0.0
        %3032 = vmatprep.subr.mxu0 0.0
        %3033 = vmatpush1.msra.mxu0 0.0
        %3034 = vmatprep.subr.mxu0 0.0
        %3035 = vmatpush1.msra.mxu0 0.0
        %3036 = vmatprep.subr.mxu0 0.0
        %3037 = vmatpush1.msra.mxu0 0.0
        %3038 = vmatprep.subr.mxu0 0.0
        %3039 = vmatpush1.msra.mxu0 %v3005
        %3040 = vmatprep.subr.mxu0 0.0
        %3041 = vmatpush1.msra.mxu0 %v3004
        %3042 = vmatprep.subr.mxu0 0.0
        %3043 = vmatpush1.msra.mxu0 %v3003
        %3044 = vmatprep.subr.mxu0 0.0
        %3045 = vmatpush1.msra.mxu0 %v3002
        %3046 = vmatprep.subr.mxu0 0.0
        %3047 = vmatpush2.msra.mxu0 0.0
        %3048 = vmatprep.subr.mxu0 0.0
        %3049 = vmatpush2.msra.mxu0 0.0
        %3050 = vmatprep.subr.mxu0 0.0
        %3051 = vmatpush2.msra.mxu0 0.0
        %3052 = vmatprep.subr.mxu0 0.0
        %3053 = vmatpush2.msra.mxu0 0.0
        %3054 = vmatprep.subr.mxu0 0.0
        %3055 = vmatpush2.msra.mxu0 0.0
        %3056 = vmatprep.subr.mxu0 0.0
        %3057 = vmatpush2.msra.mxu0 0.0
        %3058 = vmatprep.subr.mxu0 0.0
        %3059 = vmatpush2.msra.mxu0 0.0
        %3060 = vmatprep.subr.mxu0 0.0
        %3061 = vmatpush2.msra.mxu0 0.0
        %3062 = vmatprep.subr.mxu0 0.0
        %3063 = vmatpush2.msra.mxu0 0.0
        %3064 = vmatprep.subr.mxu0 0.0
        %3065 = vmatpush2.msra.mxu0 0.0
        %3066 = vmatprep.subr.mxu0 0.0
        %3067 = vmatpush2.msra.mxu0 0.0
        %3068 = vmatprep.subr.mxu0 0.0
        %3069 = vmatpush2.msra.mxu0 0.0
        %3070 = vmatprep.subr.mxu0 0.0
        %3071 = vmatpush2.msra.mxu0 0.0
        %3072 = vmatprep.subr.mxu0 0.0
        %3073 = vmatpush2.msra.mxu0 0.0
        %3074 = vmatprep.subr.mxu0 0.0
        %3075 = vmatpush2.msra.mxu0 0.0
        %3076 = vmatprep.subr.mxu0 0.0
        %3077 = vmatpush2.msra.mxu0 0.0
        %3078 = vmatprep.mubr.f32.mxu0 0.0
        %3079 = vmatmul.mubr.f32.gmra.mxu0 %v2519
        %v3080 = vpop.f32.mrf.mxu0
        %v3081 = vadd.f32 %v3012, %v3080
        %v3082 = vpop.f32.mrf.mxu0
        %3083 = vdwg.mxu0
        %v3084 = vmul.f32 %v2915, 0.35355338
        %v3086 = vsel %vm896, %v3084, 0
        %v3089 = vsel %vm896, %v2998, 0
        %3091 = vmatprep.subr.mxu0 0.0
        %3092 = vmatpush1.xpose.msra.mxu0 0.0
        %3093 = vmatprep.subr.mxu0 0.0
        %3094 = vmatpush1.xpose.msra.mxu0 0.0
        %3095 = vmatprep.subr.mxu0 0.0
        %3096 = vmatpush1.xpose.msra.mxu0 0.0
        %3097 = vmatprep.subr.mxu0 0.0
        %3098 = vmatpush1.xpose.msra.mxu0 0.0
        %3099 = vmatprep.subr.mxu0 0.0
        %3100 = vmatpush1.xpose.msra.mxu0 0.0
        %3101 = vmatprep.subr.mxu0 0.0
        %3102 = vmatpush1.xpose.msra.mxu0 0.0
        %3103 = vmatprep.subr.mxu0 0.0
        %3104 = vmatpush1.xpose.msra.mxu0 0.0
        %3105 = vmatprep.subr.mxu0 0.0
        %3106 = vmatpush1.xpose.msra.mxu0 0.0
        %3107 = vmatprep.subr.mxu0 0.0
        %3108 = vmatpush1.xpose.msra.mxu0 0.0
        %3109 = vmatprep.subr.mxu0 0.0
        %3110 = vmatpush1.xpose.msra.mxu0 0.0
        %3111 = vmatprep.subr.mxu0 0.0
        %3112 = vmatpush1.xpose.msra.mxu0 0.0
        %3113 = vmatprep.subr.mxu0 0.0
        %3114 = vmatpush1.xpose.msra.mxu0 0.0
        %3115 = vmatprep.subr.mxu0 0.0
        %3116 = vmatpush1.xpose.msra.mxu0 0.0
        %3117 = vmatprep.subr.mxu0 0.0
        %3118 = vmatpush1.xpose.msra.mxu0 0.0
        %3119 = vmatprep.subr.mxu0 0.0
        %3120 = vmatpush1.xpose.msra.mxu0 0.0
        %3121 = vmatprep.subr.mxu0 0.0
        %3122 = vmatpush1.xpose.msra.mxu0 %v3089
        %3123 = vmatprep.subr.mxu0 0.0
        %3124 = vmatpush2.xpose.msra.mxu0 0.0
        %3125 = vmatprep.subr.mxu0 0.0
        %3126 = vmatpush2.xpose.msra.mxu0 0.0
        %3127 = vmatprep.subr.mxu0 0.0
        %3128 = vmatpush2.xpose.msra.mxu0 0.0
        %3129 = vmatprep.subr.mxu0 0.0
        %3130 = vmatpush2.xpose.msra.mxu0 0.0
        %3131 = vmatprep.subr.mxu0 0.0
        %3132 = vmatpush2.xpose.msra.mxu0 0.0
        %3133 = vmatprep.subr.mxu0 0.0
        %3134 = vmatpush2.xpose.msra.mxu0 0.0
        %3135 = vmatprep.subr.mxu0 0.0
        %3136 = vmatpush2.xpose.msra.mxu0 0.0
        %3137 = vmatprep.subr.mxu0 0.0
        %3138 = vmatpush2.xpose.msra.mxu0 0.0
        %3139 = vmatprep.subr.mxu0 0.0
        %3140 = vmatpush2.xpose.msra.mxu0 0.0
        %3141 = vmatprep.subr.mxu0 0.0
        %3142 = vmatpush2.xpose.msra.mxu0 0.0
        %3143 = vmatprep.subr.mxu0 0.0
        %3144 = vmatpush2.xpose.msra.mxu0 0.0
        %3145 = vmatprep.subr.mxu0 0.0
        %3146 = vmatpush2.xpose.msra.mxu0 0.0
        %3147 = vmatprep.subr.mxu0 0.0
        %3148 = vmatpush2.xpose.msra.mxu0 0.0
        %3149 = vmatprep.subr.mxu0 0.0
        %3150 = vmatpush2.xpose.msra.mxu0 0.0
        %3151 = vmatprep.subr.mxu0 0.0
        %3152 = vmatpush2.xpose.msra.mxu0 0.0
        %3153 = vmatprep.subr.mxu0 0.0
        %3154 = vmatpush2.xpose.msra.mxu0 0.0
        %3155 = vmatprep.mubr.f32.mxu0 0.0
        %3156 = vmatmul.mubr.f32.gmra.mxu0 %v3086
        %v3157 = vpop.f32.mrf.mxu0
        %v3158 = vadd.f32 0.0, %v3157
        %v3159 = vpop.f32.mrf.mxu0
        %3160 = vdwg.mxu0
        %v3161 = vsel %vm896, %v3158, -inf
        %3162 = vmax.xlane.f32.xlu0 %v3161
        %v3163 = vpop.xlane.xlu0 %3162
        %v3164 = vsub.f32 %v3158, %v3163
        %v3165 = vmul.f32 %v3164, 1.442695
        %v3166 = vpow.pop %v3165
        %v3167 = vsel %vm896, %v3166, 0.0
        %3168 = vadd.xlane.f32.xlu0 %v3167
        %v3169 = vpop.xlane.xlu0 %3168
        %v3170 = vrcp.pop %v3169
        %v3171 = vmul.f32 %v3166, %v3170
        %v3173 = vsel %vm896, %v3171, 0
        %3175 = vmatprep.subr.mxu0 0.0
        %3176 = vmatpush1.msra.mxu0 0.0
        %3177 = vmatprep.subr.mxu0 0.0
        %3178 = vmatpush1.msra.mxu0 0.0
        %3179 = vmatprep.subr.mxu0 0.0
        %3180 = vmatpush1.msra.mxu0 0.0
        %3181 = vmatprep.subr.mxu0 0.0
        %3182 = vmatpush1.msra.mxu0 0.0
        %3183 = vmatprep.subr.mxu0 0.0
        %3184 = vmatpush1.msra.mxu0 0.0
        %3185 = vmatprep.subr.mxu0 0.0
        %3186 = vmatpush1.msra.mxu0 0.0
        %3187 = vmatprep.subr.mxu0 0.0
        %3188 = vmatpush1.msra.mxu0 0.0
        %3189 = vmatprep.subr.mxu0 0.0
        %3190 = vmatpush1.msra.mxu0 0.0
        %3191 = vmatprep.subr.mxu0 0.0
        %3192 = vmatpush1.msra.mxu0 0.0
        %3193 = vmatprep.subr.mxu0 0.0
        %3194 = vmatpush1.msra.mxu0 0.0
        %3195 = vmatprep.subr.mxu0 0.0
        %3196 = vmatpush1.msra.mxu0 0.0
        %3197 = vmatprep.subr.mxu0 0.0
        %3198 = vmatpush1.msra.mxu0 0.0
        %3199 = vmatprep.subr.mxu0 0.0
        %3200 = vmatpush1.msra.mxu0 0.0
        %3201 = vmatprep.subr.mxu0 0.0
        %3202 = vmatpush1.msra.mxu0 0.0
        %3203 = vmatprep.subr.mxu0 0.0
        %3204 = vmatpush1.msra.mxu0 0.0
        %3205 = vmatprep.subr.mxu0 0.0
        %3206 = vmatpush1.msra.mxu0 %v3081
        %3207 = vmatprep.subr.mxu0 0.0
        %3208 = vmatpush2.msra.mxu0 0.0
        %3209 = vmatprep.subr.mxu0 0.0
        %3210 = vmatpush2.msra.mxu0 0.0
        %3211 = vmatprep.subr.mxu0 0.0
        %3212 = vmatpush2.msra.mxu0 0.0
        %3213 = vmatprep.subr.mxu0 0.0
        %3214 = vmatpush2.msra.mxu0 0.0
        %3215 = vmatprep.subr.mxu0 0.0
        %3216 = vmatpush2.msra.mxu0 0.0
        %3217 = vmatprep.subr.mxu0 0.0
        %3218 = vmatpush2.msra.mxu0 0.0
        %3219 = vmatprep.subr.mxu0 0.0
        %3220 = vmatpush2.msra.mxu0 0.0
        %3221 = vmatprep.subr.mxu0 0.0
        %3222 = vmatpush2.msra.mxu0 0.0
        %3223 = vmatprep.subr.mxu0 0.0
        %3224 = vmatpush2.msra.mxu0 0.0
        %3225 = vmatprep.subr.mxu0 0.0
        %3226 = vmatpush2.msra.mxu0 0.0
        %3227 = vmatprep.subr.mxu0 0.0
        %3228 = vmatpush2.msra.mxu0 0.0
        %3229 = vmatprep.subr.mxu0 0.0
        %3230 = vmatpush2.msra.mxu0 0.0
        %3231 = vmatprep.subr.mxu0 0.0
        %3232 = vmatpush2.msra.mxu0 0.0
        %3233 = vmatprep.subr.mxu0 0.0
        %3234 = vmatpush2.msra.mxu0 0.0
        %3235 = vmatprep.subr.mxu0 0.0
        %3236 = vmatpush2.msra.mxu0 0.0
        %3237 = vmatprep.subr.mxu0 0.0
        %3238 = vmatpush2.msra.mxu0 0.0
        %3239 = vmatprep.mubr.f32.mxu0 0.0
        %3240 = vmatmul.mubr.f32.gmra.mxu0 %v3173
        %v3241 = vpop.f32.mrf.mxu0
        %v3242 = vadd.f32 0.0, %v3241
        %v3243 = vpop.f32.mrf.mxu0
        %3244 = vdwg.mxu0
        %s3245 = scalar_lea.vmem %s8, 64
        %v3246 = vld [vmem:[%s3245] sm:$0xff]
        %v3247 = vld [vmem:[%s3245 + $0x8] sm:$0xff]
        %v3248 = vld [vmem:[%s3245 + $0x10] sm:$0xff]
        %v3249 = vld [vmem:[%s3245 + $0x18] sm:$0xff]
        %s3250 = scalar_lea.vmem %s9, 2
        %v3251 = vld [vmem:[%s3250] sm:$0x1]
        %v3253 = vlaneseq
        %v3254 = vshrl.u32 %v3253, 7
        %v3255 = vsub.s32 0, %v3254
        %v3256 = vrot.slane %v3251, %v3255
        %3258 = vmatprep.subr.mxu0 0.0
        %3259 = vmatpush1.msra.mxu0 0.0
        %3260 = vmatprep.subr.mxu0 0.0
        %3261 = vmatpush1.msra.mxu0 0.0
        %3262 = vmatprep.subr.mxu0 0.0
        %3263 = vmatpush1.msra.mxu0 0.0
        %3264 = vmatprep.subr.mxu0 0.0
        %3265 = vmatpush1.msra.mxu0 0.0
        %3266 = vmatprep.subr.mxu0 0.0
        %3267 = vmatpush1.msra.mxu0 0.0
        %3268 = vmatprep.subr.mxu0 0.0
        %3269 = vmatpush1.msra.mxu0 0.0
        %3270 = vmatprep.subr.mxu0 0.0
        %3271 = vmatpush1.msra.mxu0 0.0
        %3272 = vmatprep.subr.mxu0 0.0
        %3273 = vmatpush1.msra.mxu0 0.0
        %3274 = vmatprep.subr.mxu0 0.0
        %3275 = vmatpush1.msra.mxu0 0.0
        %3276 = vmatprep.subr.mxu0 0.0
        %3277 = vmatpush1.msra.mxu0 0.0
        %3278 = vmatprep.subr.mxu0 0.0
        %3279 = vmatpush1.msra.mxu0 0.0
        %3280 = vmatprep.subr.mxu0 0.0
        %3281 = vmatpush1.msra.mxu0 0.0
        %3282 = vmatprep.subr.mxu0 0.0
        %3283 = vmatpush1.msra.mxu0 %v3249
        %3284 = vmatprep.subr.mxu0 0.0
        %3285 = vmatpush1.msra.mxu0 %v3248
        %3286 = vmatprep.subr.mxu0 0.0
        %3287 = vmatpush1.msra.mxu0 %v3247
        %3288 = vmatprep.subr.mxu0 0.0
        %3289 = vmatpush1.msra.mxu0 %v3246
        %3290 = vmatprep.subr.mxu0 0.0
        %3291 = vmatpush2.msra.mxu0 0.0
        %3292 = vmatprep.subr.mxu0 0.0
        %3293 = vmatpush2.msra.mxu0 0.0
        %3294 = vmatprep.subr.mxu0 0.0
        %3295 = vmatpush2.msra.mxu0 0.0
        %3296 = vmatprep.subr.mxu0 0.0
        %3297 = vmatpush2.msra.mxu0 0.0
        %3298 = vmatprep.subr.mxu0 0.0
        %3299 = vmatpush2.msra.mxu0 0.0
        %3300 = vmatprep.subr.mxu0 0.0
        %3301 = vmatpush2.msra.mxu0 0.0
        %3302 = vmatprep.subr.mxu0 0.0
        %3303 = vmatpush2.msra.mxu0 0.0
        %3304 = vmatprep.subr.mxu0 0.0
        %3305 = vmatpush2.msra.mxu0 0.0
        %3306 = vmatprep.subr.mxu0 0.0
        %3307 = vmatpush2.msra.mxu0 0.0
        %3308 = vmatprep.subr.mxu0 0.0
        %3309 = vmatpush2.msra.mxu0 0.0
        %3310 = vmatprep.subr.mxu0 0.0
        %3311 = vmatpush2.msra.mxu0 0.0
        %3312 = vmatprep.subr.mxu0 0.0
        %3313 = vmatpush2.msra.mxu0 0.0
        %3314 = vmatprep.subr.mxu0 0.0
        %3315 = vmatpush2.msra.mxu0 0.0
        %3316 = vmatprep.subr.mxu0 0.0
        %3317 = vmatpush2.msra.mxu0 0.0
        %3318 = vmatprep.subr.mxu0 0.0
        %3319 = vmatpush2.msra.mxu0 0.0
        %3320 = vmatprep.subr.mxu0 0.0
        %3321 = vmatpush2.msra.mxu0 0.0
        %3322 = vmatprep.mubr.f32.mxu0 0.0
        %3323 = vmatmul.mubr.f32.gmra.mxu0 %v2433
        %v3324 = vpop.f32.mrf.mxu0
        %v3325 = vadd.f32 %v3256, %v3324
        %v3326 = vpop.f32.mrf.mxu0
        %3327 = vdwg.mxu0
        %s3328 = scalar_lea.vmem %s8, 192
        %v3329 = vld [vmem:[%s3328] sm:$0xff]
        %v3330 = vld [vmem:[%s3328 + $0x8] sm:$0xff]
        %v3331 = vld [vmem:[%s3328 + $0x10] sm:$0xff]
        %v3332 = vld [vmem:[%s3328 + $0x18] sm:$0xff]
        %s3333 = scalar_lea.vmem %s9, 6
        %v3334 = vld [vmem:[%s3333] sm:$0x1]
        %v3336 = vlaneseq
        %v3337 = vshrl.u32 %v3336, 7
        %v3338 = vsub.s32 0, %v3337
        %v3339 = vrot.slane %v3334, %v3338
        %3341 = vmatprep.subr.mxu0 0.0
        %3342 = vmatpush1.msra.mxu0 0.0
        %3343 = vmatprep.subr.mxu0 0.0
        %3344 = vmatpush1.msra.mxu0 0.0
        %3345 = vmatprep.subr.mxu0 0.0
        %3346 = vmatpush1.msra.mxu0 0.0
        %3347 = vmatprep.subr.mxu0 0.0
        %3348 = vmatpush1.msra.mxu0 0.0
        %3349 = vmatprep.subr.mxu0 0.0
        %3350 = vmatpush1.msra.mxu0 0.0
        %3351 = vmatprep.subr.mxu0 0.0
        %3352 = vmatpush1.msra.mxu0 0.0
        %3353 = vmatprep.subr.mxu0 0.0
        %3354 = vmatpush1.msra.mxu0 0.0
        %3355 = vmatprep.subr.mxu0 0.0
        %3356 = vmatpush1.msra.mxu0 0.0
        %3357 = vmatprep.subr.mxu0 0.0
        %3358 = vmatpush1.msra.mxu0 0.0
        %3359 = vmatprep.subr.mxu0 0.0
        %3360 = vmatpush1.msra.mxu0 0.0
        %3361 = vmatprep.subr.mxu0 0.0
        %3362 = vmatpush1.msra.mxu0 0.0
        %3363 = vmatprep.subr.mxu0 0.0
        %3364 = vmatpush1.msra.mxu0 0.0
        %3365 = vmatprep.subr.mxu0 0.0
        %3366 = vmatpush1.msra.mxu0 %v3332
        %3367 = vmatprep.subr.mxu0 0.0
        %3368 = vmatpush1.msra.mxu0 %v3331
        %3369 = vmatprep.subr.mxu0 0.0
        %3370 = vmatpush1.msra.mxu0 %v3330
        %3371 = vmatprep.subr.mxu0 0.0
        %3372 = vmatpush1.msra.mxu0 %v3329
        %3373 = vmatprep.subr.mxu0 0.0
        %3374 = vmatpush2.msra.mxu0 0.0
        %3375 = vmatprep.subr.mxu0 0.0
        %3376 = vmatpush2.msra.mxu0 0.0
        %3377 = vmatprep.subr.mxu0 0.0
        %3378 = vmatpush2.msra.mxu0 0.0
        %3379 = vmatprep.subr.mxu0 0.0
        %3380 = vmatpush2.msra.mxu0 0.0
        %3381 = vmatprep.subr.mxu0 0.0
        %3382 = vmatpush2.msra.mxu0 0.0
        %3383 = vmatprep.subr.mxu0 0.0
        %3384 = vmatpush2.msra.mxu0 0.0
        %3385 = vmatprep.subr.mxu0 0.0
        %3386 = vmatpush2.msra.mxu0 0.0
        %3387 = vmatprep.subr.mxu0 0.0
        %3388 = vmatpush2.msra.mxu0 0.0
        %3389 = vmatprep.subr.mxu0 0.0
        %3390 = vmatpush2.msra.mxu0 0.0
        %3391 = vmatprep.subr.mxu0 0.0
        %3392 = vmatpush2.msra.mxu0 0.0
        %3393 = vmatprep.subr.mxu0 0.0
        %3394 = vmatpush2.msra.mxu0 0.0
        %3395 = vmatprep.subr.mxu0 0.0
        %3396 = vmatpush2.msra.mxu0 0.0
        %3397 = vmatprep.subr.mxu0 0.0
        %3398 = vmatpush2.msra.mxu0 0.0
        %3399 = vmatprep.subr.mxu0 0.0
        %3400 = vmatpush2.msra.mxu0 0.0
        %3401 = vmatprep.subr.mxu0 0.0
        %3402 = vmatpush2.msra.mxu0 0.0
        %3403 = vmatprep.subr.mxu0 0.0
        %3404 = vmatpush2.msra.mxu0 0.0
        %3405 = vmatprep.mubr.f32.mxu0 0.0
        %3406 = vmatmul.mubr.f32.gmra.mxu0 %v2519
        %v3407 = vpop.f32.mrf.mxu0
        %v3408 = vadd.f32 %v3339, %v3407
        %v3409 = vpop.f32.mrf.mxu0
        %3410 = vdwg.mxu0
        %s3411 = scalar_lea.vmem %s8, 320
        %v3412 = vld [vmem:[%s3411] sm:$0xff]
        %v3413 = vld [vmem:[%s3411 + $0x8] sm:$0xff]
        %v3414 = vld [vmem:[%s3411 + $0x10] sm:$0xff]
        %v3415 = vld [vmem:[%s3411 + $0x18] sm:$0xff]
        %s3416 = scalar_lea.vmem %s9, 10
        %v3417 = vld [vmem:[%s3416] sm:$0x1]
        %v3419 = vlaneseq
        %v3420 = vshrl.u32 %v3419, 7
        %v3421 = vsub.s32 0, %v3420
        %v3422 = vrot.slane %v3417, %v3421
        %3424 = vmatprep.subr.mxu0 0.0
        %3425 = vmatpush1.msra.mxu0 0.0
        %3426 = vmatprep.subr.mxu0 0.0
        %3427 = vmatpush1.msra.mxu0 0.0
        %3428 = vmatprep.subr.mxu0 0.0
        %3429 = vmatpush1.msra.mxu0 0.0
        %3430 = vmatprep.subr.mxu0 0.0
        %3431 = vmatpush1.msra.mxu0 0.0
        %3432 = vmatprep.subr.mxu0 0.0
        %3433 = vmatpush1.msra.mxu0 0.0
        %3434 = vmatprep.subr.mxu0 0.0
        %3435 = vmatpush1.msra.mxu0 0.0
        %3436 = vmatprep.subr.mxu0 0.0
        %3437 = vmatpush1.msra.mxu0 0.0
        %3438 = vmatprep.subr.mxu0 0.0
        %3439 = vmatpush1.msra.mxu0 0.0
        %3440 = vmatprep.subr.mxu0 0.0
        %3441 = vmatpush1.msra.mxu0 0.0
        %3442 = vmatprep.subr.mxu0 0.0
        %3443 = vmatpush1.msra.mxu0 0.0
        %3444 = vmatprep.subr.mxu0 0.0
        %3445 = vmatpush1.msra.mxu0 0.0
        %3446 = vmatprep.subr.mxu0 0.0
        %3447 = vmatpush1.msra.mxu0 0.0
        %3448 = vmatprep.subr.mxu0 0.0
        %3449 = vmatpush1.msra.mxu0 %v3415
        %3450 = vmatprep.subr.mxu0 0.0
        %3451 = vmatpush1.msra.mxu0 %v3414
        %3452 = vmatprep.subr.mxu0 0.0
        %3453 = vmatpush1.msra.mxu0 %v3413
        %3454 = vmatprep.subr.mxu0 0.0
        %3455 = vmatpush1.msra.mxu0 %v3412
        %3456 = vmatprep.subr.mxu0 0.0
        %3457 = vmatpush2.msra.mxu0 0.0
        %3458 = vmatprep.subr.mxu0 0.0
        %3459 = vmatpush2.msra.mxu0 0.0
        %3460 = vmatprep.subr.mxu0 0.0
        %3461 = vmatpush2.msra.mxu0 0.0
        %3462 = vmatprep.subr.mxu0 0.0
        %3463 = vmatpush2.msra.mxu0 0.0
        %3464 = vmatprep.subr.mxu0 0.0
        %3465 = vmatpush2.msra.mxu0 0.0
        %3466 = vmatprep.subr.mxu0 0.0
        %3467 = vmatpush2.msra.mxu0 0.0
        %3468 = vmatprep.subr.mxu0 0.0
        %3469 = vmatpush2.msra.mxu0 0.0
        %3470 = vmatprep.subr.mxu0 0.0
        %3471 = vmatpush2.msra.mxu0 0.0
        %3472 = vmatprep.subr.mxu0 0.0
        %3473 = vmatpush2.msra.mxu0 0.0
        %3474 = vmatprep.subr.mxu0 0.0
        %3475 = vmatpush2.msra.mxu0 0.0
        %3476 = vmatprep.subr.mxu0 0.0
        %3477 = vmatpush2.msra.mxu0 0.0
        %3478 = vmatprep.subr.mxu0 0.0
        %3479 = vmatpush2.msra.mxu0 0.0
        %3480 = vmatprep.subr.mxu0 0.0
        %3481 = vmatpush2.msra.mxu0 0.0
        %3482 = vmatprep.subr.mxu0 0.0
        %3483 = vmatpush2.msra.mxu0 0.0
        %3484 = vmatprep.subr.mxu0 0.0
        %3485 = vmatpush2.msra.mxu0 0.0
        %3486 = vmatprep.subr.mxu0 0.0
        %3487 = vmatpush2.msra.mxu0 0.0
        %3488 = vmatprep.mubr.f32.mxu0 0.0
        %3489 = vmatmul.mubr.f32.gmra.mxu0 %v2519
        %v3490 = vpop.f32.mrf.mxu0
        %v3491 = vadd.f32 %v3422, %v3490
        %v3492 = vpop.f32.mrf.mxu0
        %3493 = vdwg.mxu0
        %v3494 = vmul.f32 %v3325, 0.35355338
        %v3496 = vsel %vm896, %v3494, 0
        %v3499 = vsel %vm896, %v3408, 0
        %3501 = vmatprep.subr.mxu0 0.0
        %3502 = vmatpush1.xpose.msra.mxu0 0.0
        %3503 = vmatprep.subr.mxu0 0.0
        %3504 = vmatpush1.xpose.msra.mxu0 0.0
        %3505 = vmatprep.subr.mxu0 0.0
        %3506 = vmatpush1.xpose.msra.mxu0 0.0
        %3507 = vmatprep.subr.mxu0 0.0
        %3508 = vmatpush1.xpose.msra.mxu0 0.0
        %3509 = vmatprep.subr.mxu0 0.0
        %3510 = vmatpush1.xpose.msra.mxu0 0.0
        %3511 = vmatprep.subr.mxu0 0.0
        %3512 = vmatpush1.xpose.msra.mxu0 0.0
        %3513 = vmatprep.subr.mxu0 0.0
        %3514 = vmatpush1.xpose.msra.mxu0 0.0
        %3515 = vmatprep.subr.mxu0 0.0
        %3516 = vmatpush1.xpose.msra.mxu0 0.0
        %3517 = vmatprep.subr.mxu0 0.0
        %3518 = vmatpush1.xpose.msra.mxu0 0.0
        %3519 = vmatprep.subr.mxu0 0.0
        %3520 = vmatpush1.xpose.msra.mxu0 0.0
        %3521 = vmatprep.subr.mxu0 0.0
        %3522 = vmatpush1.xpose.msra.mxu0 0.0
        %3523 = vmatprep.subr.mxu0 0.0
        %3524 = vmatpush1.xpose.msra.mxu0 0.0
        %3525 = vmatprep.subr.mxu0 0.0
        %3526 = vmatpush1.xpose.msra.mxu0 0.0
        %3527 = vmatprep.subr.mxu0 0.0
        %3528 = vmatpush1.xpose.msra.mxu0 0.0
        %3529 = vmatprep.subr.mxu0 0.0
        %3530 = vmatpush1.xpose.msra.mxu0 0.0
        %3531 = vmatprep.subr.mxu0 0.0
        %3532 = vmatpush1.xpose.msra.mxu0 %v3499
        %3533 = vmatprep.subr.mxu0 0.0
        %3534 = vmatpush2.xpose.msra.mxu0 0.0
        %3535 = vmatprep.subr.mxu0 0.0
        %3536 = vmatpush2.xpose.msra.mxu0 0.0
        %3537 = vmatprep.subr.mxu0 0.0
        %3538 = vmatpush2.xpose.msra.mxu0 0.0
        %3539 = vmatprep.subr.mxu0 0.0
        %3540 = vmatpush2.xpose.msra.mxu0 0.0
        %3541 = vmatprep.subr.mxu0 0.0
        %3542 = vmatpush2.xpose.msra.mxu0 0.0
        %3543 = vmatprep.subr.mxu0 0.0
        %3544 = vmatpush2.xpose.msra.mxu0 0.0
        %3545 = vmatprep.subr.mxu0 0.0
        %3546 = vmatpush2.xpose.msra.mxu0 0.0
        %3547 = vmatprep.subr.mxu0 0.0
        %3548 = vmatpush2.xpose.msra.mxu0 0.0
        %3549 = vmatprep.subr.mxu0 0.0
        %3550 = vmatpush2.xpose.msra.mxu0 0.0
        %3551 = vmatprep.subr.mxu0 0.0
        %3552 = vmatpush2.xpose.msra.mxu0 0.0
        %3553 = vmatprep.subr.mxu0 0.0
        %3554 = vmatpush2.xpose.msra.mxu0 0.0
        %3555 = vmatprep.subr.mxu0 0.0
        %3556 = vmatpush2.xpose.msra.mxu0 0.0
        %3557 = vmatprep.subr.mxu0 0.0
        %3558 = vmatpush2.xpose.msra.mxu0 0.0
        %3559 = vmatprep.subr.mxu0 0.0
        %3560 = vmatpush2.xpose.msra.mxu0 0.0
        %3561 = vmatprep.subr.mxu0 0.0
        %3562 = vmatpush2.xpose.msra.mxu0 0.0
        %3563 = vmatprep.subr.mxu0 0.0
        %3564 = vmatpush2.xpose.msra.mxu0 0.0
        %3565 = vmatprep.mubr.f32.mxu0 0.0
        %3566 = vmatmul.mubr.f32.gmra.mxu0 %v3496
        %v3567 = vpop.f32.mrf.mxu0
        %v3568 = vadd.f32 0.0, %v3567
        %v3569 = vpop.f32.mrf.mxu0
        %3570 = vdwg.mxu0
        %v3571 = vsel %vm896, %v3568, -inf
        %3572 = vmax.xlane.f32.xlu0 %v3571
        %v3573 = vpop.xlane.xlu0 %3572
        %v3574 = vsub.f32 %v3568, %v3573
        %v3575 = vmul.f32 %v3574, 1.442695
        %v3576 = vpow.pop %v3575
        %v3577 = vsel %vm896, %v3576, 0.0
        %3578 = vadd.xlane.f32.xlu0 %v3577
        %v3579 = vpop.xlane.xlu0 %3578
        %v3580 = vrcp.pop %v3579
        %v3581 = vmul.f32 %v3576, %v3580
        %v3583 = vsel %vm896, %v3581, 0
        %3585 = vmatprep.subr.mxu0 0.0
        %3586 = vmatpush1.msra.mxu0 0.0
        %3587 = vmatprep.subr.mxu0 0.0
        %3588 = vmatpush1.msra.mxu0 0.0
        %3589 = vmatprep.subr.mxu0 0.0
        %3590 = vmatpush1.msra.mxu0 0.0
        %3591 = vmatprep.subr.mxu0 0.0
        %3592 = vmatpush1.msra.mxu0 0.0
        %3593 = vmatprep.subr.mxu0 0.0
        %3594 = vmatpush1.msra.mxu0 0.0
        %3595 = vmatprep.subr.mxu0 0.0
        %3596 = vmatpush1.msra.mxu0 0.0
        %3597 = vmatprep.subr.mxu0 0.0
        %3598 = vmatpush1.msra.mxu0 0.0
        %3599 = vmatprep.subr.mxu0 0.0
        %3600 = vmatpush1.msra.mxu0 0.0
        %3601 = vmatprep.subr.mxu0 0.0
        %3602 = vmatpush1.msra.mxu0 0.0
        %3603 = vmatprep.subr.mxu0 0.0
        %3604 = vmatpush1.msra.mxu0 0.0
        %3605 = vmatprep.subr.mxu0 0.0
        %3606 = vmatpush1.msra.mxu0 0.0
        %3607 = vmatprep.subr.mxu0 0.0
        %3608 = vmatpush1.msra.mxu0 0.0
        %3609 = vmatprep.subr.mxu0 0.0
        %3610 = vmatpush1.msra.mxu0 0.0
        %3611 = vmatprep.subr.mxu0 0.0
        %3612 = vmatpush1.msra.mxu0 0.0
        %3613 = vmatprep.subr.mxu0 0.0
        %3614 = vmatpush1.msra.mxu0 0.0
        %3615 = vmatprep.subr.mxu0 0.0
        %3616 = vmatpush1.msra.mxu0 %v3491
        %3617 = vmatprep.subr.mxu0 0.0
        %3618 = vmatpush2.msra.mxu0 0.0
        %3619 = vmatprep.subr.mxu0 0.0
        %3620 = vmatpush2.msra.mxu0 0.0
        %3621 = vmatprep.subr.mxu0 0.0
        %3622 = vmatpush2.msra.mxu0 0.0
        %3623 = vmatprep.subr.mxu0 0.0
        %3624 = vmatpush2.msra.mxu0 0.0
        %3625 = vmatprep.subr.mxu0 0.0
        %3626 = vmatpush2.msra.mxu0 0.0
        %3627 = vmatprep.subr.mxu0 0.0
        %3628 = vmatpush2.msra.mxu0 0.0
        %3629 = vmatprep.subr.mxu0 0.0
        %3630 = vmatpush2.msra.mxu0 0.0
        %3631 = vmatprep.subr.mxu0 0.0
        %3632 = vmatpush2.msra.mxu0 0.0
        %3633 = vmatprep.subr.mxu0 0.0
        %3634 = vmatpush2.msra.mxu0 0.0
        %3635 = vmatprep.subr.mxu0 0.0
        %3636 = vmatpush2.msra.mxu0 0.0
        %3637 = vmatprep.subr.mxu0 0.0
        %3638 = vmatpush2.msra.mxu0 0.0
        %3639 = vmatprep.subr.mxu0 0.0
        %3640 = vmatpush2.msra.mxu0 0.0
        %3641 = vmatprep.subr.mxu0 0.0
        %3642 = vmatpush2.msra.mxu0 0.0
        %3643 = vmatprep.subr.mxu0 0.0
        %3644 = vmatpush2.msra.mxu0 0.0
        %3645 = vmatprep.subr.mxu0 0.0
        %3646 = vmatpush2.msra.mxu0 0.0
        %3647 = vmatprep.subr.mxu0 0.0
        %3648 = vmatpush2.msra.mxu0 0.0
        %3649 = vmatprep.mubr.f32.mxu0 0.0
        %3650 = vmatmul.mubr.f32.gmra.mxu0 %v3583
        %v3651 = vpop.f32.mrf.mxu0
        %v3652 = vadd.f32 0.0, %v3651
        %v3653 = vpop.f32.mrf.mxu0
        %3654 = vdwg.mxu0
        %s3655 = scalar_lea.vmem %s8, 96
        %v3656 = vld [vmem:[%s3655] sm:$0xff]
        %v3657 = vld [vmem:[%s3655 + $0x8] sm:$0xff]
        %v3658 = vld [vmem:[%s3655 + $0x10] sm:$0xff]
        %v3659 = vld [vmem:[%s3655 + $0x18] sm:$0xff]
        %s3660 = scalar_lea.vmem %s9, 3
        %v3661 = vld [vmem:[%s3660] sm:$0x1]
        %v3663 = vlaneseq
        %v3664 = vshrl.u32 %v3663, 7
        %v3665 = vsub.s32 0, %v3664
        %v3666 = vrot.slane %v3661, %v3665
        %3668 = vmatprep.subr.mxu0 0.0
        %3669 = vmatpush1.msra.mxu0 0.0
        %3670 = vmatprep.subr.mxu0 0.0
        %3671 = vmatpush1.msra.mxu0 0.0
        %3672 = vmatprep.subr.mxu0 0.0
        %3673 = vmatpush1.msra.mxu0 0.0
        %3674 = vmatprep.subr.mxu0 0.0
        %3675 = vmatpush1.msra.mxu0 0.0
        %3676 = vmatprep.subr.mxu0 0.0
        %3677 = vmatpush1.msra.mxu0 0.0
        %3678 = vmatprep.subr.mxu0 0.0
        %3679 = vmatpush1.msra.mxu0 0.0
        %3680 = vmatprep.subr.mxu0 0.0
        %3681 = vmatpush1.msra.mxu0 0.0
        %3682 = vmatprep.subr.mxu0 0.0
        %3683 = vmatpush1.msra.mxu0 0.0
        %3684 = vmatprep.subr.mxu0 0.0
        %3685 = vmatpush1.msra.mxu0 0.0
        %3686 = vmatprep.subr.mxu0 0.0
        %3687 = vmatpush1.msra.mxu0 0.0
        %3688 = vmatprep.subr.mxu0 0.0
        %3689 = vmatpush1.msra.mxu0 0.0
        %3690 = vmatprep.subr.mxu0 0.0
        %3691 = vmatpush1.msra.mxu0 0.0
        %3692 = vmatprep.subr.mxu0 0.0
        %3693 = vmatpush1.msra.mxu0 %v3659
        %3694 = vmatprep.subr.mxu0 0.0
        %3695 = vmatpush1.msra.mxu0 %v3658
        %3696 = vmatprep.subr.mxu0 0.0
        %3697 = vmatpush1.msra.mxu0 %v3657
        %3698 = vmatprep.subr.mxu0 0.0
        %3699 = vmatpush1.msra.mxu0 %v3656
        %3700 = vmatprep.subr.mxu0 0.0
        %3701 = vmatpush2.msra.mxu0 0.0
        %3702 = vmatprep.subr.mxu0 0.0
        %3703 = vmatpush2.msra.mxu0 0.0
        %3704 = vmatprep.subr.mxu0 0.0
        %3705 = vmatpush2.msra.mxu0 0.0
        %3706 = vmatprep.subr.mxu0 0.0
        %3707 = vmatpush2.msra.mxu0 0.0
        %3708 = vmatprep.subr.mxu0 0.0
        %3709 = vmatpush2.msra.mxu0 0.0
        %3710 = vmatprep.subr.mxu0 0.0
        %3711 = vmatpush2.msra.mxu0 0.0
        %3712 = vmatprep.subr.mxu0 0.0
        %3713 = vmatpush2.msra.mxu0 0.0
        %3714 = vmatprep.subr.mxu0 0.0
        %3715 = vmatpush2.msra.mxu0 0.0
        %3716 = vmatprep.subr.mxu0 0.0
        %3717 = vmatpush2.msra.mxu0 0.0
        %3718 = vmatprep.subr.mxu0 0.0
        %3719 = vmatpush2.msra.mxu0 0.0
        %3720 = vmatprep.subr.mxu0 0.0
        %3721 = vmatpush2.msra.mxu0 0.0
        %3722 = vmatprep.subr.mxu0 0.0
        %3723 = vmatpush2.msra.mxu0 0.0
        %3724 = vmatprep.subr.mxu0 0.0
        %3725 = vmatpush2.msra.mxu0 0.0
        %3726 = vmatprep.subr.mxu0 0.0
        %3727 = vmatpush2.msra.mxu0 0.0
        %3728 = vmatprep.subr.mxu0 0.0
        %3729 = vmatpush2.msra.mxu0 0.0
        %3730 = vmatprep.subr.mxu0 0.0
        %3731 = vmatpush2.msra.mxu0 0.0
        %3732 = vmatprep.mubr.f32.mxu0 0.0
        %3733 = vmatmul.mubr.f32.gmra.mxu0 %v2433
        %v3734 = vpop.f32.mrf.mxu0
        %v3735 = vadd.f32 %v3666, %v3734
        %v3736 = vpop.f32.mrf.mxu0
        %3737 = vdwg.mxu0
        %s3738 = scalar_lea.vmem %s8, 224
        %v3739 = vld [vmem:[%s3738] sm:$0xff]
        %v3740 = vld [vmem:[%s3738 + $0x8] sm:$0xff]
        %v3741 = vld [vmem:[%s3738 + $0x10] sm:$0xff]
        %v3742 = vld [vmem:[%s3738 + $0x18] sm:$0xff]
        %s3743 = scalar_lea.vmem %s9, 7
        %v3744 = vld [vmem:[%s3743] sm:$0x1]
        %v3746 = vlaneseq
        %v3747 = vshrl.u32 %v3746, 7
        %v3748 = vsub.s32 0, %v3747
        %v3749 = vrot.slane %v3744, %v3748
        %3751 = vmatprep.subr.mxu0 0.0
        %3752 = vmatpush1.msra.mxu0 0.0
        %3753 = vmatprep.subr.mxu0 0.0
        %3754 = vmatpush1.msra.mxu0 0.0
        %3755 = vmatprep.subr.mxu0 0.0
        %3756 = vmatpush1.msra.mxu0 0.0
        %3757 = vmatprep.subr.mxu0 0.0
        %3758 = vmatpush1.msra.mxu0 0.0
        %3759 = vmatprep.subr.mxu0 0.0
        %3760 = vmatpush1.msra.mxu0 0.0
        %3761 = vmatprep.subr.mxu0 0.0
        %3762 = vmatpush1.msra.mxu0 0.0
        %3763 = vmatprep.subr.mxu0 0.0
        %3764 = vmatpush1.msra.mxu0 0.0
        %3765 = vmatprep.subr.mxu0 0.0
        %3766 = vmatpush1.msra.mxu0 0.0
        %3767 = vmatprep.subr.mxu0 0.0
        %3768 = vmatpush1.msra.mxu0 0.0
        %3769 = vmatprep.subr.mxu0 0.0
        %3770 = vmatpush1.msra.mxu0 0.0
        %3771 = vmatprep.subr.mxu0 0.0
        %3772 = vmatpush1.msra.mxu0 0.0
        %3773 = vmatprep.subr.mxu0 0.0
        %3774 = vmatpush1.msra.mxu0 0.0
        %3775 = vmatprep.subr.mxu0 0.0
        %3776 = vmatpush1.msra.mxu0 %v3742
        %3777 = vmatprep.subr.mxu0 0.0
        %3778 = vmatpush1.msra.mxu0 %v3741
        %3779 = vmatprep.subr.mxu0 0.0
        %3780 = vmatpush1.msra.mxu0 %v3740
        %3781 = vmatprep.subr.mxu0 0.0
        %3782 = vmatpush1.msra.mxu0 %v3739
        %3783 = vmatprep.subr.mxu0 0.0
        %3784 = vmatpush2.msra.mxu0 0.0
        %3785 = vmatprep.subr.mxu0 0.0
        %3786 = vmatpush2.msra.mxu0 0.0
        %3787 = vmatprep.subr.mxu0 0.0
        %3788 = vmatpush2.msra.mxu0 0.0
        %3789 = vmatprep.subr.mxu0 0.0
        %3790 = vmatpush2.msra.mxu0 0.0
        %3791 = vmatprep.subr.mxu0 0.0
        %3792 = vmatpush2.msra.mxu0 0.0
        %3793 = vmatprep.subr.mxu0 0.0
        %3794 = vmatpush2.msra.mxu0 0.0
        %3795 = vmatprep.subr.mxu0 0.0
        %3796 = vmatpush2.msra.mxu0 0.0
        %3797 = vmatprep.subr.mxu0 0.0
        %3798 = vmatpush2.msra.mxu0 0.0
        %3799 = vmatprep.subr.mxu0 0.0
        %3800 = vmatpush2.msra.mxu0 0.0
        %3801 = vmatprep.subr.mxu0 0.0
        %3802 = vmatpush2.msra.mxu0 0.0
        %3803 = vmatprep.subr.mxu0 0.0
        %3804 = vmatpush2.msra.mxu0 0.0
        %3805 = vmatprep.subr.mxu0 0.0
        %3806 = vmatpush2.msra.mxu0 0.0
        %3807 = vmatprep.subr.mxu0 0.0
        %3808 = vmatpush2.msra.mxu0 0.0
        %3809 = vmatprep.subr.mxu0 0.0
        %3810 = vmatpush2.msra.mxu0 0.0
        %3811 = vmatprep.subr.mxu0 0.0
        %3812 = vmatpush2.msra.mxu0 0.0
        %3813 = vmatprep.subr.mxu0 0.0
        %3814 = vmatpush2.msra.mxu0 0.0
        %3815 = vmatprep.mubr.f32.mxu0 0.0
        %3816 = vmatmul.mubr.f32.gmra.mxu0 %v2519
        %v3817 = vpop.f32.mrf.mxu0
        %v3818 = vadd.f32 %v3749, %v3817
        %v3819 = vpop.f32.mrf.mxu0
        %3820 = vdwg.mxu0
        %s3821 = scalar_lea.vmem %s8, 352
        %v3822 = vld [vmem:[%s3821] sm:$0xff]
        %v3823 = vld [vmem:[%s3821 + $0x8] sm:$0xff]
        %v3824 = vld [vmem:[%s3821 + $0x10] sm:$0xff]
        %v3825 = vld [vmem:[%s3821 + $0x18] sm:$0xff]
        %s3826 = scalar_lea.vmem %s9, 11
        %v3827 = vld [vmem:[%s3826] sm:$0x1]
        %v3829 = vlaneseq
        %v3830 = vshrl.u32 %v3829, 7
        %v3831 = vsub.s32 0, %v3830
        %v3832 = vrot.slane %v3827, %v3831
        %3834 = vmatprep.subr.mxu0 0.0
        %3835 = vmatpush1.msra.mxu0 0.0
        %3836 = vmatprep.subr.mxu0 0.0
        %3837 = vmatpush1.msra.mxu0 0.0
        %3838 = vmatprep.subr.mxu0 0.0
        %3839 = vmatpush1.msra.mxu0 0.0
        %3840 = vmatprep.subr.mxu0 0.0
        %3841 = vmatpush1.msra.mxu0 0.0
        %3842 = vmatprep.subr.mxu0 0.0
        %3843 = vmatpush1.msra.mxu0 0.0
        %3844 = vmatprep.subr.mxu0 0.0
        %3845 = vmatpush1.msra.mxu0 0.0
        %3846 = vmatprep.subr.mxu0 0.0
        %3847 = vmatpush1.msra.mxu0 0.0
        %3848 = vmatprep.subr.mxu0 0.0
        %3849 = vmatpush1.msra.mxu0 0.0
        %3850 = vmatprep.subr.mxu0 0.0
        %3851 = vmatpush1.msra.mxu0 0.0
        %3852 = vmatprep.subr.mxu0 0.0
        %3853 = vmatpush1.msra.mxu0 0.0
        %3854 = vmatprep.subr.mxu0 0.0
        %3855 = vmatpush1.msra.mxu0 0.0
        %3856 = vmatprep.subr.mxu0 0.0
        %3857 = vmatpush1.msra.mxu0 0.0
        %3858 = vmatprep.subr.mxu0 0.0
        %3859 = vmatpush1.msra.mxu0 %v3825
        %3860 = vmatprep.subr.mxu0 0.0
        %3861 = vmatpush1.msra.mxu0 %v3824
        %3862 = vmatprep.subr.mxu0 0.0
        %3863 = vmatpush1.msra.mxu0 %v3823
        %3864 = vmatprep.subr.mxu0 0.0
        %3865 = vmatpush1.msra.mxu0 %v3822
        %3866 = vmatprep.subr.mxu0 0.0
        %3867 = vmatpush2.msra.mxu0 0.0
        %3868 = vmatprep.subr.mxu0 0.0
        %3869 = vmatpush2.msra.mxu0 0.0
        %3870 = vmatprep.subr.mxu0 0.0
        %3871 = vmatpush2.msra.mxu0 0.0
        %3872 = vmatprep.subr.mxu0 0.0
        %3873 = vmatpush2.msra.mxu0 0.0
        %3874 = vmatprep.subr.mxu0 0.0
        %3875 = vmatpush2.msra.mxu0 0.0
        %3876 = vmatprep.subr.mxu0 0.0
        %3877 = vmatpush2.msra.mxu0 0.0
        %3878 = vmatprep.subr.mxu0 0.0
        %3879 = vmatpush2.msra.mxu0 0.0
        %3880 = vmatprep.subr.mxu0 0.0
        %3881 = vmatpush2.msra.mxu0 0.0
        %3882 = vmatprep.subr.mxu0 0.0
        %3883 = vmatpush2.msra.mxu0 0.0
        %3884 = vmatprep.subr.mxu0 0.0
        %3885 = vmatpush2.msra.mxu0 0.0
        %3886 = vmatprep.subr.mxu0 0.0
        %3887 = vmatpush2.msra.mxu0 0.0
        %3888 = vmatprep.subr.mxu0 0.0
        %3889 = vmatpush2.msra.mxu0 0.0
        %3890 = vmatprep.subr.mxu0 0.0
        %3891 = vmatpush2.msra.mxu0 0.0
        %3892 = vmatprep.subr.mxu0 0.0
        %3893 = vmatpush2.msra.mxu0 0.0
        %3894 = vmatprep.subr.mxu0 0.0
        %3895 = vmatpush2.msra.mxu0 0.0
        %3896 = vmatprep.subr.mxu0 0.0
        %3897 = vmatpush2.msra.mxu0 0.0
        %3898 = vmatprep.mubr.f32.mxu0 0.0
        %3899 = vmatmul.mubr.f32.gmra.mxu0 %v2519
        %v3900 = vpop.f32.mrf.mxu0
        %v3901 = vadd.f32 %v3832, %v3900
        %v3902 = vpop.f32.mrf.mxu0
        %3903 = vdwg.mxu0
        %v3904 = vmul.f32 %v3735, 0.35355338
        %v3906 = vsel %vm896, %v3904, 0
        %v3909 = vsel %vm896, %v3818, 0
        %3911 = vmatprep.subr.mxu0 0.0
        %3912 = vmatpush1.xpose.msra.mxu0 0.0
        %3913 = vmatprep.subr.mxu0 0.0
        %3914 = vmatpush1.xpose.msra.mxu0 0.0
        %3915 = vmatprep.subr.mxu0 0.0
        %3916 = vmatpush1.xpose.msra.mxu0 0.0
        %3917 = vmatprep.subr.mxu0 0.0
        %3918 = vmatpush1.xpose.msra.mxu0 0.0
        %3919 = vmatprep.subr.mxu0 0.0
        %3920 = vmatpush1.xpose.msra.mxu0 0.0
        %3921 = vmatprep.subr.mxu0 0.0
        %3922 = vmatpush1.xpose.msra.mxu0 0.0
        %3923 = vmatprep.subr.mxu0 0.0
        %3924 = vmatpush1.xpose.msra.mxu0 0.0
        %3925 = vmatprep.subr.mxu0 0.0
        %3926 = vmatpush1.xpose.msra.mxu0 0.0
        %3927 = vmatprep.subr.mxu0 0.0
        %3928 = vmatpush1.xpose.msra.mxu0 0.0
        %3929 = vmatprep.subr.mxu0 0.0
        %3930 = vmatpush1.xpose.msra.mxu0 0.0
        %3931 = vmatprep.subr.mxu0 0.0
        %3932 = vmatpush1.xpose.msra.mxu0 0.0
        %3933 = vmatprep.subr.mxu0 0.0
        %3934 = vmatpush1.xpose.msra.mxu0 0.0
        %3935 = vmatprep.subr.mxu0 0.0
        %3936 = vmatpush1.xpose.msra.mxu0 0.0
        %3937 = vmatprep.subr.mxu0 0.0
        %3938 = vmatpush1.xpose.msra.mxu0 0.0
        %3939 = vmatprep.subr.mxu0 0.0
        %3940 = vmatpush1.xpose.msra.mxu0 0.0
        %3941 = vmatprep.subr.mxu0 0.0
        %3942 = vmatpush1.xpose.msra.mxu0 %v3909
        %3943 = vmatprep.subr.mxu0 0.0
        %3944 = vmatpush2.xpose.msra.mxu0 0.0
        %3945 = vmatprep.subr.mxu0 0.0
        %3946 = vmatpush2.xpose.msra.mxu0 0.0
        %3947 = vmatprep.subr.mxu0 0.0
        %3948 = vmatpush2.xpose.msra.mxu0 0.0
        %3949 = vmatprep.subr.mxu0 0.0
        %3950 = vmatpush2.xpose.msra.mxu0 0.0
        %3951 = vmatprep.subr.mxu0 0.0
        %3952 = vmatpush2.xpose.msra.mxu0 0.0
        %3953 = vmatprep.subr.mxu0 0.0
        %3954 = vmatpush2.xpose.msra.mxu0 0.0
        %3955 = vmatprep.subr.mxu0 0.0
        %3956 = vmatpush2.xpose.msra.mxu0 0.0
        %3957 = vmatprep.subr.mxu0 0.0
        %3958 = vmatpush2.xpose.msra.mxu0 0.0
        %3959 = vmatprep.subr.mxu0 0.0
        %3960 = vmatpush2.xpose.msra.mxu0 0.0
        %3961 = vmatprep.subr.mxu0 0.0
        %3962 = vmatpush2.xpose.msra.mxu0 0.0
        %3963 = vmatprep.subr.mxu0 0.0
        %3964 = vmatpush2.xpose.msra.mxu0 0.0
        %3965 = vmatprep.subr.mxu0 0.0
        %3966 = vmatpush2.xpose.msra.mxu0 0.0
        %3967 = vmatprep.subr.mxu0 0.0
        %3968 = vmatpush2.xpose.msra.mxu0 0.0
        %3969 = vmatprep.subr.mxu0 0.0
        %3970 = vmatpush2.xpose.msra.mxu0 0.0
        %3971 = vmatprep.subr.mxu0 0.0
        %3972 = vmatpush2.xpose.msra.mxu0 0.0
        %3973 = vmatprep.subr.mxu0 0.0
        %3974 = vmatpush2.xpose.msra.mxu0 0.0
        %3975 = vmatprep.mubr.f32.mxu0 0.0
        %3976 = vmatmul.mubr.f32.gmra.mxu0 %v3906
        %v3977 = vpop.f32.mrf.mxu0
        %v3978 = vadd.f32 0.0, %v3977
        %v3979 = vpop.f32.mrf.mxu0
        %3980 = vdwg.mxu0
        %v3981 = vsel %vm896, %v3978, -inf
        %3982 = vmax.xlane.f32.xlu0 %v3981
        %v3983 = vpop.xlane.xlu0 %3982
        %v3984 = vsub.f32 %v3978, %v3983
        %v3985 = vmul.f32 %v3984, 1.442695
        %v3986 = vpow.pop %v3985
        %v3987 = vsel %vm896, %v3986, 0.0
        %3988 = vadd.xlane.f32.xlu0 %v3987
        %v3989 = vpop.xlane.xlu0 %3988
        %v3990 = vrcp.pop %v3989
        %v3991 = vmul.f32 %v3986, %v3990
        %v3993 = vsel %vm896, %v3991, 0
        %3995 = vmatprep.subr.mxu0 0.0
        %3996 = vmatpush1.msra.mxu0 0.0
        %3997 = vmatprep.subr.mxu0 0.0
        %3998 = vmatpush1.msra.mxu0 0.0
        %3999 = vmatprep.subr.mxu0 0.0
        %4000 = vmatpush1.msra.mxu0 0.0
        %4001 = vmatprep.subr.mxu0 0.0
        %4002 = vmatpush1.msra.mxu0 0.0
        %4003 = vmatprep.subr.mxu0 0.0
        %4004 = vmatpush1.msra.mxu0 0.0
        %4005 = vmatprep.subr.mxu0 0.0
        %4006 = vmatpush1.msra.mxu0 0.0
        %4007 = vmatprep.subr.mxu0 0.0
        %4008 = vmatpush1.msra.mxu0 0.0
        %4009 = vmatprep.subr.mxu0 0.0
        %4010 = vmatpush1.msra.mxu0 0.0
        %4011 = vmatprep.subr.mxu0 0.0
        %4012 = vmatpush1.msra.mxu0 0.0
        %4013 = vmatprep.subr.mxu0 0.0
        %4014 = vmatpush1.msra.mxu0 0.0
        %4015 = vmatprep.subr.mxu0 0.0
        %4016 = vmatpush1.msra.mxu0 0.0
        %4017 = vmatprep.subr.mxu0 0.0
        %4018 = vmatpush1.msra.mxu0 0.0
        %4019 = vmatprep.subr.mxu0 0.0
        %4020 = vmatpush1.msra.mxu0 0.0
        %4021 = vmatprep.subr.mxu0 0.0
        %4022 = vmatpush1.msra.mxu0 0.0
        %4023 = vmatprep.subr.mxu0 0.0
        %4024 = vmatpush1.msra.mxu0 0.0
        %4025 = vmatprep.subr.mxu0 0.0
        %4026 = vmatpush1.msra.mxu0 %v3901
        %4027 = vmatprep.subr.mxu0 0.0
        %4028 = vmatpush2.msra.mxu0 0.0
        %4029 = vmatprep.subr.mxu0 0.0
        %4030 = vmatpush2.msra.mxu0 0.0
        %4031 = vmatprep.subr.mxu0 0.0
        %4032 = vmatpush2.msra.mxu0 0.0
        %4033 = vmatprep.subr.mxu0 0.0
        %4034 = vmatpush2.msra.mxu0 0.0
        %4035 = vmatprep.subr.mxu0 0.0
        %4036 = vmatpush2.msra.mxu0 0.0
        %4037 = vmatprep.subr.mxu0 0.0
        %4038 = vmatpush2.msra.mxu0 0.0
        %4039 = vmatprep.subr.mxu0 0.0
        %4040 = vmatpush2.msra.mxu0 0.0
        %4041 = vmatprep.subr.mxu0 0.0
        %4042 = vmatpush2.msra.mxu0 0.0
        %4043 = vmatprep.subr.mxu0 0.0
        %4044 = vmatpush2.msra.mxu0 0.0
        %4045 = vmatprep.subr.mxu0 0.0
        %4046 = vmatpush2.msra.mxu0 0.0
        %4047 = vmatprep.subr.mxu0 0.0
        %4048 = vmatpush2.msra.mxu0 0.0
        %4049 = vmatprep.subr.mxu0 0.0
        %4050 = vmatpush2.msra.mxu0 0.0
        %4051 = vmatprep.subr.mxu0 0.0
        %4052 = vmatpush2.msra.mxu0 0.0
        %4053 = vmatprep.subr.mxu0 0.0
        %4054 = vmatpush2.msra.mxu0 0.0
        %4055 = vmatprep.subr.mxu0 0.0
        %4056 = vmatpush2.msra.mxu0 0.0
        %4057 = vmatprep.subr.mxu0 0.0
        %4058 = vmatpush2.msra.mxu0 0.0
        %4059 = vmatprep.mubr.f32.mxu0 0.0
        %4060 = vmatmul.mubr.f32.gmra.mxu0 %v3993
        %v4061 = vpop.f32.mrf.mxu0
        %v4062 = vadd.f32 0.0, %v4061
        %v4063 = vpop.f32.mrf.mxu0
        %4064 = vdwg.mxu0
        %4066 = vrot.lane.b32.xlu0 %v3242, 8
        %v4067 = vpop.permute.xlu0 %4066
        %4070 = vrot.lane.b32.xlu0 %v3652, 16
        %v4071 = vpop.permute.xlu0 %4070
        %4074 = vrot.lane.b32.xlu0 %v4062, 24
        %v4075 = vpop.permute.xlu0 %4074
        %v4077 = vsel %vm896, %v2832, %v4067
        %v4078 = vsel %vm2300, %v4077, %v4071
        %v4079 = vsel %vm2302, %v4078, %v4075
        %v4080 = vld [vmem:[%s10] sm:$0xff]
        %v4081 = vld [vmem:[%s10 + $0x8] sm:$0xff]
        %v4082 = vld [vmem:[%s10 + $0x10] sm:$0xff]
        %v4083 = vld [vmem:[%s10 + $0x18] sm:$0xff]
        %v4084 = vld [vmem:[%s11] sm:$0x1]
        %v4086 = vlaneseq
        %v4087 = vshrl.u32 %v4086, 7
        %v4088 = vsub.s32 0, %v4087
        %v4089 = vrot.slane %v4084, %v4088
        %v4092 = vsel %vm655, %v4079, 0
        %4094 = vmatprep.subr.mxu0 0.0
        %4095 = vmatpush1.msra.mxu0 0.0
        %4096 = vmatprep.subr.mxu0 0.0
        %4097 = vmatpush1.msra.mxu0 0.0
        %4098 = vmatprep.subr.mxu0 0.0
        %4099 = vmatpush1.msra.mxu0 0.0
        %4100 = vmatprep.subr.mxu0 0.0
        %4101 = vmatpush1.msra.mxu0 0.0
        %4102 = vmatprep.subr.mxu0 0.0
        %4103 = vmatpush1.msra.mxu0 0.0
        %4104 = vmatprep.subr.mxu0 0.0
        %4105 = vmatpush1.msra.mxu0 0.0
        %4106 = vmatprep.subr.mxu0 0.0
        %4107 = vmatpush1.msra.mxu0 0.0
        %4108 = vmatprep.subr.mxu0 0.0
        %4109 = vmatpush1.msra.mxu0 0.0
        %4110 = vmatprep.subr.mxu0 0.0
        %4111 = vmatpush1.msra.mxu0 0.0
        %4112 = vmatprep.subr.mxu0 0.0
        %4113 = vmatpush1.msra.mxu0 0.0
        %4114 = vmatprep.subr.mxu0 0.0
        %4115 = vmatpush1.msra.mxu0 0.0
        %4116 = vmatprep.subr.mxu0 0.0
        %4117 = vmatpush1.msra.mxu0 0.0
        %4118 = vmatprep.subr.mxu0 0.0
        %4119 = vmatpush1.msra.mxu0 %v4083
        %4120 = vmatprep.subr.mxu0 0.0
        %4121 = vmatpush1.msra.mxu0 %v4082
        %4122 = vmatprep.subr.mxu0 0.0
        %4123 = vmatpush1.msra.mxu0 %v4081
        %4124 = vmatprep.subr.mxu0 0.0
        %4125 = vmatpush1.msra.mxu0 %v4080
        %4126 = vmatprep.subr.mxu0 0.0
        %4127 = vmatpush2.msra.mxu0 0.0
        %4128 = vmatprep.subr.mxu0 0.0
        %4129 = vmatpush2.msra.mxu0 0.0
        %4130 = vmatprep.subr.mxu0 0.0
        %4131 = vmatpush2.msra.mxu0 0.0
        %4132 = vmatprep.subr.mxu0 0.0
        %4133 = vmatpush2.msra.mxu0 0.0
        %4134 = vmatprep.subr.mxu0 0.0
        %4135 = vmatpush2.msra.mxu0 0.0
        %4136 = vmatprep.subr.mxu0 0.0
        %4137 = vmatpush2.msra.mxu0 0.0
        %4138 = vmatprep.subr.mxu0 0.0
        %4139 = vmatpush2.msra.mxu0 0.0
        %4140 = vmatprep.subr.mxu0 0.0
        %4141 = vmatpush2.msra.mxu0 0.0
        %4142 = vmatprep.subr.mxu0 0.0
        %4143 = vmatpush2.msra.mxu0 0.0
        %4144 = vmatprep.subr.mxu0 0.0
        %4145 = vmatpush2.msra.mxu0 0.0
        %4146 = vmatprep.subr.mxu0 0.0
        %4147 = vmatpush2.msra.mxu0 0.0
        %4148 = vmatprep.subr.mxu0 0.0
        %4149 = vmatpush2.msra.mxu0 0.0
        %4150 = vmatprep.subr.mxu0 0.0
        %4151 = vmatpush2.msra.mxu0 0.0
        %4152 = vmatprep.subr.mxu0 0.0
        %4153 = vmatpush2.msra.mxu0 0.0
        %4154 = vmatprep.subr.mxu0 0.0
        %4155 = vmatpush2.msra.mxu0 0.0
        %4156 = vmatprep.subr.mxu0 0.0
        %4157 = vmatpush2.msra.mxu0 0.0
        %4158 = vmatprep.mubr.f32.mxu0 0.0
        %4159 = vmatmul.mubr.f32.gmra.mxu0 %v4092
        %v4160 = vpop.f32.mrf.mxu0
        %v4161 = vadd.f32 %v4089, %v4160
        %v4162 = vpop.f32.mrf.mxu0
        %4163 = vdwg.mxu0
        %v4164 = vadd.f32 %v2420, %v4161
        %v4165 = vld [vmem:[%s12] sm:$0x1]
        %v4166 = vld [vmem:[%s13] sm:$0x1]
        %v4167 = vsel %vm655, %v4164, 0.0
        %4168 = vadd.xlane.f32.xlu0 %v4167
        %v4169 = vpop.xlane.xlu0 %4168
        %v4170 = vmul.f32 %v4169, %v2394
        %v4171 = vmul.f32 %v4164, %v4164
        %v4172 = vsel %vm655, %v4171, 0.0
        %4173 = vadd.xlane.f32.xlu0 %v4172
        %v4174 = vpop.xlane.xlu0 %4173
        %v4175 = vmul.f32 %v4174, %v2394
        %v4176 = vmul.f32 %v4170, %v4170
        %v4177 = vsub.f32 %v4175, %v4176
        %v4178 = vsub.f32 %v4164, %v4170
        %v4179 = vadd.f32 %v4177, 1e-05
        %v4180 = vrsqrt.pop %v4179
        %v4181 = vmul.f32 %v4178, %v4180
        %v4183 = vlaneseq
        %v4184 = vshrl.u32 %v4183, 7
        %v4185 = vsub.s32 0, %v4184
        %v4186 = vrot.slane %v4165, %v4185
        %v4188 = vmul.f32 %v4181, %v4186
        %v4190 = vlaneseq
        %v4191 = vshrl.u32 %v4190, 7
        %v4192 = vsub.s32 0, %v4191
        %v4193 = vrot.slane %v4166, %v4192
        %v4195 = vadd.f32 %v4188, %v4193
        %v4196 = vld [vmem:[%s14] sm:$0xff]
        %v4197 = vld [vmem:[%s14 + $0x8] sm:$0xff]
        %v4198 = vld [vmem:[%s14 + $0x10] sm:$0xff]
        %v4199 = vld [vmem:[%s14 + $0x18] sm:$0xff]
        %v4200 = vld [vmem:[%s15] sm:$0x1]
        %v4202 = vlaneseq
        %v4203 = vshrl.u32 %v4202, 7
        %v4204 = vsub.s32 0, %v4203
        %v4205 = vrot.slane %v4200, %v4204
        %v4208 = vsel %vm655, %v4195, 0
        %4210 = vmatprep.subr.mxu0 0.0
        %4211 = vmatpush1.msra.mxu0 0.0
        %4212 = vmatprep.subr.mxu0 0.0
        %4213 = vmatpush1.msra.mxu0 0.0
        %4214 = vmatprep.subr.mxu0 0.0
        %4215 = vmatpush1.msra.mxu0 0.0
        %4216 = vmatprep.subr.mxu0 0.0
        %4217 = vmatpush1.msra.mxu0 0.0
        %4218 = vmatprep.subr.mxu0 0.0
        %4219 = vmatpush1.msra.mxu0 0.0
        %4220 = vmatprep.subr.mxu0 0.0
        %4221 = vmatpush1.msra.mxu0 0.0
        %4222 = vmatprep.subr.mxu0 0.0
        %4223 = vmatpush1.msra.mxu0 0.0
        %4224 = vmatprep.subr.mxu0 0.0
        %4225 = vmatpush1.msra.mxu0 0.0
        %4226 = vmatprep.subr.mxu0 0.0
        %4227 = vmatpush1.msra.mxu0 0.0
        %4228 = vmatprep.subr.mxu0 0.0
        %4229 = vmatpush1.msra.mxu0 0.0
        %4230 = vmatprep.subr.mxu0 0.0
        %4231 = vmatpush1.msra.mxu0 0.0
        %4232 = vmatprep.subr.mxu0 0.0
        %4233 = vmatpush1.msra.mxu0 0.0
        %4234 = vmatprep.subr.mxu0 0.0
        %4235 = vmatpush1.msra.mxu0 %v4199
        %4236 = vmatprep.subr.mxu0 0.0
        %4237 = vmatpush1.msra.mxu0 %v4198
        %4238 = vmatprep.subr.mxu0 0.0
        %4239 = vmatpush1.msra.mxu0 %v4197
        %4240 = vmatprep.subr.mxu0 0.0
        %4241 = vmatpush1.msra.mxu0 %v4196
        %4242 = vmatprep.subr.mxu0 0.0
        %4243 = vmatpush2.msra.mxu0 0.0
        %4244 = vmatprep.subr.mxu0 0.0
        %4245 = vmatpush2.msra.mxu0 0.0
        %4246 = vmatprep.subr.mxu0 0.0
        %4247 = vmatpush2.msra.mxu0 0.0
        %4248 = vmatprep.subr.mxu0 0.0
        %4249 = vmatpush2.msra.mxu0 0.0
        %4250 = vmatprep.subr.mxu0 0.0
        %4251 = vmatpush2.msra.mxu0 0.0
        %4252 = vmatprep.subr.mxu0 0.0
        %4253 = vmatpush2.msra.mxu0 0.0
        %4254 = vmatprep.subr.mxu0 0.0
        %4255 = vmatpush2.msra.mxu0 0.0
        %4256 = vmatprep.subr.mxu0 0.0
        %4257 = vmatpush2.msra.mxu0 0.0
        %4258 = vmatprep.subr.mxu0 0.0
        %4259 = vmatpush2.msra.mxu0 0.0
        %4260 = vmatprep.subr.mxu0 0.0
        %4261 = vmatpush2.msra.mxu0 0.0
        %4262 = vmatprep.subr.mxu0 0.0
        %4263 = vmatpush2.msra.mxu0 0.0
        %4264 = vmatprep.subr.mxu0 0.0
        %4265 = vmatpush2.msra.mxu0 0.0
        %4266 = vmatprep.subr.mxu0 0.0
        %4267 = vmatpush2.msra.mxu0 0.0
        %4268 = vmatprep.subr.mxu0 0.0
        %4269 = vmatpush2.msra.mxu0 0.0
        %4270 = vmatprep.subr.mxu0 0.0
        %4271 = vmatpush2.msra.mxu0 0.0
        %4272 = vmatprep.subr.mxu0 0.0
        %4273 = vmatpush2.msra.mxu0 0.0
        %4274 = vmatprep.mubr.f32.mxu0 0.0
        %4275 = vmatmul.mubr.f32.gmra.mxu0 %v4208
        %v4276 = vpop.f32.mrf.mxu0
        %v4277 = vadd.f32 %v4205, %v4276
        %v4278 = vpop.f32.mrf.mxu0
        %4279 = vdwg.mxu0
        %v4280 = vmax.f32 %v4277, 0.0
        %v4281 = vld [vmem:[%s16] sm:$0xff]
        %v4282 = vld [vmem:[%s16 + $0x8] sm:$0xff]
        %v4283 = vld [vmem:[%s16 + $0x10] sm:$0xff]
        %v4284 = vld [vmem:[%s16 + $0x18] sm:$0xff]
        %v4285 = vld [vmem:[%s16 + $0x20] sm:$0xff]
        %v4286 = vld [vmem:[%s16 + $0x28] sm:$0xff]
        %v4287 = vld [vmem:[%s16 + $0x30] sm:$0xff]
        %v4288 = vld [vmem:[%s16 + $0x38] sm:$0xff]
        %v4289 = vld [vmem:[%s17] sm:$0x1]
        %v4291 = vlaneseq
        %v4292 = vshrl.u32 %v4291, 7
        %v4293 = vsub.s32 0, %v4292
        %v4294 = vrot.slane %v4289, %v4293
        %vm4296 = vcmask 523264
        %v4298 = vsel %vm4296, %v4280, 0
        %4300 = vmatprep.subr.mxu0 0.0
        %4301 = vmatpush1.msra.mxu0 0.0
        %4302 = vmatprep.subr.mxu0 0.0
        %4303 = vmatpush1.msra.mxu0 0.0
        %4304 = vmatprep.subr.mxu0 0.0
        %4305 = vmatpush1.msra.mxu0 0.0
        %4306 = vmatprep.subr.mxu0 0.0
        %4307 = vmatpush1.msra.mxu0 0.0
        %4308 = vmatprep.subr.mxu0 0.0
        %4309 = vmatpush1.msra.mxu0 0.0
        %4310 = vmatprep.subr.mxu0 0.0
        %4311 = vmatpush1.msra.mxu0 0.0
        %4312 = vmatprep.subr.mxu0 0.0
        %4313 = vmatpush1.msra.mxu0 0.0
        %4314 = vmatprep.subr.mxu0 0.0
        %4315 = vmatpush1.msra.mxu0 0.0
        %4316 = vmatprep.subr.mxu0 0.0
        %4317 = vmatpush1.msra.mxu0 %v4288
        %4318 = vmatprep.subr.mxu0 0.0
        %4319 = vmatpush1.msra.mxu0 %v4287
        %4320 = vmatprep.subr.mxu0 0.0
        %4321 = vmatpush1.msra.mxu0 %v4286
        %4322 = vmatprep.subr.mxu0 0.0
        %4323 = vmatpush1.msra.mxu0 %v4285
        %4324 = vmatprep.subr.mxu0 0.0
        %4325 = vmatpush1.msra.mxu0 %v4284
        %4326 = vmatprep.subr.mxu0 0.0
        %4327 = vmatpush1.msra.mxu0 %v4283
        %4328 = vmatprep.subr.mxu0 0.0
        %4329 = vmatpush1.msra.mxu0 %v4282
        %4330 = vmatprep.subr.mxu0 0.0
        %4331 = vmatpush1.msra.mxu0 %v4281
        %4332 = vmatprep.subr.mxu0 0.0
        %4333 = vmatpush2.msra.mxu0 0.0
        %4334 = vmatprep.subr.mxu0 0.0
        %4335 = vmatpush2.msra.mxu0 0.0
        %4336 = vmatprep.subr.mxu0 0.0
        %4337 = vmatpush2.msra.mxu0 0.0
        %4338 = vmatprep.subr.mxu0 0.0
        %4339 = vmatpush2.msra.mxu0 0.0
        %4340 = vmatprep.subr.mxu0 0.0
        %4341 = vmatpush2.msra.mxu0 0.0
        %4342 = vmatprep.subr.mxu0 0.0
        %4343 = vmatpush2.msra.mxu0 0.0
        %4344 = vmatprep.subr.mxu0 0.0
        %4345 = vmatpush2.msra.mxu0 0.0
        %4346 = vmatprep.subr.mxu0 0.0
        %4347 = vmatpush2.msra.mxu0 0.0
        %4348 = vmatprep.subr.mxu0 0.0
        %4349 = vmatpush2.msra.mxu0 0.0
        %4350 = vmatprep.subr.mxu0 0.0
        %4351 = vmatpush2.msra.mxu0 0.0
        %4352 = vmatprep.subr.mxu0 0.0
        %4353 = vmatpush2.msra.mxu0 0.0
        %4354 = vmatprep.subr.mxu0 0.0
        %4355 = vmatpush2.msra.mxu0 0.0
        %4356 = vmatprep.subr.mxu0 0.0
        %4357 = vmatpush2.msra.mxu0 0.0
        %4358 = vmatprep.subr.mxu0 0.0
        %4359 = vmatpush2.msra.mxu0 0.0
        %4360 = vmatprep.subr.mxu0 0.0
        %4361 = vmatpush2.msra.mxu0 0.0
        %4362 = vmatprep.subr.mxu0 0.0
        %4363 = vmatpush2.msra.mxu0 0.0
        %4364 = vmatprep.mubr.f32.mxu0 0.0
        %4365 = vmatmul.mubr.f32.gmra.mxu0 %v4298
        %v4366 = vpop.f32.mrf.mxu0
        %v4367 = vadd.f32 %v4294, %v4366
        %v4368 = vpop.f32.mrf.mxu0
        %4369 = vdwg.mxu0
        %v4370 = vadd.f32 %v4195, %v4367
        %v4371 = vld [vmem:[%s18] sm:$0x1]
        %v4372 = vld [vmem:[%s19] sm:$0x1]
        %v4373 = vsel %vm655, %v4370, 0.0
        %4374 = vadd.xlane.f32.xlu0 %v4373
        %v4375 = vpop.xlane.xlu0 %4374
        %v4376 = vmul.f32 %v4375, %v2394
        %v4377 = vmul.f32 %v4370, %v4370
        %v4378 = vsel %vm655, %v4377, 0.0
        %4379 = vadd.xlane.f32.xlu0 %v4378
        %v4380 = vpop.xlane.xlu0 %4379
        %v4381 = vmul.f32 %v4380, %v2394
        %v4382 = vmul.f32 %v4376, %v4376
        %v4383 = vsub.f32 %v4381, %v4382
        %v4384 = vsub.f32 %v4370, %v4376
        %v4385 = vadd.f32 %v4383, 1e-05
        %v4386 = vrsqrt.pop %v4385
        %v4387 = vmul.f32 %v4384, %v4386
        %v4389 = vlaneseq
        %v4390 = vshrl.u32 %v4389, 7
        %v4391 = vsub.s32 0, %v4390
        %v4392 = vrot.slane %v4371, %v4391
        %v4394 = vmul.f32 %v4387, %v4392
        %v4396 = vlaneseq
        %v4397 = vshrl.u32 %v4396, 7
        %v4398 = vsub.s32 0, %v4397
        %v4399 = vrot.slane %v4372, %v4398
        %v4401 = vadd.f32 %v4394, %v4399
        %4402 = vst.msk [vmem:[%s633] sm:$0xff] %vm655, %v4401
        %s4403 = sand.u32 %s472, 1
        %s4404 = scalar_lea.sflag [#allocation3], %s4403
        %s4405 = sand.u32 %s472, 1
        %s4406 = smul.addr %s4405, 8
        %s4407 = scalar_lea.vmem [#allocation2], %s4406
        // Predicated region
        $region101: #{decoder_layer_forward.1} parent=99 // pred_check
          %p4408 = pneg %p482
        $region102: #{decoder_layer_forward.1} parent=99 // pred_check_branch
          %4410 = sbr.rel (%p4408) target = $region104
        $region103: #{decoder_layer_forward.1} parent=99 // pred_region
          %s4412 = ssub.s32 128, 128
          %4413 = vsyncadd %s4404, %s4412
          %s4414 = smul.addr %s34, 128
          %s4415 = scalar_lea.hbm %s20, %s4414
          %s4417 = sshll.u32 %s4407, 4
          %s4418 = int_to_ptr.vmem [resolvable:$true] %s4417
          %4420 = dma.vmem_to_hbm [thread:$0]  %s4418, 128, %s4415, %s4404
        $region104: #{decoder_layer_forward.1} parent=99 // pred_fallthru
          _
      $region100: #{decoder_layer_forward.1} parent=5 // pred_fallthru
        _
      %p4421 = scmp.le.s32.totalorder 2, %s29
      // Predicated region
      $region105: #{decoder_layer_forward.1} parent=5 // pred_check
        %p4422 = pneg %p4421
      $region106: #{decoder_layer_forward.1} parent=5 // pred_check_branch
        %4424 = sbr.rel (%p4422) target = $region108
      $region107: #{decoder_layer_forward.1} parent=5 // pred_region
        %s4425 = ssub.s32 %s29, 2
        // Predicated region
        $region109: #{decoder_layer_forward.1} parent=107 // pred_check
          %p4426 = pneg %p488
        $region110: #{decoder_layer_forward.1} parent=107 // pred_check_branch
          %4428 = sbr.rel (%p4426) target = $region112
        $region111: #{decoder_layer_forward.1} parent=107 // pred_region
          %s4429 = sand.u32 %s473, 1
          %s4430 = scalar_lea.sflag [#allocation3], %s4429
          %s4431 = sand.u32 %s473, 1
          %s4432 = smul.addr %s4431, 8
          %s4433 = scalar_lea.vmem [#allocation2], %s4432
          %4434 = dma.done %s4430, 128
        $region112: #{decoder_layer_forward.1} parent=107 // pred_fallthru
          _
      $region108: #{decoder_layer_forward.1} parent=5 // pred_fallthru
        _
    $region6: #{decoder_layer_forward.1} parent=1 // loop_footer
      %s33 = sadd.s32 1, %s29
    $region7: #{decoder_layer_forward.1} parent=1 // loop_footer_branch
      %28 = sbr.rel target = $region3
    $region8: #{decoder_layer_forward.1} parent=1 // loop_exit
      _
    %4435 = vsyncpa [#allocation3], 1
    %s4436 = scalar_lea.sflag [#allocation3], 1
    %4437 = vsyncpa %s4436, 1

</llo_original>
